<compile_context>
chip_gen: v7x
topology: tpu7x:2x2x1
jax: 0.10.0
libtpu: 0.0.40
codegen_flags: <defaults>
</compile_context>

<pallas_src>
import functools

import jax
import jax.numpy as jnp
from jax.experimental import pallas as pl
from jax.experimental.pallas import tpu as pltpu

# ----------------------- config (small, consistent with module) ------------
VOCAB = 64
VOCAB_PAD = 128          # lane-dense LM-head output (sliced back to VOCAB outside)
N_EMBD = 32
N_HEAD = 4
HEAD_DIM = N_EMBD // N_HEAD
N_LAYER = 2
BLOCK_SIZE = 8
LN_EPS = 1e-5            # torch.nn.LayerNorm default
NEG_BIG = -1e30          # additive mask value (finite; avoids inf-inf NaN)

# order must match gpt_fused_kernel signature
WEIGHT_KEYS = ['g1', 'b1', 'wq', 'wk', 'wv', 'wpo', 'bp',
               'g2', 'b2', 'w1T', 'bf1', 'w2T', 'bf2',
               'gf', 'bf', 'whT', 'bh']


# ----------------------------- kernel helpers ------------------------------
def _layernorm(x, gamma, beta):
    mu = jnp.mean(x, axis=-1, keepdims=True)
    var = jnp.mean((x - mu) ** 2, axis=-1, keepdims=True)
    return (x - mu) * jax.lax.rsqrt(var + LN_EPS) * gamma + beta


# ----------------------------- fused GPT kernel -----------------------------
def gpt_fused_kernel(x_ref, bias_ref,
                     g1_ref, b1_ref, wq_ref, wk_ref, wv_ref, wpo_ref, bp_ref,
                     g2_ref, b2_ref, w1_ref, bf1_ref, w2_ref, bf2_ref,
                     gf_ref, bf_ref, wh_ref, bh_ref,
                     o_ref, *, n_layer, n_head, head_dim):
    x = x_ref[...]            # (B*T, C) residual stream, whole batch folded in rows
    bias = bias_ref[...]      # (B*T, B*T) additive block-diagonal causal bias
    scale = head_dim ** (-0.5)

    for l in range(n_layer):                       # static unroll over layers
        # ---- multi-head causal self-attention (pre-norm) ----
        h = _layernorm(x, g1_ref[l], b1_ref[l])
        attn = None
        for hd_i in range(n_head):                 # static unroll over heads
            w_idx = l * n_head + hd_i
            qh = jnp.dot(h, wq_ref[w_idx], preferred_element_type=jnp.float32)  # (BT, HD)
            kh = jnp.dot(h, wk_ref[w_idx], preferred_element_type=jnp.float32)
            vh = jnp.dot(h, wv_ref[w_idx], preferred_element_type=jnp.float32)
            s = jnp.dot(qh, kh.T, preferred_element_type=jnp.float32) * scale + bias
            s = s - jnp.max(s, axis=-1, keepdims=True)
            e = jnp.exp(s)
            p = e * pl.reciprocal(jnp.sum(e, axis=-1, keepdims=True), approx=True)
            ctx = jnp.dot(p, vh, preferred_element_type=jnp.float32)            # (BT, HD)
            # fold "concat heads" into the output projection: accumulate
            # ctx_h @ WprojT[h*hd:(h+1)*hd, :]
            contrib = jnp.dot(ctx, wpo_ref[w_idx], preferred_element_type=jnp.float32)
            attn = contrib if attn is None else attn + contrib
        x = x + attn + bp_ref[l]

        # ---- feed-forward (pre-norm) ----
        h2 = _layernorm(x, g2_ref[l], b2_ref[l])
        ff = jnp.dot(h2, w1_ref[l], preferred_element_type=jnp.float32) + bf1_ref[l]
        ff = jnp.maximum(ff, 0.0)
        ff = jnp.dot(ff, w2_ref[l], preferred_element_type=jnp.float32) + bf2_ref[l]
        x = x + ff

    # ---- final LN + LM head (lane-dense padded vocab) ----
    hf = _layernorm(x, gf_ref[...], bf_ref[...])
    o_ref[...] = jnp.dot(hf, wh_ref[...], preferred_element_type=jnp.float32) + bh_ref[...]


# ----------------------------- wrapper ---------------------------------------
def _attn_bias(batch, seq):
    """Additive (B*T, B*T) bias: 0 where same batch & causal, -1e30 otherwise."""
    rows = jnp.arange(batch * seq)
    rb, rt = rows // seq, rows % seq
    allowed = (rb[:, None] == rb[None, :]) & (rt[:, None] >= rt[None, :])
    return jnp.where(allowed, 0.0, NEG_BIG).astype(jnp.float32)


def gpt_forward(idx, kp):
    """idx: int32 (B, T) token ids -> logits float32 (B, T, VOCAB)."""
    B, T = idx.shape
    assert T <= BLOCK_SIZE
    # embedding gather is plain-JAX glue (no clean static-BlockSpec gather at this size)
    tok_emb = jnp.take(kp['tok_emb'], idx, axis=0)           # (B, T, C)
    pos_emb = kp['pos_emb'][:T][None, :, :]                  # (1, T, C)
    x2 = (tok_emb + pos_emb).reshape(B * T, N_EMBD)          # fold batch into rows
    bias = _attn_bias(B, T)

    weights = [kp[k] for k in WEIGHT_KEYS]
    kernel = functools.partial(gpt_fused_kernel,
                               n_layer=N_LAYER, n_head=N_HEAD, head_dim=HEAD_DIM)
    out = pl.pallas_call(
        kernel,
        out_shape=jax.ShapeDtypeStruct((B * T, VOCAB_PAD), jnp.float32),
        in_specs=[pl.BlockSpec(memory_space=pltpu.MemorySpace.VMEM)] * (2 + len(weights)),
        out_specs=pl.BlockSpec(memory_space=pltpu.MemorySpace.VMEM),
    )(x2, bias, *weights)
    return out.reshape(B, T, VOCAB_PAD)[:, :, :VOCAB]


# ----------------------------- parameters ------------------------------------
def init_params(key):
    """Create torch-shaped parameters (matching GPTLanguageModel._init_weights)."""
    n_lin = 4 * N_LAYER + 1
    keys = iter(jax.random.split(key, 2 + n_lin))

    def nrm(shape):
        return 0.02 * jax.random.normal(next(keys), shape, jnp.float32)

    tp = {
        'tok_emb': nrm((VOCAB, N_EMBD)),
        'pos_emb': nrm((BLOCK_SIZE, N_EMBD)),
        'blocks': [],
        'lnf_g': jnp.ones((N_EMBD,), jnp.float32),
        'lnf_b': jnp.zeros((N_EMBD,), jnp.float32),
    }
    for _ in range(N_LAYER):
        tp['blocks'].append(dict(
            ln1_g=jnp.ones((N_EMBD,), jnp.float32),
            ln1_b=jnp.zeros((N_EMBD,), jnp.float32),
            w_qkv=nrm((3 * N_EMBD, N_EMBD)),       # Linear(n_embd, 3*n_embd, bias=False)
            w_proj=nrm((N_EMBD, N_EMBD)),
            b_proj=jnp.zeros((N_EMBD,), jnp.float32),
            ln2_g=jnp.ones((N_EMBD,), jnp.float32),
            ln2_b=jnp.zeros((N_EMBD,), jnp.float32),
            w1=nrm((4 * N_EMBD, N_EMBD)),
            b1=jnp.zeros((4 * N_EMBD,), jnp.float32),
            w2=nrm((N_EMBD, 4 * N_EMBD)),
            b2=jnp.zeros((N_EMBD,), jnp.float32),
        ))
    tp['w_head'] = nrm((VOCAB, N_EMBD))
    tp['b_head'] = jnp.zeros((VOCAB,), jnp.float32)
    return tp


def pack_kernel_params(tp):
    """Re-pack torch-shaped params into kernel layout (head-major, pre-transposed)."""
    kp = {'tok_emb': tp['tok_emb'], 'pos_emb': tp['pos_emb']}

    wq_l, wk_l, wv_l, wpo_l = [], [], [], []
    for blk in tp['blocks']:
        wqkvT = blk['w_qkv'].T          # (C, 3C); matches x @ W_qkv.T
        wprojT = blk['w_proj'].T        # (C, C)
        for h in range(N_HEAD):
            base = h * 3 * HEAD_DIM     # replicates view(B,T,nh,3*hd).chunk(3,-1)
            wq_l.append(wqkvT[:, base:base + HEAD_DIM])
            wk_l.append(wqkvT[:, base + HEAD_DIM:base + 2 * HEAD_DIM])
            wv_l.append(wqkvT[:, base + 2 * HEAD_DIM:base + 3 * HEAD_DIM])
            wpo_l.append(wprojT[h * HEAD_DIM:(h + 1) * HEAD_DIM, :])

    kp['wq'] = jnp.stack(wq_l)          # (L*NH, C, HD)
    kp['wk'] = jnp.stack(wk_l)
    kp['wv'] = jnp.stack(wv_l)
    kp['wpo'] = jnp.stack(wpo_l)        # (L*NH, HD, C)

    kp['g1'] = jnp.stack([b['ln1_g'][None, :] for b in tp['blocks']])   # (L,1,C)
    kp['b1'] = jnp.stack([b['ln1_b'][None, :] for b in tp['blocks']])
    kp['bp'] = jnp.stack([b['b_proj'][None, :] for b in tp['blocks']])
    kp['g2'] = jnp.stack([b['ln2_g'][None, :] for b in tp['blocks']])
    kp['b2'] = jnp.stack([b['ln2_b'][None, :] for b in tp['blocks']])
    kp['w1T'] = jnp.stack([b['w1'].T for b in tp['blocks']])            # (L,C,4C)
    kp['bf1'] = jnp.stack([b['b1'][None, :] for b in tp['blocks']])     # (L,1,4C)
    kp['w2T'] = jnp.stack([b['w2'].T for b in tp['blocks']])            # (L,4C,C)
    kp['bf2'] = jnp.stack([b['b2'][None, :] for b in tp['blocks']])     # (L,1,C)

    kp['gf'] = tp['lnf_g'][None, :]
    kp['bf'] = tp['lnf_b'][None, :]
    whT = tp['w_head'].T                                                 # (C, V)
    kp['whT'] = jnp.zeros((N_EMBD, VOCAB_PAD), jnp.float32).at[:, :VOCAB].set(whT)
    kp['bh'] = jnp.zeros((1, VOCAB_PAD), jnp.float32).at[:, :VOCAB].set(
        tp['b_head'][None, :])
    return kp


# ----------------------------- pure-JAX reference ----------------------------
def reference_forward(idx, tp):
    """Direct transcription of the PyTorch module (eval mode) for validation."""
    B, T = idx.shape

    def ln(x, g, b):
        mu = jnp.mean(x, axis=-1, keepdims=True)
        var = jnp.mean((x - mu) ** 2, axis=-1, keepdims=True)
        return (x - mu) * jax.lax.rsqrt(var + LN_EPS) * g + b

    x = jnp.take(tp['tok_emb'], idx, axis=0) + tp['pos_emb'][:T][None, :, :]
    mask = jnp.tril(jnp.ones((T, T), bool))
    for blk in tp['blocks']:
        h = ln(x, blk['ln1_g'], blk['ln1_b'])
        qkv = h @ blk['w_qkv'].T                                # (B,T,3C)
        qkv = qkv.reshape(B, T, N_HEAD, 3 * HEAD_DIM)
        q, k, v = jnp.split(qkv, 3, axis=-1)                    # (B,T,nh,hd) each
        q, k, v = (jnp.transpose(a, (0, 2, 1, 3)) for a in (q, k, v))
        att = jnp.einsum('bhqd,bhkd->bhqk', q, k) * HEAD_DIM ** (-0.5)
        att = jnp.where(mask[None, None], att, -jnp.inf)
        p = jax.nn.softmax(att, axis=-1)
        out = jnp.einsum('bhqk,bhkd->bhqd', p, v)
        out = jnp.transpose(out, (0, 2, 1, 3)).reshape(B, T, N_EMBD)
        x = x + out @ blk['w_proj'].T + blk['b_proj']
        h2 = ln(x, blk['ln2_g'], blk['ln2_b'])
        ff = jnp.maximum(h2 @ blk['w1'].T + blk['b1'], 0.0)
        x = x + ff @ blk['w2'].T + blk['b2']
    hf = ln(x, tp['lnf_g'], tp['lnf_b'])
    return hf @ tp['w_head'].T + tp['b_head']


# ------------------------------------ main -----------------------------------
if __name__ == "__main__":
    key = jax.random.PRNGKey(0)
    pkey, ikey = jax.random.split(key)
    tp = init_params(pkey)
    kp = pack_kernel_params(tp)

    B, T = 2, BLOCK_SIZE
    idx = jax.random.randint(ikey, (B, T), 0, VOCAB, dtype=jnp.int32)

    logits = jax.jit(gpt_forward)(idx, kp)
    jax.block_until_ready(logits)
    assert logits.shape == (B, T, VOCAB) and logits.dtype == jnp.float32

    ref = reference_forward(idx, tp)
    max_err = float(jnp.max(jnp.abs(logits - ref)))
    assert max_err < 1e-2, f"kernel vs reference mismatch: {max_err}"
    print("KERNEL_OK")
</pallas_src>

<mosaic_0001>
module attributes {stable_mosaic.version = 11 : i64} {
  func.func @gpt_fused_kernel(%arg0: memref<16x32xf32, #tpu.memory_space<vmem>>, %arg1: memref<16x16xf32, #tpu.memory_space<vmem>>, %arg2: memref<2x1x32xf32, #tpu.memory_space<vmem>>, %arg3: memref<2x1x32xf32, #tpu.memory_space<vmem>>, %arg4: memref<8x32x8xf32, #tpu.memory_space<vmem>>, %arg5: memref<8x32x8xf32, #tpu.memory_space<vmem>>, %arg6: memref<8x32x8xf32, #tpu.memory_space<vmem>>, %arg7: memref<8x8x32xf32, #tpu.memory_space<vmem>>, %arg8: memref<2x1x32xf32, #tpu.memory_space<vmem>>, %arg9: memref<2x1x32xf32, #tpu.memory_space<vmem>>, %arg10: memref<2x1x32xf32, #tpu.memory_space<vmem>>, %arg11: memref<2x32x128xf32, #tpu.memory_space<vmem>>, %arg12: memref<2x1x128xf32, #tpu.memory_space<vmem>>, %arg13: memref<2x128x32xf32, #tpu.memory_space<vmem>>, %arg14: memref<2x1x32xf32, #tpu.memory_space<vmem>>, %arg15: memref<1x32xf32, #tpu.memory_space<vmem>>, %arg16: memref<1x32xf32, #tpu.memory_space<vmem>>, %arg17: memref<32x128xf32, #tpu.memory_space<vmem>>, %arg18: memref<1x128xf32, #tpu.memory_space<vmem>>, %arg19: memref<16x128xf32, #tpu.memory_space<vmem>>) attributes {dimension_semantics = [], scalar_prefetch = 0 : i64, scratch_operands = 0 : i64, tpu.core_type = #tpu.core_type<tc>} {
    %c0 = arith.constant 0 : index
    %c0_0 = arith.constant 0 : index
    %0 = vector.load %arg0[%c0, %c0_0] : memref<16x32xf32, #tpu.memory_space<vmem>>, vector<16x32xf32>
    %c0_1 = arith.constant 0 : index
    %c0_2 = arith.constant 0 : index
    %1 = vector.load %arg1[%c0_1, %c0_2] : memref<16x16xf32, #tpu.memory_space<vmem>>, vector<16x16xf32>
    %c0_3 = arith.constant 0 : index
    %c0_4 = arith.constant 0 : index
    %c0_5 = arith.constant 0 : index
    %2 = vector.load %arg2[%c0_3, %c0_4, %c0_5] : memref<2x1x32xf32, #tpu.memory_space<vmem>>, vector<1x1x32xf32>
    %3 = vector.shape_cast %2 : vector<1x1x32xf32> to vector<1x32xf32>
    %c0_6 = arith.constant 0 : index
    %c0_7 = arith.constant 0 : index
    %c0_8 = arith.constant 0 : index
    %4 = vector.load %arg3[%c0_6, %c0_7, %c0_8] : memref<2x1x32xf32, #tpu.memory_space<vmem>>, vector<1x1x32xf32>
    %5 = vector.shape_cast %4 : vector<1x1x32xf32> to vector<1x32xf32>
    %cst = arith.constant dense<0.000000e+00> : vector<16xf32>
    %6 = vector.multi_reduction <add>, %0, %cst [1] : vector<16x32xf32> to vector<16xf32>
    %7 = vector.shape_cast %6 : vector<16xf32> to vector<16x1xf32>
    %cst_9 = arith.constant 3.200000e+01 : f32
    %8 = vector.broadcast %cst_9 : f32 to vector<16x1xf32>
    %9 = arith.divf %7, %8 : vector<16x1xf32>
    %10 = vector.broadcast %9 : vector<16x1xf32> to vector<16x32xf32>
    %11 = arith.subf %0, %10 : vector<16x32xf32>
    %12 = arith.mulf %11, %11 : vector<16x32xf32>
    %cst_10 = arith.constant dense<0.000000e+00> : vector<16xf32>
    %13 = vector.multi_reduction <add>, %12, %cst_10 [1] : vector<16x32xf32> to vector<16xf32>
    %14 = vector.shape_cast %13 : vector<16xf32> to vector<16x1xf32>
    %cst_11 = arith.constant 3.200000e+01 : f32
    %15 = vector.broadcast %cst_11 : f32 to vector<16x1xf32>
    %16 = arith.divf %14, %15 : vector<16x1xf32>
    %17 = vector.broadcast %9 : vector<16x1xf32> to vector<16x32xf32>
    %18 = arith.subf %0, %17 : vector<16x32xf32>
    %cst_12 = arith.constant 9.99999974E-6 : f32
    %19 = vector.broadcast %cst_12 : f32 to vector<16x1xf32>
    %20 = arith.addf %16, %19 : vector<16x1xf32>
    %21 = math.rsqrt %20 : vector<16x1xf32>
    %22 = vector.broadcast %21 : vector<16x1xf32> to vector<16x32xf32>
    %23 = arith.mulf %18, %22 : vector<16x32xf32>
    %24 = vector.broadcast %3 : vector<1x32xf32> to vector<16x32xf32>
    %25 = arith.mulf %23, %24 : vector<16x32xf32>
    %26 = vector.broadcast %5 : vector<1x32xf32> to vector<16x32xf32>
    %27 = arith.addf %25, %26 : vector<16x32xf32>
    %c0_13 = arith.constant 0 : index
    %c0_14 = arith.constant 0 : index
    %c0_15 = arith.constant 0 : index
    %28 = vector.load %arg4[%c0_13, %c0_14, %c0_15] : memref<8x32x8xf32, #tpu.memory_space<vmem>>, vector<1x32x8xf32>
    %29 = vector.shape_cast %28 : vector<1x32x8xf32> to vector<32x8xf32>
    %cst_16 = arith.constant dense<0.000000e+00> : vector<16x8xf32>
    %30 = tpu.matmul %27, %29, %cst_16 {dimension_numbers = #tpu.dot_dimension_numbers<[1], [0], [0], [1], [0, 0, 1, 1], [], []>} : vector<16x32xf32>, vector<32x8xf32>, vector<16x8xf32> -> vector<16x8xf32>
    %c0_17 = arith.constant 0 : index
    %c0_18 = arith.constant 0 : index
    %c0_19 = arith.constant 0 : index
    %31 = vector.load %arg5[%c0_17, %c0_18, %c0_19] : memref<8x32x8xf32, #tpu.memory_space<vmem>>, vector<1x32x8xf32>
    %32 = vector.shape_cast %31 : vector<1x32x8xf32> to vector<32x8xf32>
    %cst_20 = arith.constant dense<0.000000e+00> : vector<16x8xf32>
    %33 = tpu.matmul %27, %32, %cst_20 {dimension_numbers = #tpu.dot_dimension_numbers<[1], [0], [0], [1], [0, 0, 1, 1], [], []>} : vector<16x32xf32>, vector<32x8xf32>, vector<16x8xf32> -> vector<16x8xf32>
    %c0_21 = arith.constant 0 : index
    %c0_22 = arith.constant 0 : index
    %c0_23 = arith.constant 0 : index
    %34 = vector.load %arg6[%c0_21, %c0_22, %c0_23] : memref<8x32x8xf32, #tpu.memory_space<vmem>>, vector<1x32x8xf32>
    %35 = vector.shape_cast %34 : vector<1x32x8xf32> to vector<32x8xf32>
    %cst_24 = arith.constant dense<0.000000e+00> : vector<16x8xf32>
    %36 = tpu.matmul %27, %35, %cst_24 {dimension_numbers = #tpu.dot_dimension_numbers<[1], [0], [0], [1], [0, 0, 1, 1], [], []>} : vector<16x32xf32>, vector<32x8xf32>, vector<16x8xf32> -> vector<16x8xf32>
    %37 = tpu.transpose %33, [1, 0] : vector<16x8xf32> -> vector<8x16xf32>
    %cst_25 = arith.constant dense<0.000000e+00> : vector<16x16xf32>
    %38 = tpu.matmul %30, %37, %cst_25 {dimension_numbers = #tpu.dot_dimension_numbers<[1], [0], [0], [1], [0, 0, 1, 1], [], []>} : vector<16x8xf32>, vector<8x16xf32>, vector<16x16xf32> -> vector<16x16xf32>
    %cst_26 = arith.constant 0.353553385 : f32
    %39 = vector.broadcast %cst_26 : f32 to vector<16x16xf32>
    %40 = arith.mulf %38, %39 : vector<16x16xf32>
    %41 = arith.addf %40, %1 : vector<16x16xf32>
    %cst_27 = arith.constant dense<0xFF800000> : vector<16xf32>
    %42 = vector.multi_reduction <maximumf>, %41, %cst_27 [1] : vector<16x16xf32> to vector<16xf32>
    %43 = vector.shape_cast %42 : vector<16xf32> to vector<16x1xf32>
    %44 = vector.broadcast %43 : vector<16x1xf32> to vector<16x16xf32>
    %45 = arith.subf %41, %44 : vector<16x16xf32>
    %46 = math.exp %45 : vector<16x16xf32>
    %cst_28 = arith.constant dense<0.000000e+00> : vector<16xf32>
    %47 = vector.multi_reduction <add>, %46, %cst_28 [1] : vector<16x16xf32> to vector<16xf32>
    %48 = vector.shape_cast %47 : vector<16xf32> to vector<16x1xf32>
    %49 = tpu.reciprocal %48 {approx = true} : vector<16x1xf32> -> vector<16x1xf32>
    %50 = vector.broadcast %49 : vector<16x1xf32> to vector<16x16xf32>
    %51 = arith.mulf %46, %50 : vector<16x16xf32>
    %cst_29 = arith.constant dense<0.000000e+00> : vector<16x8xf32>
    %52 = tpu.matmul %51, %36, %cst_29 {dimension_numbers = #tpu.dot_dimension_numbers<[1], [0], [0], [1], [0, 0, 1, 1], [], []>} : vector<16x16xf32>, vector<16x8xf32>, vector<16x8xf32> -> vector<16x8xf32>
    %c0_30 = arith.constant 0 : index
    %c0_31 = arith.constant 0 : index
    %c0_32 = arith.constant 0 : index
    %53 = vector.load %arg7[%c0_30, %c0_31, %c0_32] : memref<8x8x32xf32, #tpu.memory_space<vmem>>, vector<1x8x32xf32>
    %54 = vector.shape_cast %53 : vector<1x8x32xf32> to vector<8x32xf32>
    %cst_33 = arith.constant dense<0.000000e+00> : vector<16x32xf32>
    %55 = tpu.matmul %52, %54, %cst_33 {dimension_numbers = #tpu.dot_dimension_numbers<[1], [0], [0], [1], [0, 0, 1, 1], [], []>} : vector<16x8xf32>, vector<8x32xf32>, vector<16x32xf32> -> vector<16x32xf32>
    %c1 = arith.constant 1 : index
    %c0_34 = arith.constant 0 : index
    %c0_35 = arith.constant 0 : index
    %56 = vector.load %arg4[%c1, %c0_34, %c0_35] : memref<8x32x8xf32, #tpu.memory_space<vmem>>, vector<1x32x8xf32>
    %57 = vector.shape_cast %56 : vector<1x32x8xf32> to vector<32x8xf32>
    %cst_36 = arith.constant dense<0.000000e+00> : vector<16x8xf32>
    %58 = tpu.matmul %27, %57, %cst_36 {dimension_numbers = #tpu.dot_dimension_numbers<[1], [0], [0], [1], [0, 0, 1, 1], [], []>} : vector<16x32xf32>, vector<32x8xf32>, vector<16x8xf32> -> vector<16x8xf32>
    %c1_37 = arith.constant 1 : index
    %c0_38 = arith.constant 0 : index
    %c0_39 = arith.constant 0 : index
    %59 = vector.load %arg5[%c1_37, %c0_38, %c0_39] : memref<8x32x8xf32, #tpu.memory_space<vmem>>, vector<1x32x8xf32>
    %60 = vector.shape_cast %59 : vector<1x32x8xf32> to vector<32x8xf32>
    %cst_40 = arith.constant dense<0.000000e+00> : vector<16x8xf32>
    %61 = tpu.matmul %27, %60, %cst_40 {dimension_numbers = #tpu.dot_dimension_numbers<[1], [0], [0], [1], [0, 0, 1, 1], [], []>} : vector<16x32xf32>, vector<32x8xf32>, vector<16x8xf32> -> vector<16x8xf32>
    %c1_41 = arith.constant 1 : index
    %c0_42 = arith.constant 0 : index
    %c0_43 = arith.constant 0 : index
    %62 = vector.load %arg6[%c1_41, %c0_42, %c0_43] : memref<8x32x8xf32, #tpu.memory_space<vmem>>, vector<1x32x8xf32>
    %63 = vector.shape_cast %62 : vector<1x32x8xf32> to vector<32x8xf32>
    %cst_44 = arith.constant dense<0.000000e+00> : vector<16x8xf32>
    %64 = tpu.matmul %27, %63, %cst_44 {dimension_numbers = #tpu.dot_dimension_numbers<[1], [0], [0], [1], [0, 0, 1, 1], [], []>} : vector<16x32xf32>, vector<32x8xf32>, vector<16x8xf32> -> vector<16x8xf32>
    %65 = tpu.transpose %61, [1, 0] : vector<16x8xf32> -> vector<8x16xf32>
    %cst_45 = arith.constant dense<0.000000e+00> : vector<16x16xf32>
    %66 = tpu.matmul %58, %65, %cst_45 {dimension_numbers = #tpu.dot_dimension_numbers<[1], [0], [0], [1], [0, 0, 1, 1], [], []>} : vector<16x8xf32>, vector<8x16xf32>, vector<16x16xf32> -> vector<16x16xf32>
    %cst_46 = arith.constant 0.353553385 : f32
    %67 = vector.broadcast %cst_46 : f32 to vector<16x16xf32>
    %68 = arith.mulf %66, %67 : vector<16x16xf32>
    %69 = arith.addf %68, %1 : vector<16x16xf32>
    %cst_47 = arith.constant dense<0xFF800000> : vector<16xf32>
    %70 = vector.multi_reduction <maximumf>, %69, %cst_47 [1] : vector<16x16xf32> to vector<16xf32>
    %71 = vector.shape_cast %70 : vector<16xf32> to vector<16x1xf32>
    %72 = vector.broadcast %71 : vector<16x1xf32> to vector<16x16xf32>
    %73 = arith.subf %69, %72 : vector<16x16xf32>
    %74 = math.exp %73 : vector<16x16xf32>
    %cst_48 = arith.constant dense<0.000000e+00> : vector<16xf32>
    %75 = vector.multi_reduction <add>, %74, %cst_48 [1] : vector<16x16xf32> to vector<16xf32>
    %76 = vector.shape_cast %75 : vector<16xf32> to vector<16x1xf32>
    %77 = tpu.reciprocal %76 {approx = true} : vector<16x1xf32> -> vector<16x1xf32>
    %78 = vector.broadcast %77 : vector<16x1xf32> to vector<16x16xf32>
    %79 = arith.mulf %74, %78 : vector<16x16xf32>
    %cst_49 = arith.constant dense<0.000000e+00> : vector<16x8xf32>
    %80 = tpu.matmul %79, %64, %cst_49 {dimension_numbers = #tpu.dot_dimension_numbers<[1], [0], [0], [1], [0, 0, 1, 1], [], []>} : vector<16x16xf32>, vector<16x8xf32>, vector<16x8xf32> -> vector<16x8xf32>
    %c1_50 = arith.constant 1 : index
    %c0_51 = arith.constant 0 : index
    %c0_52 = arith.constant 0 : index
    %81 = vector.load %arg7[%c1_50, %c0_51, %c0_52] : memref<8x8x32xf32, #tpu.memory_space<vmem>>, vector<1x8x32xf32>
    %82 = vector.shape_cast %81 : vector<1x8x32xf32> to vector<8x32xf32>
    %cst_53 = arith.constant dense<0.000000e+00> : vector<16x32xf32>
    %83 = tpu.matmul %80, %82, %cst_53 {dimension_numbers = #tpu.dot_dimension_numbers<[1], [0], [0], [1], [0, 0, 1, 1], [], []>} : vector<16x8xf32>, vector<8x32xf32>, vector<16x32xf32> -> vector<16x32xf32>
    %84 = arith.addf %55, %83 : vector<16x32xf32>
    %c2 = arith.constant 2 : index
    %c0_54 = arith.constant 0 : index
    %c0_55 = arith.constant 0 : index
    %85 = vector.load %arg4[%c2, %c0_54, %c0_55] : memref<8x32x8xf32, #tpu.memory_space<vmem>>, vector<1x32x8xf32>
    %86 = vector.shape_cast %85 : vector<1x32x8xf32> to vector<32x8xf32>
    %cst_56 = arith.constant dense<0.000000e+00> : vector<16x8xf32>
    %87 = tpu.matmul %27, %86, %cst_56 {dimension_numbers = #tpu.dot_dimension_numbers<[1], [0], [0], [1], [0, 0, 1, 1], [], []>} : vector<16x32xf32>, vector<32x8xf32>, vector<16x8xf32> -> vector<16x8xf32>
    %c2_57 = arith.constant 2 : index
    %c0_58 = arith.constant 0 : index
    %c0_59 = arith.constant 0 : index
    %88 = vector.load %arg5[%c2_57, %c0_58, %c0_59] : memref<8x32x8xf32, #tpu.memory_space<vmem>>, vector<1x32x8xf32>
    %89 = vector.shape_cast %88 : vector<1x32x8xf32> to vector<32x8xf32>
    %cst_60 = arith.constant dense<0.000000e+00> : vector<16x8xf32>
    %90 = tpu.matmul %27, %89, %cst_60 {dimension_numbers = #tpu.dot_dimension_numbers<[1], [0], [0], [1], [0, 0, 1, 1], [], []>} : vector<16x32xf32>, vector<32x8xf32>, vector<16x8xf32> -> vector<16x8xf32>
    %c2_61 = arith.constant 2 : index
    %c0_62 = arith.constant 0 : index
    %c0_63 = arith.constant 0 : index
    %91 = vector.load %arg6[%c2_61, %c0_62, %c0_63] : memref<8x32x8xf32, #tpu.memory_space<vmem>>, vector<1x32x8xf32>
    %92 = vector.shape_cast %91 : vector<1x32x8xf32> to vector<32x8xf32>
    %cst_64 = arith.constant dense<0.000000e+00> : vector<16x8xf32>
    %93 = tpu.matmul %27, %92, %cst_64 {dimension_numbers = #tpu.dot_dimension_numbers<[1], [0], [0], [1], [0, 0, 1, 1], [], []>} : vector<16x32xf32>, vector<32x8xf32>, vector<16x8xf32> -> vector<16x8xf32>
    %94 = tpu.transpose %90, [1, 0] : vector<16x8xf32> -> vector<8x16xf32>
    %cst_65 = arith.constant dense<0.000000e+00> : vector<16x16xf32>
    %95 = tpu.matmul %87, %94, %cst_65 {dimension_numbers = #tpu.dot_dimension_numbers<[1], [0], [0], [1], [0, 0, 1, 1], [], []>} : vector<16x8xf32>, vector<8x16xf32>, vector<16x16xf32> -> vector<16x16xf32>
    %cst_66 = arith.constant 0.353553385 : f32
    %96 = vector.broadcast %cst_66 : f32 to vector<16x16xf32>
    %97 = arith.mulf %95, %96 : vector<16x16xf32>
    %98 = arith.addf %97, %1 : vector<16x16xf32>
    %cst_67 = arith.constant dense<0xFF800000> : vector<16xf32>
    %99 = vector.multi_reduction <maximumf>, %98, %cst_67 [1] : vector<16x16xf32> to vector<16xf32>
    %100 = vector.shape_cast %99 : vector<16xf32> to vector<16x1xf32>
    %101 = vector.broadcast %100 : vector<16x1xf32> to vector<16x16xf32>
    %102 = arith.subf %98, %101 : vector<16x16xf32>
    %103 = math.exp %102 : vector<16x16xf32>
    %cst_68 = arith.constant dense<0.000000e+00> : vector<16xf32>
    %104 = vector.multi_reduction <add>, %103, %cst_68 [1] : vector<16x16xf32> to vector<16xf32>
    %105 = vector.shape_cast %104 : vector<16xf32> to vector<16x1xf32>
    %106 = tpu.reciprocal %105 {approx = true} : vector<16x1xf32> -> vector<16x1xf32>
    %107 = vector.broadcast %106 : vector<16x1xf32> to vector<16x16xf32>
    %108 = arith.mulf %103, %107 : vector<16x16xf32>
    %cst_69 = arith.constant dense<0.000000e+00> : vector<16x8xf32>
    %109 = tpu.matmul %108, %93, %cst_69 {dimension_numbers = #tpu.dot_dimension_numbers<[1], [0], [0], [1], [0, 0, 1, 1], [], []>} : vector<16x16xf32>, vector<16x8xf32>, vector<16x8xf32> -> vector<16x8xf32>
    %c2_70 = arith.constant 2 : index
    %c0_71 = arith.constant 0 : index
    %c0_72 = arith.constant 0 : index
    %110 = vector.load %arg7[%c2_70, %c0_71, %c0_72] : memref<8x8x32xf32, #tpu.memory_space<vmem>>, vector<1x8x32xf32>
    %111 = vector.shape_cast %110 : vector<1x8x32xf32> to vector<8x32xf32>
    %cst_73 = arith.constant dense<0.000000e+00> : vector<16x32xf32>
    %112 = tpu.matmul %109, %111, %cst_73 {dimension_numbers = #tpu.dot_dimension_numbers<[1], [0], [0], [1], [0, 0, 1, 1], [], []>} : vector<16x8xf32>, vector<8x32xf32>, vector<16x32xf32> -> vector<16x32xf32>
    %113 = arith.addf %84, %112 : vector<16x32xf32>
    %c3 = arith.constant 3 : index
    %c0_74 = arith.constant 0 : index
    %c0_75 = arith.constant 0 : index
    %114 = vector.load %arg4[%c3, %c0_74, %c0_75] : memref<8x32x8xf32, #tpu.memory_space<vmem>>, vector<1x32x8xf32>
    %115 = vector.shape_cast %114 : vector<1x32x8xf32> to vector<32x8xf32>
    %cst_76 = arith.constant dense<0.000000e+00> : vector<16x8xf32>
    %116 = tpu.matmul %27, %115, %cst_76 {dimension_numbers = #tpu.dot_dimension_numbers<[1], [0], [0], [1], [0, 0, 1, 1], [], []>} : vector<16x32xf32>, vector<32x8xf32>, vector<16x8xf32> -> vector<16x8xf32>
    %c3_77 = arith.constant 3 : index
    %c0_78 = arith.constant 0 : index
    %c0_79 = arith.constant 0 : index
    %117 = vector.load %arg5[%c3_77, %c0_78, %c0_79] : memref<8x32x8xf32, #tpu.memory_space<vmem>>, vector<1x32x8xf32>
    %118 = vector.shape_cast %117 : vector<1x32x8xf32> to vector<32x8xf32>
    %cst_80 = arith.constant dense<0.000000e+00> : vector<16x8xf32>
    %119 = tpu.matmul %27, %118, %cst_80 {dimension_numbers = #tpu.dot_dimension_numbers<[1], [0], [0], [1], [0, 0, 1, 1], [], []>} : vector<16x32xf32>, vector<32x8xf32>, vector<16x8xf32> -> vector<16x8xf32>
    %c3_81 = arith.constant 3 : index
    %c0_82 = arith.constant 0 : index
    %c0_83 = arith.constant 0 : index
    %120 = vector.load %arg6[%c3_81, %c0_82, %c0_83] : memref<8x32x8xf32, #tpu.memory_space<vmem>>, vector<1x32x8xf32>
    %121 = vector.shape_cast %120 : vector<1x32x8xf32> to vector<32x8xf32>
    %cst_84 = arith.constant dense<0.000000e+00> : vector<16x8xf32>
    %122 = tpu.matmul %27, %121, %cst_84 {dimension_numbers = #tpu.dot_dimension_numbers<[1], [0], [0], [1], [0, 0, 1, 1], [], []>} : vector<16x32xf32>, vector<32x8xf32>, vector<16x8xf32> -> vector<16x8xf32>
    %123 = tpu.transpose %119, [1, 0] : vector<16x8xf32> -> vector<8x16xf32>
    %cst_85 = arith.constant dense<0.000000e+00> : vector<16x16xf32>
    %124 = tpu.matmul %116, %123, %cst_85 {dimension_numbers = #tpu.dot_dimension_numbers<[1], [0], [0], [1], [0, 0, 1, 1], [], []>} : vector<16x8xf32>, vector<8x16xf32>, vector<16x16xf32> -> vector<16x16xf32>
    %cst_86 = arith.constant 0.353553385 : f32
    %125 = vector.broadcast %cst_86 : f32 to vector<16x16xf32>
    %126 = arith.mulf %124, %125 : vector<16x16xf32>
    %127 = arith.addf %126, %1 : vector<16x16xf32>
    %cst_87 = arith.constant dense<0xFF800000> : vector<16xf32>
    %128 = vector.multi_reduction <maximumf>, %127, %cst_87 [1] : vector<16x16xf32> to vector<16xf32>
    %129 = vector.shape_cast %128 : vector<16xf32> to vector<16x1xf32>
    %130 = vector.broadcast %129 : vector<16x1xf32> to vector<16x16xf32>
    %131 = arith.subf %127, %130 : vector<16x16xf32>
    %132 = math.exp %131 : vector<16x16xf32>
    %cst_88 = arith.constant dense<0.000000e+00> : vector<16xf32>
    %133 = vector.multi_reduction <add>, %132, %cst_88 [1] : vector<16x16xf32> to vector<16xf32>
    %134 = vector.shape_cast %133 : vector<16xf32> to vector<16x1xf32>
    %135 = tpu.reciprocal %134 {approx = true} : vector<16x1xf32> -> vector<16x1xf32>
    %136 = vector.broadcast %135 : vector<16x1xf32> to vector<16x16xf32>
    %137 = arith.mulf %132, %136 : vector<16x16xf32>
    %cst_89 = arith.constant dense<0.000000e+00> : vector<16x8xf32>
    %138 = tpu.matmul %137, %122, %cst_89 {dimension_numbers = #tpu.dot_dimension_numbers<[1], [0], [0], [1], [0, 0, 1, 1], [], []>} : vector<16x16xf32>, vector<16x8xf32>, vector<16x8xf32> -> vector<16x8xf32>
    %c3_90 = arith.constant 3 : index
    %c0_91 = arith.constant 0 : index
    %c0_92 = arith.constant 0 : index
    %139 = vector.load %arg7[%c3_90, %c0_91, %c0_92] : memref<8x8x32xf32, #tpu.memory_space<vmem>>, vector<1x8x32xf32>
    %140 = vector.shape_cast %139 : vector<1x8x32xf32> to vector<8x32xf32>
    %cst_93 = arith.constant dense<0.000000e+00> : vector<16x32xf32>
    %141 = tpu.matmul %138, %140, %cst_93 {dimension_numbers = #tpu.dot_dimension_numbers<[1], [0], [0], [1], [0, 0, 1, 1], [], []>} : vector<16x8xf32>, vector<8x32xf32>, vector<16x32xf32> -> vector<16x32xf32>
    %142 = arith.addf %113, %141 : vector<16x32xf32>
    %143 = arith.addf %0, %142 : vector<16x32xf32>
    %c0_94 = arith.constant 0 : index
    %c0_95 = arith.constant 0 : index
    %c0_96 = arith.constant 0 : index
    %144 = vector.load %arg8[%c0_94, %c0_95, %c0_96] : memref<2x1x32xf32, #tpu.memory_space<vmem>>, vector<1x1x32xf32>
    %145 = vector.shape_cast %144 : vector<1x1x32xf32> to vector<1x32xf32>
    %146 = vector.broadcast %145 : vector<1x32xf32> to vector<16x32xf32>
    %147 = arith.addf %143, %146 : vector<16x32xf32>
    %c0_97 = arith.constant 0 : index
    %c0_98 = arith.constant 0 : index
    %c0_99 = arith.constant 0 : index
    %148 = vector.load %arg9[%c0_97, %c0_98, %c0_99] : memref<2x1x32xf32, #tpu.memory_space<vmem>>, vector<1x1x32xf32>
    %149 = vector.shape_cast %148 : vector<1x1x32xf32> to vector<1x32xf32>
    %c0_100 = arith.constant 0 : index
    %c0_101 = arith.constant 0 : index
    %c0_102 = arith.constant 0 : index
    %150 = vector.load %arg10[%c0_100, %c0_101, %c0_102] : memref<2x1x32xf32, #tpu.memory_space<vmem>>, vector<1x1x32xf32>
    %151 = vector.shape_cast %150 : vector<1x1x32xf32> to vector<1x32xf32>
    %cst_103 = arith.constant dense<0.000000e+00> : vector<16xf32>
    %152 = vector.multi_reduction <add>, %147, %cst_103 [1] : vector<16x32xf32> to vector<16xf32>
    %153 = vector.shape_cast %152 : vector<16xf32> to vector<16x1xf32>
    %cst_104 = arith.constant 3.200000e+01 : f32
    %154 = vector.broadcast %cst_104 : f32 to vector<16x1xf32>
    %155 = arith.divf %153, %154 : vector<16x1xf32>
    %156 = vector.broadcast %155 : vector<16x1xf32> to vector<16x32xf32>
    %157 = arith.subf %147, %156 : vector<16x32xf32>
    %158 = arith.mulf %157, %157 : vector<16x32xf32>
    %cst_105 = arith.constant dense<0.000000e+00> : vector<16xf32>
    %159 = vector.multi_reduction <add>, %158, %cst_105 [1] : vector<16x32xf32> to vector<16xf32>
    %160 = vector.shape_cast %159 : vector<16xf32> to vector<16x1xf32>
    %cst_106 = arith.constant 3.200000e+01 : f32
    %161 = vector.broadcast %cst_106 : f32 to vector<16x1xf32>
    %162 = arith.divf %160, %161 : vector<16x1xf32>
    %163 = vector.broadcast %155 : vector<16x1xf32> to vector<16x32xf32>
    %164 = arith.subf %147, %163 : vector<16x32xf32>
    %cst_107 = arith.constant 9.99999974E-6 : f32
    %165 = vector.broadcast %cst_107 : f32 to vector<16x1xf32>
    %166 = arith.addf %162, %165 : vector<16x1xf32>
    %167 = math.rsqrt %166 : vector<16x1xf32>
    %168 = vector.broadcast %167 : vector<16x1xf32> to vector<16x32xf32>
    %169 = arith.mulf %164, %168 : vector<16x32xf32>
    %170 = vector.broadcast %149 : vector<1x32xf32> to vector<16x32xf32>
    %171 = arith.mulf %169, %170 : vector<16x32xf32>
    %172 = vector.broadcast %151 : vector<1x32xf32> to vector<16x32xf32>
    %173 = arith.addf %171, %172 : vector<16x32xf32>
    %c0_108 = arith.constant 0 : index
    %c0_109 = arith.constant 0 : index
    %c0_110 = arith.constant 0 : index
    %174 = vector.load %arg11[%c0_108, %c0_109, %c0_110] : memref<2x32x128xf32, #tpu.memory_space<vmem>>, vector<1x32x128xf32>
    %175 = vector.shape_cast %174 : vector<1x32x128xf32> to vector<32x128xf32>
    %cst_111 = arith.constant dense<0.000000e+00> : vector<16x128xf32>
    %176 = tpu.matmul %173, %175, %cst_111 {dimension_numbers = #tpu.dot_dimension_numbers<[1], [0], [0], [1], [0, 0, 1, 1], [], []>} : vector<16x32xf32>, vector<32x128xf32>, vector<16x128xf32> -> vector<16x128xf32>
    %c0_112 = arith.constant 0 : index
    %c0_113 = arith.constant 0 : index
    %c0_114 = arith.constant 0 : index
    %177 = vector.load %arg12[%c0_112, %c0_113, %c0_114] : memref<2x1x128xf32, #tpu.memory_space<vmem>>, vector<1x1x128xf32>
    %178 = vector.shape_cast %177 : vector<1x1x128xf32> to vector<1x128xf32>
    %179 = vector.broadcast %178 : vector<1x128xf32> to vector<16x128xf32>
    %180 = arith.addf %176, %179 : vector<16x128xf32>
    %cst_115 = arith.constant 0.000000e+00 : f32
    %181 = vector.broadcast %cst_115 : f32 to vector<16x128xf32>
    %182 = arith.maximumf %180, %181 : vector<16x128xf32>
    %c0_116 = arith.constant 0 : index
    %c0_117 = arith.constant 0 : index
    %c0_118 = arith.constant 0 : index
    %183 = vector.load %arg13[%c0_116, %c0_117, %c0_118] : memref<2x128x32xf32, #tpu.memory_space<vmem>>, vector<1x128x32xf32>
    %184 = vector.shape_cast %183 : vector<1x128x32xf32> to vector<128x32xf32>
    %cst_119 = arith.constant dense<0.000000e+00> : vector<16x32xf32>
    %185 = tpu.matmul %182, %184, %cst_119 {dimension_numbers = #tpu.dot_dimension_numbers<[1], [0], [0], [1], [0, 0, 1, 1], [], []>} : vector<16x128xf32>, vector<128x32xf32>, vector<16x32xf32> -> vector<16x32xf32>
    %c0_120 = arith.constant 0 : index
    %c0_121 = arith.constant 0 : index
    %c0_122 = arith.constant 0 : index
    %186 = vector.load %arg14[%c0_120, %c0_121, %c0_122] : memref<2x1x32xf32, #tpu.memory_space<vmem>>, vector<1x1x32xf32>
    %187 = vector.shape_cast %186 : vector<1x1x32xf32> to vector<1x32xf32>
    %188 = vector.broadcast %187 : vector<1x32xf32> to vector<16x32xf32>
    %189 = arith.addf %185, %188 : vector<16x32xf32>
    %190 = arith.addf %147, %189 : vector<16x32xf32>
    %c1_123 = arith.constant 1 : index
    %c0_124 = arith.constant 0 : index
    %c0_125 = arith.constant 0 : index
    %191 = vector.load %arg2[%c1_123, %c0_124, %c0_125] : memref<2x1x32xf32, #tpu.memory_space<vmem>>, vector<1x1x32xf32>
    %192 = vector.shape_cast %191 : vector<1x1x32xf32> to vector<1x32xf32>
    %c1_126 = arith.constant 1 : index
    %c0_127 = arith.constant 0 : index
    %c0_128 = arith.constant 0 : index
    %193 = vector.load %arg3[%c1_126, %c0_127, %c0_128] : memref<2x1x32xf32, #tpu.memory_space<vmem>>, vector<1x1x32xf32>
    %194 = vector.shape_cast %193 : vector<1x1x32xf32> to vector<1x32xf32>
    %cst_129 = arith.constant dense<0.000000e+00> : vector<16xf32>
    %195 = vector.multi_reduction <add>, %190, %cst_129 [1] : vector<16x32xf32> to vector<16xf32>
    %196 = vector.shape_cast %195 : vector<16xf32> to vector<16x1xf32>
    %cst_130 = arith.constant 3.200000e+01 : f32
    %197 = vector.broadcast %cst_130 : f32 to vector<16x1xf32>
    %198 = arith.divf %196, %197 : vector<16x1xf32>
    %199 = vector.broadcast %198 : vector<16x1xf32> to vector<16x32xf32>
    %200 = arith.subf %190, %199 : vector<16x32xf32>
    %201 = arith.mulf %200, %200 : vector<16x32xf32>
    %cst_131 = arith.constant dense<0.000000e+00> : vector<16xf32>
    %202 = vector.multi_reduction <add>, %201, %cst_131 [1] : vector<16x32xf32> to vector<16xf32>
    %203 = vector.shape_cast %202 : vector<16xf32> to vector<16x1xf32>
    %cst_132 = arith.constant 3.200000e+01 : f32
    %204 = vector.broadcast %cst_132 : f32 to vector<16x1xf32>
    %205 = arith.divf %203, %204 : vector<16x1xf32>
    %206 = vector.broadcast %198 : vector<16x1xf32> to vector<16x32xf32>
    %207 = arith.subf %190, %206 : vector<16x32xf32>
    %cst_133 = arith.constant 9.99999974E-6 : f32
    %208 = vector.broadcast %cst_133 : f32 to vector<16x1xf32>
    %209 = arith.addf %205, %208 : vector<16x1xf32>
    %210 = math.rsqrt %209 : vector<16x1xf32>
    %211 = vector.broadcast %210 : vector<16x1xf32> to vector<16x32xf32>
    %212 = arith.mulf %207, %211 : vector<16x32xf32>
    %213 = vector.broadcast %192 : vector<1x32xf32> to vector<16x32xf32>
    %214 = arith.mulf %212, %213 : vector<16x32xf32>
    %215 = vector.broadcast %194 : vector<1x32xf32> to vector<16x32xf32>
    %216 = arith.addf %214, %215 : vector<16x32xf32>
    %c4 = arith.constant 4 : index
    %c0_134 = arith.constant 0 : index
    %c0_135 = arith.constant 0 : index
    %217 = vector.load %arg4[%c4, %c0_134, %c0_135] : memref<8x32x8xf32, #tpu.memory_space<vmem>>, vector<1x32x8xf32>
    %218 = vector.shape_cast %217 : vector<1x32x8xf32> to vector<32x8xf32>
    %cst_136 = arith.constant dense<0.000000e+00> : vector<16x8xf32>
    %219 = tpu.matmul %216, %218, %cst_136 {dimension_numbers = #tpu.dot_dimension_numbers<[1], [0], [0], [1], [0, 0, 1, 1], [], []>} : vector<16x32xf32>, vector<32x8xf32>, vector<16x8xf32> -> vector<16x8xf32>
    %c4_137 = arith.constant 4 : index
    %c0_138 = arith.constant 0 : index
    %c0_139 = arith.constant 0 : index
    %220 = vector.load %arg5[%c4_137, %c0_138, %c0_139] : memref<8x32x8xf32, #tpu.memory_space<vmem>>, vector<1x32x8xf32>
    %221 = vector.shape_cast %220 : vector<1x32x8xf32> to vector<32x8xf32>
    %cst_140 = arith.constant dense<0.000000e+00> : vector<16x8xf32>
    %222 = tpu.matmul %216, %221, %cst_140 {dimension_numbers = #tpu.dot_dimension_numbers<[1], [0], [0], [1], [0, 0, 1, 1], [], []>} : vector<16x32xf32>, vector<32x8xf32>, vector<16x8xf32> -> vector<16x8xf32>
    %c4_141 = arith.constant 4 : index
    %c0_142 = arith.constant 0 : index
    %c0_143 = arith.constant 0 : index
    %223 = vector.load %arg6[%c4_141, %c0_142, %c0_143] : memref<8x32x8xf32, #tpu.memory_space<vmem>>, vector<1x32x8xf32>
    %224 = vector.shape_cast %223 : vector<1x32x8xf32> to vector<32x8xf32>
    %cst_144 = arith.constant dense<0.000000e+00> : vector<16x8xf32>
    %225 = tpu.matmul %216, %224, %cst_144 {dimension_numbers = #tpu.dot_dimension_numbers<[1], [0], [0], [1], [0, 0, 1, 1], [], []>} : vector<16x32xf32>, vector<32x8xf32>, vector<16x8xf32> -> vector<16x8xf32>
    %226 = tpu.transpose %222, [1, 0] : vector<16x8xf32> -> vector<8x16xf32>
    %cst_145 = arith.constant dense<0.000000e+00> : vector<16x16xf32>
    %227 = tpu.matmul %219, %226, %cst_145 {dimension_numbers = #tpu.dot_dimension_numbers<[1], [0], [0], [1], [0, 0, 1, 1], [], []>} : vector<16x8xf32>, vector<8x16xf32>, vector<16x16xf32> -> vector<16x16xf32>
    %cst_146 = arith.constant 0.353553385 : f32
    %228 = vector.broadcast %cst_146 : f32 to vector<16x16xf32>
    %229 = arith.mulf %227, %228 : vector<16x16xf32>
    %230 = arith.addf %229, %1 : vector<16x16xf32>
    %cst_147 = arith.constant dense<0xFF800000> : vector<16xf32>
    %231 = vector.multi_reduction <maximumf>, %230, %cst_147 [1] : vector<16x16xf32> to vector<16xf32>
    %232 = vector.shape_cast %231 : vector<16xf32> to vector<16x1xf32>
    %233 = vector.broadcast %232 : vector<16x1xf32> to vector<16x16xf32>
    %234 = arith.subf %230, %233 : vector<16x16xf32>
    %235 = math.exp %234 : vector<16x16xf32>
    %cst_148 = arith.constant dense<0.000000e+00> : vector<16xf32>
    %236 = vector.multi_reduction <add>, %235, %cst_148 [1] : vector<16x16xf32> to vector<16xf32>
    %237 = vector.shape_cast %236 : vector<16xf32> to vector<16x1xf32>
    %238 = tpu.reciprocal %237 {approx = true} : vector<16x1xf32> -> vector<16x1xf32>
    %239 = vector.broadcast %238 : vector<16x1xf32> to vector<16x16xf32>
    %240 = arith.mulf %235, %239 : vector<16x16xf32>
    %cst_149 = arith.constant dense<0.000000e+00> : vector<16x8xf32>
    %241 = tpu.matmul %240, %225, %cst_149 {dimension_numbers = #tpu.dot_dimension_numbers<[1], [0], [0], [1], [0, 0, 1, 1], [], []>} : vector<16x16xf32>, vector<16x8xf32>, vector<16x8xf32> -> vector<16x8xf32>
    %c4_150 = arith.constant 4 : index
    %c0_151 = arith.constant 0 : index
    %c0_152 = arith.constant 0 : index
    %242 = vector.load %arg7[%c4_150, %c0_151, %c0_152] : memref<8x8x32xf32, #tpu.memory_space<vmem>>, vector<1x8x32xf32>
    %243 = vector.shape_cast %242 : vector<1x8x32xf32> to vector<8x32xf32>
    %cst_153 = arith.constant dense<0.000000e+00> : vector<16x32xf32>
    %244 = tpu.matmul %241, %243, %cst_153 {dimension_numbers = #tpu.dot_dimension_numbers<[1], [0], [0], [1], [0, 0, 1, 1], [], []>} : vector<16x8xf32>, vector<8x32xf32>, vector<16x32xf32> -> vector<16x32xf32>
    %c5 = arith.constant 5 : index
    %c0_154 = arith.constant 0 : index
    %c0_155 = arith.constant 0 : index
    %245 = vector.load %arg4[%c5, %c0_154, %c0_155] : memref<8x32x8xf32, #tpu.memory_space<vmem>>, vector<1x32x8xf32>
    %246 = vector.shape_cast %245 : vector<1x32x8xf32> to vector<32x8xf32>
    %cst_156 = arith.constant dense<0.000000e+00> : vector<16x8xf32>
    %247 = tpu.matmul %216, %246, %cst_156 {dimension_numbers = #tpu.dot_dimension_numbers<[1], [0], [0], [1], [0, 0, 1, 1], [], []>} : vector<16x32xf32>, vector<32x8xf32>, vector<16x8xf32> -> vector<16x8xf32>
    %c5_157 = arith.constant 5 : index
    %c0_158 = arith.constant 0 : index
    %c0_159 = arith.constant 0 : index
    %248 = vector.load %arg5[%c5_157, %c0_158, %c0_159] : memref<8x32x8xf32, #tpu.memory_space<vmem>>, vector<1x32x8xf32>
    %249 = vector.shape_cast %248 : vector<1x32x8xf32> to vector<32x8xf32>
    %cst_160 = arith.constant dense<0.000000e+00> : vector<16x8xf32>
    %250 = tpu.matmul %216, %249, %cst_160 {dimension_numbers = #tpu.dot_dimension_numbers<[1], [0], [0], [1], [0, 0, 1, 1], [], []>} : vector<16x32xf32>, vector<32x8xf32>, vector<16x8xf32> -> vector<16x8xf32>
    %c5_161 = arith.constant 5 : index
    %c0_162 = arith.constant 0 : index
    %c0_163 = arith.constant 0 : index
    %251 = vector.load %arg6[%c5_161, %c0_162, %c0_163] : memref<8x32x8xf32, #tpu.memory_space<vmem>>, vector<1x32x8xf32>
    %252 = vector.shape_cast %251 : vector<1x32x8xf32> to vector<32x8xf32>
    %cst_164 = arith.constant dense<0.000000e+00> : vector<16x8xf32>
    %253 = tpu.matmul %216, %252, %cst_164 {dimension_numbers = #tpu.dot_dimension_numbers<[1], [0], [0], [1], [0, 0, 1, 1], [], []>} : vector<16x32xf32>, vector<32x8xf32>, vector<16x8xf32> -> vector<16x8xf32>
    %254 = tpu.transpose %250, [1, 0] : vector<16x8xf32> -> vector<8x16xf32>
    %cst_165 = arith.constant dense<0.000000e+00> : vector<16x16xf32>
    %255 = tpu.matmul %247, %254, %cst_165 {dimension_numbers = #tpu.dot_dimension_numbers<[1], [0], [0], [1], [0, 0, 1, 1], [], []>} : vector<16x8xf32>, vector<8x16xf32>, vector<16x16xf32> -> vector<16x16xf32>
    %cst_166 = arith.constant 0.353553385 : f32
    %256 = vector.broadcast %cst_166 : f32 to vector<16x16xf32>
    %257 = arith.mulf %255, %256 : vector<16x16xf32>
    %258 = arith.addf %257, %1 : vector<16x16xf32>
    %cst_167 = arith.constant dense<0xFF800000> : vector<16xf32>
    %259 = vector.multi_reduction <maximumf>, %258, %cst_167 [1] : vector<16x16xf32> to vector<16xf32>
    %260 = vector.shape_cast %259 : vector<16xf32> to vector<16x1xf32>
    %261 = vector.broadcast %260 : vector<16x1xf32> to vector<16x16xf32>
    %262 = arith.subf %258, %261 : vector<16x16xf32>
    %263 = math.exp %262 : vector<16x16xf32>
    %cst_168 = arith.constant dense<0.000000e+00> : vector<16xf32>
    %264 = vector.multi_reduction <add>, %263, %cst_168 [1] : vector<16x16xf32> to vector<16xf32>
    %265 = vector.shape_cast %264 : vector<16xf32> to vector<16x1xf32>
    %266 = tpu.reciprocal %265 {approx = true} : vector<16x1xf32> -> vector<16x1xf32>
    %267 = vector.broadcast %266 : vector<16x1xf32> to vector<16x16xf32>
    %268 = arith.mulf %263, %267 : vector<16x16xf32>
    %cst_169 = arith.constant dense<0.000000e+00> : vector<16x8xf32>
    %269 = tpu.matmul %268, %253, %cst_169 {dimension_numbers = #tpu.dot_dimension_numbers<[1], [0], [0], [1], [0, 0, 1, 1], [], []>} : vector<16x16xf32>, vector<16x8xf32>, vector<16x8xf32> -> vector<16x8xf32>
    %c5_170 = arith.constant 5 : index
    %c0_171 = arith.constant 0 : index
    %c0_172 = arith.constant 0 : index
    %270 = vector.load %arg7[%c5_170, %c0_171, %c0_172] : memref<8x8x32xf32, #tpu.memory_space<vmem>>, vector<1x8x32xf32>
    %271 = vector.shape_cast %270 : vector<1x8x32xf32> to vector<8x32xf32>
    %cst_173 = arith.constant dense<0.000000e+00> : vector<16x32xf32>
    %272 = tpu.matmul %269, %271, %cst_173 {dimension_numbers = #tpu.dot_dimension_numbers<[1], [0], [0], [1], [0, 0, 1, 1], [], []>} : vector<16x8xf32>, vector<8x32xf32>, vector<16x32xf32> -> vector<16x32xf32>
    %273 = arith.addf %244, %272 : vector<16x32xf32>
    %c6 = arith.constant 6 : index
    %c0_174 = arith.constant 0 : index
    %c0_175 = arith.constant 0 : index
    %274 = vector.load %arg4[%c6, %c0_174, %c0_175] : memref<8x32x8xf32, #tpu.memory_space<vmem>>, vector<1x32x8xf32>
    %275 = vector.shape_cast %274 : vector<1x32x8xf32> to vector<32x8xf32>
    %cst_176 = arith.constant dense<0.000000e+00> : vector<16x8xf32>
    %276 = tpu.matmul %216, %275, %cst_176 {dimension_numbers = #tpu.dot_dimension_numbers<[1], [0], [0], [1], [0, 0, 1, 1], [], []>} : vector<16x32xf32>, vector<32x8xf32>, vector<16x8xf32> -> vector<16x8xf32>
    %c6_177 = arith.constant 6 : index
    %c0_178 = arith.constant 0 : index
    %c0_179 = arith.constant 0 : index
    %277 = vector.load %arg5[%c6_177, %c0_178, %c0_179] : memref<8x32x8xf32, #tpu.memory_space<vmem>>, vector<1x32x8xf32>
    %278 = vector.shape_cast %277 : vector<1x32x8xf32> to vector<32x8xf32>
    %cst_180 = arith.constant dense<0.000000e+00> : vector<16x8xf32>
    %279 = tpu.matmul %216, %278, %cst_180 {dimension_numbers = #tpu.dot_dimension_numbers<[1], [0], [0], [1], [0, 0, 1, 1], [], []>} : vector<16x32xf32>, vector<32x8xf32>, vector<16x8xf32> -> vector<16x8xf32>
    %c6_181 = arith.constant 6 : index
    %c0_182 = arith.constant 0 : index
    %c0_183 = arith.constant 0 : index
    %280 = vector.load %arg6[%c6_181, %c0_182, %c0_183] : memref<8x32x8xf32, #tpu.memory_space<vmem>>, vector<1x32x8xf32>
    %281 = vector.shape_cast %280 : vector<1x32x8xf32> to vector<32x8xf32>
    %cst_184 = arith.constant dense<0.000000e+00> : vector<16x8xf32>
    %282 = tpu.matmul %216, %281, %cst_184 {dimension_numbers = #tpu.dot_dimension_numbers<[1], [0], [0], [1], [0, 0, 1, 1], [], []>} : vector<16x32xf32>, vector<32x8xf32>, vector<16x8xf32> -> vector<16x8xf32>
    %283 = tpu.transpose %279, [1, 0] : vector<16x8xf32> -> vector<8x16xf32>
    %cst_185 = arith.constant dense<0.000000e+00> : vector<16x16xf32>
    %284 = tpu.matmul %276, %283, %cst_185 {dimension_numbers = #tpu.dot_dimension_numbers<[1], [0], [0], [1], [0, 0, 1, 1], [], []>} : vector<16x8xf32>, vector<8x16xf32>, vector<16x16xf32> -> vector<16x16xf32>
    %cst_186 = arith.constant 0.353553385 : f32
    %285 = vector.broadcast %cst_186 : f32 to vector<16x16xf32>
    %286 = arith.mulf %284, %285 : vector<16x16xf32>
    %287 = arith.addf %286, %1 : vector<16x16xf32>
    %cst_187 = arith.constant dense<0xFF800000> : vector<16xf32>
    %288 = vector.multi_reduction <maximumf>, %287, %cst_187 [1] : vector<16x16xf32> to vector<16xf32>
    %289 = vector.shape_cast %288 : vector<16xf32> to vector<16x1xf32>
    %290 = vector.broadcast %289 : vector<16x1xf32> to vector<16x16xf32>
    %291 = arith.subf %287, %290 : vector<16x16xf32>
    %292 = math.exp %291 : vector<16x16xf32>
    %cst_188 = arith.constant dense<0.000000e+00> : vector<16xf32>
    %293 = vector.multi_reduction <add>, %292, %cst_188 [1] : vector<16x16xf32> to vector<16xf32>
    %294 = vector.shape_cast %293 : vector<16xf32> to vector<16x1xf32>
    %295 = tpu.reciprocal %294 {approx = true} : vector<16x1xf32> -> vector<16x1xf32>
    %296 = vector.broadcast %295 : vector<16x1xf32> to vector<16x16xf32>
    %297 = arith.mulf %292, %296 : vector<16x16xf32>
    %cst_189 = arith.constant dense<0.000000e+00> : vector<16x8xf32>
    %298 = tpu.matmul %297, %282, %cst_189 {dimension_numbers = #tpu.dot_dimension_numbers<[1], [0], [0], [1], [0, 0, 1, 1], [], []>} : vector<16x16xf32>, vector<16x8xf32>, vector<16x8xf32> -> vector<16x8xf32>
    %c6_190 = arith.constant 6 : index
    %c0_191 = arith.constant 0 : index
    %c0_192 = arith.constant 0 : index
    %299 = vector.load %arg7[%c6_190, %c0_191, %c0_192] : memref<8x8x32xf32, #tpu.memory_space<vmem>>, vector<1x8x32xf32>
    %300 = vector.shape_cast %299 : vector<1x8x32xf32> to vector<8x32xf32>
    %cst_193 = arith.constant dense<0.000000e+00> : vector<16x32xf32>
    %301 = tpu.matmul %298, %300, %cst_193 {dimension_numbers = #tpu.dot_dimension_numbers<[1], [0], [0], [1], [0, 0, 1, 1], [], []>} : vector<16x8xf32>, vector<8x32xf32>, vector<16x32xf32> -> vector<16x32xf32>
    %302 = arith.addf %273, %301 : vector<16x32xf32>
    %c7 = arith.constant 7 : index
    %c0_194 = arith.constant 0 : index
    %c0_195 = arith.constant 0 : index
    %303 = vector.load %arg4[%c7, %c0_194, %c0_195] : memref<8x32x8xf32, #tpu.memory_space<vmem>>, vector<1x32x8xf32>
    %304 = vector.shape_cast %303 : vector<1x32x8xf32> to vector<32x8xf32>
    %cst_196 = arith.constant dense<0.000000e+00> : vector<16x8xf32>
    %305 = tpu.matmul %216, %304, %cst_196 {dimension_numbers = #tpu.dot_dimension_numbers<[1], [0], [0], [1], [0, 0, 1, 1], [], []>} : vector<16x32xf32>, vector<32x8xf32>, vector<16x8xf32> -> vector<16x8xf32>
    %c7_197 = arith.constant 7 : index
    %c0_198 = arith.constant 0 : index
    %c0_199 = arith.constant 0 : index
    %306 = vector.load %arg5[%c7_197, %c0_198, %c0_199] : memref<8x32x8xf32, #tpu.memory_space<vmem>>, vector<1x32x8xf32>
    %307 = vector.shape_cast %306 : vector<1x32x8xf32> to vector<32x8xf32>
    %cst_200 = arith.constant dense<0.000000e+00> : vector<16x8xf32>
    %308 = tpu.matmul %216, %307, %cst_200 {dimension_numbers = #tpu.dot_dimension_numbers<[1], [0], [0], [1], [0, 0, 1, 1], [], []>} : vector<16x32xf32>, vector<32x8xf32>, vector<16x8xf32> -> vector<16x8xf32>
    %c7_201 = arith.constant 7 : index
    %c0_202 = arith.constant 0 : index
    %c0_203 = arith.constant 0 : index
    %309 = vector.load %arg6[%c7_201, %c0_202, %c0_203] : memref<8x32x8xf32, #tpu.memory_space<vmem>>, vector<1x32x8xf32>
    %310 = vector.shape_cast %309 : vector<1x32x8xf32> to vector<32x8xf32>
    %cst_204 = arith.constant dense<0.000000e+00> : vector<16x8xf32>
    %311 = tpu.matmul %216, %310, %cst_204 {dimension_numbers = #tpu.dot_dimension_numbers<[1], [0], [0], [1], [0, 0, 1, 1], [], []>} : vector<16x32xf32>, vector<32x8xf32>, vector<16x8xf32> -> vector<16x8xf32>
    %312 = tpu.transpose %308, [1, 0] : vector<16x8xf32> -> vector<8x16xf32>
    %cst_205 = arith.constant dense<0.000000e+00> : vector<16x16xf32>
    %313 = tpu.matmul %305, %312, %cst_205 {dimension_numbers = #tpu.dot_dimension_numbers<[1], [0], [0], [1], [0, 0, 1, 1], [], []>} : vector<16x8xf32>, vector<8x16xf32>, vector<16x16xf32> -> vector<16x16xf32>
    %cst_206 = arith.constant 0.353553385 : f32
    %314 = vector.broadcast %cst_206 : f32 to vector<16x16xf32>
    %315 = arith.mulf %313, %314 : vector<16x16xf32>
    %316 = arith.addf %315, %1 : vector<16x16xf32>
    %cst_207 = arith.constant dense<0xFF800000> : vector<16xf32>
    %317 = vector.multi_reduction <maximumf>, %316, %cst_207 [1] : vector<16x16xf32> to vector<16xf32>
    %318 = vector.shape_cast %317 : vector<16xf32> to vector<16x1xf32>
    %319 = vector.broadcast %318 : vector<16x1xf32> to vector<16x16xf32>
    %320 = arith.subf %316, %319 : vector<16x16xf32>
    %321 = math.exp %320 : vector<16x16xf32>
    %cst_208 = arith.constant dense<0.000000e+00> : vector<16xf32>
    %322 = vector.multi_reduction <add>, %321, %cst_208 [1] : vector<16x16xf32> to vector<16xf32>
    %323 = vector.shape_cast %322 : vector<16xf32> to vector<16x1xf32>
    %324 = tpu.reciprocal %323 {approx = true} : vector<16x1xf32> -> vector<16x1xf32>
    %325 = vector.broadcast %324 : vector<16x1xf32> to vector<16x16xf32>
    %326 = arith.mulf %321, %325 : vector<16x16xf32>
    %cst_209 = arith.constant dense<0.000000e+00> : vector<16x8xf32>
    %327 = tpu.matmul %326, %311, %cst_209 {dimension_numbers = #tpu.dot_dimension_numbers<[1], [0], [0], [1], [0, 0, 1, 1], [], []>} : vector<16x16xf32>, vector<16x8xf32>, vector<16x8xf32> -> vector<16x8xf32>
    %c7_210 = arith.constant 7 : index
    %c0_211 = arith.constant 0 : index
    %c0_212 = arith.constant 0 : index
    %328 = vector.load %arg7[%c7_210, %c0_211, %c0_212] : memref<8x8x32xf32, #tpu.memory_space<vmem>>, vector<1x8x32xf32>
    %329 = vector.shape_cast %328 : vector<1x8x32xf32> to vector<8x32xf32>
    %cst_213 = arith.constant dense<0.000000e+00> : vector<16x32xf32>
    %330 = tpu.matmul %327, %329, %cst_213 {dimension_numbers = #tpu.dot_dimension_numbers<[1], [0], [0], [1], [0, 0, 1, 1], [], []>} : vector<16x8xf32>, vector<8x32xf32>, vector<16x32xf32> -> vector<16x32xf32>
    %331 = arith.addf %302, %330 : vector<16x32xf32>
    %332 = arith.addf %190, %331 : vector<16x32xf32>
    %c1_214 = arith.constant 1 : index
    %c0_215 = arith.constant 0 : index
    %c0_216 = arith.constant 0 : index
    %333 = vector.load %arg8[%c1_214, %c0_215, %c0_216] : memref<2x1x32xf32, #tpu.memory_space<vmem>>, vector<1x1x32xf32>
    %334 = vector.shape_cast %333 : vector<1x1x32xf32> to vector<1x32xf32>
    %335 = vector.broadcast %334 : vector<1x32xf32> to vector<16x32xf32>
    %336 = arith.addf %332, %335 : vector<16x32xf32>
    %c1_217 = arith.constant 1 : index
    %c0_218 = arith.constant 0 : index
    %c0_219 = arith.constant 0 : index
    %337 = vector.load %arg9[%c1_217, %c0_218, %c0_219] : memref<2x1x32xf32, #tpu.memory_space<vmem>>, vector<1x1x32xf32>
    %338 = vector.shape_cast %337 : vector<1x1x32xf32> to vector<1x32xf32>
    %c1_220 = arith.constant 1 : index
    %c0_221 = arith.constant 0 : index
    %c0_222 = arith.constant 0 : index
    %339 = vector.load %arg10[%c1_220, %c0_221, %c0_222] : memref<2x1x32xf32, #tpu.memory_space<vmem>>, vector<1x1x32xf32>
    %340 = vector.shape_cast %339 : vector<1x1x32xf32> to vector<1x32xf32>
    %cst_223 = arith.constant dense<0.000000e+00> : vector<16xf32>
    %341 = vector.multi_reduction <add>, %336, %cst_223 [1] : vector<16x32xf32> to vector<16xf32>
    %342 = vector.shape_cast %341 : vector<16xf32> to vector<16x1xf32>
    %cst_224 = arith.constant 3.200000e+01 : f32
    %343 = vector.broadcast %cst_224 : f32 to vector<16x1xf32>
    %344 = arith.divf %342, %343 : vector<16x1xf32>
    %345 = vector.broadcast %344 : vector<16x1xf32> to vector<16x32xf32>
    %346 = arith.subf %336, %345 : vector<16x32xf32>
    %347 = arith.mulf %346, %346 : vector<16x32xf32>
    %cst_225 = arith.constant dense<0.000000e+00> : vector<16xf32>
    %348 = vector.multi_reduction <add>, %347, %cst_225 [1] : vector<16x32xf32> to vector<16xf32>
    %349 = vector.shape_cast %348 : vector<16xf32> to vector<16x1xf32>
    %cst_226 = arith.constant 3.200000e+01 : f32
    %350 = vector.broadcast %cst_226 : f32 to vector<16x1xf32>
    %351 = arith.divf %349, %350 : vector<16x1xf32>
    %352 = vector.broadcast %344 : vector<16x1xf32> to vector<16x32xf32>
    %353 = arith.subf %336, %352 : vector<16x32xf32>
    %cst_227 = arith.constant 9.99999974E-6 : f32
    %354 = vector.broadcast %cst_227 : f32 to vector<16x1xf32>
    %355 = arith.addf %351, %354 : vector<16x1xf32>
    %356 = math.rsqrt %355 : vector<16x1xf32>
    %357 = vector.broadcast %356 : vector<16x1xf32> to vector<16x32xf32>
    %358 = arith.mulf %353, %357 : vector<16x32xf32>
    %359 = vector.broadcast %338 : vector<1x32xf32> to vector<16x32xf32>
    %360 = arith.mulf %358, %359 : vector<16x32xf32>
    %361 = vector.broadcast %340 : vector<1x32xf32> to vector<16x32xf32>
    %362 = arith.addf %360, %361 : vector<16x32xf32>
    %c1_228 = arith.constant 1 : index
    %c0_229 = arith.constant 0 : index
    %c0_230 = arith.constant 0 : index
    %363 = vector.load %arg11[%c1_228, %c0_229, %c0_230] : memref<2x32x128xf32, #tpu.memory_space<vmem>>, vector<1x32x128xf32>
    %364 = vector.shape_cast %363 : vector<1x32x128xf32> to vector<32x128xf32>
    %cst_231 = arith.constant dense<0.000000e+00> : vector<16x128xf32>
    %365 = tpu.matmul %362, %364, %cst_231 {dimension_numbers = #tpu.dot_dimension_numbers<[1], [0], [0], [1], [0, 0, 1, 1], [], []>} : vector<16x32xf32>, vector<32x128xf32>, vector<16x128xf32> -> vector<16x128xf32>
    %c1_232 = arith.constant 1 : index
    %c0_233 = arith.constant 0 : index
    %c0_234 = arith.constant 0 : index
    %366 = vector.load %arg12[%c1_232, %c0_233, %c0_234] : memref<2x1x128xf32, #tpu.memory_space<vmem>>, vector<1x1x128xf32>
    %367 = vector.shape_cast %366 : vector<1x1x128xf32> to vector<1x128xf32>
    %368 = vector.broadcast %367 : vector<1x128xf32> to vector<16x128xf32>
    %369 = arith.addf %365, %368 : vector<16x128xf32>
    %cst_235 = arith.constant 0.000000e+00 : f32
    %370 = vector.broadcast %cst_235 : f32 to vector<16x128xf32>
    %371 = arith.maximumf %369, %370 : vector<16x128xf32>
    %c1_236 = arith.constant 1 : index
    %c0_237 = arith.constant 0 : index
    %c0_238 = arith.constant 0 : index
    %372 = vector.load %arg13[%c1_236, %c0_237, %c0_238] : memref<2x128x32xf32, #tpu.memory_space<vmem>>, vector<1x128x32xf32>
    %373 = vector.shape_cast %372 : vector<1x128x32xf32> to vector<128x32xf32>
    %cst_239 = arith.constant dense<0.000000e+00> : vector<16x32xf32>
    %374 = tpu.matmul %371, %373, %cst_239 {dimension_numbers = #tpu.dot_dimension_numbers<[1], [0], [0], [1], [0, 0, 1, 1], [], []>} : vector<16x128xf32>, vector<128x32xf32>, vector<16x32xf32> -> vector<16x32xf32>
    %c1_240 = arith.constant 1 : index
    %c0_241 = arith.constant 0 : index
    %c0_242 = arith.constant 0 : index
    %375 = vector.load %arg14[%c1_240, %c0_241, %c0_242] : memref<2x1x32xf32, #tpu.memory_space<vmem>>, vector<1x1x32xf32>
    %376 = vector.shape_cast %375 : vector<1x1x32xf32> to vector<1x32xf32>
    %377 = vector.broadcast %376 : vector<1x32xf32> to vector<16x32xf32>
    %378 = arith.addf %374, %377 : vector<16x32xf32>
    %379 = arith.addf %336, %378 : vector<16x32xf32>
    %c0_243 = arith.constant 0 : index
    %c0_244 = arith.constant 0 : index
    %380 = vector.load %arg15[%c0_243, %c0_244] : memref<1x32xf32, #tpu.memory_space<vmem>>, vector<1x32xf32>
    %c0_245 = arith.constant 0 : index
    %c0_246 = arith.constant 0 : index
    %381 = vector.load %arg16[%c0_245, %c0_246] : memref<1x32xf32, #tpu.memory_space<vmem>>, vector<1x32xf32>
    %cst_247 = arith.constant dense<0.000000e+00> : vector<16xf32>
    %382 = vector.multi_reduction <add>, %379, %cst_247 [1] : vector<16x32xf32> to vector<16xf32>
    %383 = vector.shape_cast %382 : vector<16xf32> to vector<16x1xf32>
    %cst_248 = arith.constant 3.200000e+01 : f32
    %384 = vector.broadcast %cst_248 : f32 to vector<16x1xf32>
    %385 = arith.divf %383, %384 : vector<16x1xf32>
    %386 = vector.broadcast %385 : vector<16x1xf32> to vector<16x32xf32>
    %387 = arith.subf %379, %386 : vector<16x32xf32>
    %388 = arith.mulf %387, %387 : vector<16x32xf32>
    %cst_249 = arith.constant dense<0.000000e+00> : vector<16xf32>
    %389 = vector.multi_reduction <add>, %388, %cst_249 [1] : vector<16x32xf32> to vector<16xf32>
    %390 = vector.shape_cast %389 : vector<16xf32> to vector<16x1xf32>
    %cst_250 = arith.constant 3.200000e+01 : f32
    %391 = vector.broadcast %cst_250 : f32 to vector<16x1xf32>
    %392 = arith.divf %390, %391 : vector<16x1xf32>
    %393 = vector.broadcast %385 : vector<16x1xf32> to vector<16x32xf32>
    %394 = arith.subf %379, %393 : vector<16x32xf32>
    %cst_251 = arith.constant 9.99999974E-6 : f32
    %395 = vector.broadcast %cst_251 : f32 to vector<16x1xf32>
    %396 = arith.addf %392, %395 : vector<16x1xf32>
    %397 = math.rsqrt %396 : vector<16x1xf32>
    %398 = vector.broadcast %397 : vector<16x1xf32> to vector<16x32xf32>
    %399 = arith.mulf %394, %398 : vector<16x32xf32>
    %400 = vector.broadcast %380 : vector<1x32xf32> to vector<16x32xf32>
    %401 = arith.mulf %399, %400 : vector<16x32xf32>
    %402 = vector.broadcast %381 : vector<1x32xf32> to vector<16x32xf32>
    %403 = arith.addf %401, %402 : vector<16x32xf32>
    %c0_252 = arith.constant 0 : index
    %c0_253 = arith.constant 0 : index
    %404 = vector.load %arg17[%c0_252, %c0_253] : memref<32x128xf32, #tpu.memory_space<vmem>>, vector<32x128xf32>
    %cst_254 = arith.constant dense<0.000000e+00> : vector<16x128xf32>
    %405 = tpu.matmul %403, %404, %cst_254 {dimension_numbers = #tpu.dot_dimension_numbers<[1], [0], [0], [1], [0, 0, 1, 1], [], []>} : vector<16x32xf32>, vector<32x128xf32>, vector<16x128xf32> -> vector<16x128xf32>
    %c0_255 = arith.constant 0 : index
    %c0_256 = arith.constant 0 : index
    %406 = vector.load %arg18[%c0_255, %c0_256] : memref<1x128xf32, #tpu.memory_space<vmem>>, vector<1x128xf32>
    %407 = vector.broadcast %406 : vector<1x128xf32> to vector<16x128xf32>
    %408 = arith.addf %405, %407 : vector<16x128xf32>
    %c0_257 = arith.constant 0 : index
    %c0_258 = arith.constant 0 : index
    %409 = vector.load %arg19[%c0_257, %c0_258] : memref<16x128xf32, #tpu.memory_space<vmem>>, vector<16x128xf32>
    tpu.vector_store %arg19[%c0_257, %c0_258], %408 {strides = array<i32>} : memref<16x128xf32, #tpu.memory_space<vmem>>, vector<16x128xf32>,
    return
  }
}

</mosaic_0001>

<llo_original>
// kernel: gpt_forward.1
$region0: #{gpt_forward.1}
  #allocation0 [shape = 'u32[]', space=smem, size = 0x4, offset = 0x4, fixed_abs, tag = 'smem constant byte address 0x4 - core index']
  #allocation1 [shape = 'u32[144,128]{1,0:T(1,128)}', space=vmem, size = 0x12000, scoped, tag = 'internal scratch']
  %s0 = inlined_call_operand.vmem [shape: f32[16,32], index: 0, kind: input, shape index: {}]
  %s1 = inlined_call_operand.vmem [shape: f32[16,16], index: 1, kind: input, shape index: {}]
  %s2 = inlined_call_operand.vmem [shape: f32[2,1,32], index: 2, kind: input, shape index: {}]
  %s3 = inlined_call_operand.vmem [shape: f32[2,1,32], index: 3, kind: input, shape index: {}]
  %s4 = inlined_call_operand.vmem [shape: f32[8,32,8], index: 4, kind: input, shape index: {}]
  %s5 = inlined_call_operand.vmem [shape: f32[8,32,8], index: 5, kind: input, shape index: {}]
  %s6 = inlined_call_operand.vmem [shape: f32[8,32,8], index: 6, kind: input, shape index: {}]
  %s7 = inlined_call_operand.vmem [shape: f32[8,8,32], index: 7, kind: input, shape index: {}]
  %s8 = inlined_call_operand.vmem [shape: f32[2,1,32], index: 8, kind: input, shape index: {}]
  %s9 = inlined_call_operand.vmem [shape: f32[2,1,32], index: 9, kind: input, shape index: {}]
  %s10 = inlined_call_operand.vmem [shape: f32[2,1,32], index: 10, kind: input, shape index: {}]
  %s11 = inlined_call_operand.vmem [shape: f32[2,32,128], index: 11, kind: input, shape index: {}]
  %s12 = inlined_call_operand.vmem [shape: f32[2,1,128], index: 12, kind: input, shape index: {}]
  %s13 = inlined_call_operand.vmem [shape: f32[2,128,32], index: 13, kind: input, shape index: {}]
  %s14 = inlined_call_operand.vmem [shape: f32[2,1,32], index: 14, kind: input, shape index: {}]
  %s15 = inlined_call_operand.vmem [shape: f32[1,32], index: 15, kind: input, shape index: {}]
  %s16 = inlined_call_operand.vmem [shape: f32[1,32], index: 16, kind: input, shape index: {}]
  %s17 = inlined_call_operand.vmem [shape: f32[32,128], index: 17, kind: input, shape index: {}]
  %s18 = inlined_call_operand.vmem [shape: f32[1,128], index: 18, kind: input, shape index: {}]
  %s19 = inlined_call_operand.hbm [shape: f32[16,128], index: 19, kind: output, shape index: {}]
  %s20 = sld [smem:[#allocation0]]
  $region86: #{gpt_forward.1} parent=0
    _
  %s22 = ssub.s32 1, %s20
  %s23 = scalar_select 0, %s22, %s20
  $region1: #{gpt_forward.1} parent=0
    #allocation2 [shape = 'u8[8192]{0}', space=vmem, size = 0x2000, scoped, tag = 'output window, operand 0, single buffered']
    #allocation3 [shape = 's32[1]{0}', space=sflag, size = 0x4, scoped, tag = 'scoped memory for gpt_forward.1']
    %24 = vsyncpa [#allocation3], 0
    // Predicated region
    $region2: #{gpt_forward.1} parent=1 // pred_check
      _
    $region3: #{gpt_forward.1} parent=1 // pred_check_branch
      %26 = sbr.rel (0) target = $region5
    $region4: #{gpt_forward.1} parent=1 // pred_region
      _
    $region5: #{gpt_forward.1} parent=1 // pred_fallthru
      _
    // Predicated region
    $region6: #{gpt_forward.1} parent=1 // pred_check
      _
    $region7: #{gpt_forward.1} parent=1 // pred_check_branch
      %28 = sbr.rel (0) target = $region9
    $region8: #{gpt_forward.1} parent=1 // pred_region
      _
    $region9: #{gpt_forward.1} parent=1 // pred_fallthru
      _
    // Predicated region
    $region10: #{gpt_forward.1} parent=1 // pred_check
      _
    $region11: #{gpt_forward.1} parent=1 // pred_check_branch
      %30 = sbr.rel (0) target = $region13
    $region12: #{gpt_forward.1} parent=1 // pred_region
      _
    $region13: #{gpt_forward.1} parent=1 // pred_fallthru
      _
    // Predicated region
    $region14: #{gpt_forward.1} parent=1 // pred_check
      _
    $region15: #{gpt_forward.1} parent=1 // pred_check_branch
      %32 = sbr.rel (0) target = $region17
    $region16: #{gpt_forward.1} parent=1 // pred_region
      _
    $region17: #{gpt_forward.1} parent=1 // pred_fallthru
      _
    // Predicated region
    $region18: #{gpt_forward.1} parent=1 // pred_check
      _
    $region19: #{gpt_forward.1} parent=1 // pred_check_branch
      %34 = sbr.rel (0) target = $region21
    $region20: #{gpt_forward.1} parent=1 // pred_region
      _
    $region21: #{gpt_forward.1} parent=1 // pred_fallthru
      _
    // Predicated region
    $region22: #{gpt_forward.1} parent=1 // pred_check
      _
    $region23: #{gpt_forward.1} parent=1 // pred_check_branch
      %36 = sbr.rel (0) target = $region25
    $region24: #{gpt_forward.1} parent=1 // pred_region
      _
    $region25: #{gpt_forward.1} parent=1 // pred_fallthru
      _
    // Predicated region
    $region26: #{gpt_forward.1} parent=1 // pred_check
      _
    $region27: #{gpt_forward.1} parent=1 // pred_check_branch
      %38 = sbr.rel (0) target = $region29
    $region28: #{gpt_forward.1} parent=1 // pred_region
      _
    $region29: #{gpt_forward.1} parent=1 // pred_fallthru
      _
    // Predicated region
    $region30: #{gpt_forward.1} parent=1 // pred_check
      _
    $region31: #{gpt_forward.1} parent=1 // pred_check_branch
      %40 = sbr.rel (0) target = $region33
    $region32: #{gpt_forward.1} parent=1 // pred_region
      _
    $region33: #{gpt_forward.1} parent=1 // pred_fallthru
      _
    // Predicated region
    $region34: #{gpt_forward.1} parent=1 // pred_check
      _
    $region35: #{gpt_forward.1} parent=1 // pred_check_branch
      %42 = sbr.rel (0) target = $region37
    $region36: #{gpt_forward.1} parent=1 // pred_region
      _
    $region37: #{gpt_forward.1} parent=1 // pred_fallthru
      _
    // Predicated region
    $region38: #{gpt_forward.1} parent=1 // pred_check
      _
    $region39: #{gpt_forward.1} parent=1 // pred_check_branch
      %44 = sbr.rel (0) target = $region41
    $region40: #{gpt_forward.1} parent=1 // pred_region
      _
    $region41: #{gpt_forward.1} parent=1 // pred_fallthru
      _
    // Predicated region
    $region42: #{gpt_forward.1} parent=1 // pred_check
      _
    $region43: #{gpt_forward.1} parent=1 // pred_check_branch
      %46 = sbr.rel (0) target = $region45
    $region44: #{gpt_forward.1} parent=1 // pred_region
      _
    $region45: #{gpt_forward.1} parent=1 // pred_fallthru
      _
    // Predicated region
    $region46: #{gpt_forward.1} parent=1 // pred_check
      _
    $region47: #{gpt_forward.1} parent=1 // pred_check_branch
      %48 = sbr.rel (0) target = $region49
    $region48: #{gpt_forward.1} parent=1 // pred_region
      _
    $region49: #{gpt_forward.1} parent=1 // pred_fallthru
      _
    // Predicated region
    $region50: #{gpt_forward.1} parent=1 // pred_check
      _
    $region51: #{gpt_forward.1} parent=1 // pred_check_branch
      %50 = sbr.rel (0) target = $region53
    $region52: #{gpt_forward.1} parent=1 // pred_region
      _
    $region53: #{gpt_forward.1} parent=1 // pred_fallthru
      _
    // Predicated region
    $region54: #{gpt_forward.1} parent=1 // pred_check
      _
    $region55: #{gpt_forward.1} parent=1 // pred_check_branch
      %52 = sbr.rel (0) target = $region57
    $region56: #{gpt_forward.1} parent=1 // pred_region
      _
    $region57: #{gpt_forward.1} parent=1 // pred_fallthru
      _
    // Predicated region
    $region58: #{gpt_forward.1} parent=1 // pred_check
      _
    $region59: #{gpt_forward.1} parent=1 // pred_check_branch
      %54 = sbr.rel (0) target = $region61
    $region60: #{gpt_forward.1} parent=1 // pred_region
      _
    $region61: #{gpt_forward.1} parent=1 // pred_fallthru
      _
    // Predicated region
    $region62: #{gpt_forward.1} parent=1 // pred_check
      _
    $region63: #{gpt_forward.1} parent=1 // pred_check_branch
      %56 = sbr.rel (0) target = $region65
    $region64: #{gpt_forward.1} parent=1 // pred_region
      _
    $region65: #{gpt_forward.1} parent=1 // pred_fallthru
      _
    // Predicated region
    $region66: #{gpt_forward.1} parent=1 // pred_check
      _
    $region67: #{gpt_forward.1} parent=1 // pred_check_branch
      %58 = sbr.rel (0) target = $region69
    $region68: #{gpt_forward.1} parent=1 // pred_region
      _
    $region69: #{gpt_forward.1} parent=1 // pred_fallthru
      _
    // Predicated region
    $region70: #{gpt_forward.1} parent=1 // pred_check
      _
    $region71: #{gpt_forward.1} parent=1 // pred_check_branch
      %60 = sbr.rel (0) target = $region73
    $region72: #{gpt_forward.1} parent=1 // pred_region
      _
    $region73: #{gpt_forward.1} parent=1 // pred_fallthru
      _
    // Predicated region
    $region74: #{gpt_forward.1} parent=1 // pred_check
      _
    $region75: #{gpt_forward.1} parent=1 // pred_check_branch
      %62 = sbr.rel (0) target = $region77
    $region76: #{gpt_forward.1} parent=1 // pred_region
      _
    $region77: #{gpt_forward.1} parent=1 // pred_fallthru
      _
    %v63 = vld [vmem:[%s0] sm:$0xff]
    %v64 = vld [vmem:[%s0 + $0x8] sm:$0xff]
    %v65 = vld [vmem:[%s1] sm:$0xff]
    %v66 = vld [vmem:[%s1 + $0x8] sm:$0xff]
    %v67 = vld [vmem:[%s2] sm:$0x1]
    %v68 = vld [vmem:[%s3] sm:$0x1]
    %vm69 = vcmask 261120
    %v70 = vsel %vm69, %v63, 0.0
    %71 = vadd.xlane.f32.xlu0 %v70
    %v72 = vpop.xlane.xlu0 %71
    %v73 = vsel %vm69, %v64, 0.0
    %74 = vadd.xlane.f32.xlu0 %v73
    %v75 = vpop.xlane.xlu0 %74
    %v76 = vrcp.pop 32.0
    %v77 = vmul.f32 %v72, %v76
    %v78 = vmul.f32 %v75, %v76
    %v79 = vsub.f32 %v63, %v77
    %v80 = vsub.f32 %v64, %v78
    %v81 = vmul.f32 %v79, %v79
    %v82 = vmul.f32 %v80, %v80
    %v83 = vsel %vm69, %v81, 0.0
    %84 = vadd.xlane.f32.xlu0 %v83
    %v85 = vpop.xlane.xlu0 %84
    %v86 = vsel %vm69, %v82, 0.0
    %87 = vadd.xlane.f32.xlu0 %v86
    %v88 = vpop.xlane.xlu0 %87
    %v89 = vmul.f32 %v85, %v76
    %v90 = vmul.f32 %v88, %v76
    %v91 = vadd.f32 %v89, 1e-05
    %v92 = vadd.f32 %v90, 1e-05
    %v93 = vrsqrt.pop %v91
    %v94 = vrsqrt.pop %v92
    %v95 = vmul.f32 %v79, %v93
    %v96 = vmul.f32 %v80, %v94
    %v98 = vlaneseq
    %v99 = vshrl.u32 %v98, 7
    %v100 = vsub.s32 0, %v99
    %v101 = vrot.slane %v67, %v100
    %v103 = vmul.f32 %v95, %v101
    %v104 = vmul.f32 %v96, %v101
    %v106 = vlaneseq
    %v107 = vshrl.u32 %v106, 7
    %v108 = vsub.s32 0, %v107
    %v109 = vrot.slane %v68, %v108
    %v111 = vadd.f32 %v103, %v109
    %v112 = vadd.f32 %v104, %v109
    %v113 = vld [vmem:[%s4] sm:$0xff]
    %v114 = vld [vmem:[%s4 + $0x8] sm:$0xff]
    %v115 = vld [vmem:[%s4 + $0x10] sm:$0xff]
    %v116 = vld [vmem:[%s4 + $0x18] sm:$0xff]
    %v118 = vsel %vm69, %v111, 0
    %v121 = vsel %vm69, %v112, 0
    %123 = vmatprep.subr.mxu0 0.0
    %124 = vmatpush1.msra.mxu0 %v113
    %125 = vmatprep.subr.mxu0 0.0
    %126 = vmatpush1.msra.mxu0 %v114
    %127 = vmatprep.subr.mxu0 0.0
    %128 = vmatpush1.msra.mxu0 %v115
    %129 = vmatprep.subr.mxu0 0.0
    %130 = vmatpush1.msra.mxu0 %v116
    %131 = vmatprep.subr.mxu0 0.0
    %132 = vmatpush1.msra.mxu0 0.0
    %133 = vmatprep.subr.mxu0 0.0
    %134 = vmatpush1.msra.mxu0 0.0
    %135 = vmatprep.subr.mxu0 0.0
    %136 = vmatpush1.msra.mxu0 0.0
    %137 = vmatprep.subr.mxu0 0.0
    %138 = vmatpush1.msra.mxu0 0.0
    %139 = vmatprep.subr.mxu0 0.0
    %140 = vmatpush1.msra.mxu0 0.0
    %141 = vmatprep.subr.mxu0 0.0
    %142 = vmatpush1.msra.mxu0 0.0
    %143 = vmatprep.subr.mxu0 0.0
    %144 = vmatpush1.msra.mxu0 0.0
    %145 = vmatprep.subr.mxu0 0.0
    %146 = vmatpush1.msra.mxu0 0.0
    %147 = vmatprep.subr.mxu0 0.0
    %148 = vmatpush1.msra.mxu0 0.0
    %149 = vmatprep.subr.mxu0 0.0
    %150 = vmatpush1.msra.mxu0 0.0
    %151 = vmatprep.subr.mxu0 0.0
    %152 = vmatpush1.msra.mxu0 0.0
    %153 = vmatprep.subr.mxu0 0.0
    %154 = vmatpush1.msra.mxu0 0.0
    %155 = vmatprep.subr.mxu0 0.0
    %156 = vmatpush1.msra.mxu0 0.0
    %157 = vmatprep.subr.mxu0 0.0
    %158 = vmatpush1.msra.mxu0 0.0
    %159 = vmatprep.subr.mxu0 0.0
    %160 = vmatpush1.msra.mxu0 0.0
    %161 = vmatprep.subr.mxu0 0.0
    %162 = vmatpush1.msra.mxu0 0.0
    %163 = vmatprep.subr.mxu0 0.0
    %164 = vmatpush1.msra.mxu0 0.0
    %165 = vmatprep.subr.mxu0 0.0
    %166 = vmatpush1.msra.mxu0 0.0
    %167 = vmatprep.subr.mxu0 0.0
    %168 = vmatpush1.msra.mxu0 0.0
    %169 = vmatprep.subr.mxu0 0.0
    %170 = vmatpush1.msra.mxu0 0.0
    %171 = vmatprep.subr.mxu0 0.0
    %172 = vmatpush1.msra.mxu0 0.0
    %173 = vmatprep.subr.mxu0 0.0
    %174 = vmatpush1.msra.mxu0 0.0
    %175 = vmatprep.subr.mxu0 0.0
    %176 = vmatpush1.msra.mxu0 0.0
    %177 = vmatprep.subr.mxu0 0.0
    %178 = vmatpush1.msra.mxu0 0.0
    %179 = vmatprep.subr.mxu0 0.0
    %180 = vmatpush1.msra.mxu0 0.0
    %181 = vmatprep.subr.mxu0 0.0
    %182 = vmatpush1.msra.mxu0 0.0
    %183 = vmatprep.subr.mxu0 0.0
    %184 = vmatpush1.msra.mxu0 0.0
    %185 = vmatprep.subr.mxu0 0.0
    %186 = vmatpush1.msra.mxu0 0.0
    %187 = vmatprep.mubr.f32.mxu0 0.0
    %188 = vmatmul.mubr.f32.gmra.mrb[0].mxu0 %v118
    %v189 = vpop.f32.mrb[0].mxu0
    %v190 = vadd.f32 0.0, %v189
    %v191 = vpop.f32.mrb[0].mxu0
    %192 = vmatprep.mubr.f32.mxu0 0.0
    %193 = vmatmul.mubr.f32.gmra.mrb[0].mxu0 %v121
    %v194 = vpop.f32.mrb[0].mxu0
    %v195 = vadd.f32 0.0, %v194
    %v196 = vpop.f32.mrb[0].mxu0
    %197 = vdwg.mxu0
    %v198 = vld [vmem:[%s5] sm:$0xff]
    %v199 = vld [vmem:[%s5 + $0x8] sm:$0xff]
    %v200 = vld [vmem:[%s5 + $0x10] sm:$0xff]
    %v201 = vld [vmem:[%s5 + $0x18] sm:$0xff]
    %202 = vmatprep.subr.mxu0 0.0
    %203 = vmatpush1.msra.mxu0 %v198
    %204 = vmatprep.subr.mxu0 0.0
    %205 = vmatpush1.msra.mxu0 %v199
    %206 = vmatprep.subr.mxu0 0.0
    %207 = vmatpush1.msra.mxu0 %v200
    %208 = vmatprep.subr.mxu0 0.0
    %209 = vmatpush1.msra.mxu0 %v201
    %210 = vmatprep.subr.mxu0 0.0
    %211 = vmatpush1.msra.mxu0 0.0
    %212 = vmatprep.subr.mxu0 0.0
    %213 = vmatpush1.msra.mxu0 0.0
    %214 = vmatprep.subr.mxu0 0.0
    %215 = vmatpush1.msra.mxu0 0.0
    %216 = vmatprep.subr.mxu0 0.0
    %217 = vmatpush1.msra.mxu0 0.0
    %218 = vmatprep.subr.mxu0 0.0
    %219 = vmatpush1.msra.mxu0 0.0
    %220 = vmatprep.subr.mxu0 0.0
    %221 = vmatpush1.msra.mxu0 0.0
    %222 = vmatprep.subr.mxu0 0.0
    %223 = vmatpush1.msra.mxu0 0.0
    %224 = vmatprep.subr.mxu0 0.0
    %225 = vmatpush1.msra.mxu0 0.0
    %226 = vmatprep.subr.mxu0 0.0
    %227 = vmatpush1.msra.mxu0 0.0
    %228 = vmatprep.subr.mxu0 0.0
    %229 = vmatpush1.msra.mxu0 0.0
    %230 = vmatprep.subr.mxu0 0.0
    %231 = vmatpush1.msra.mxu0 0.0
    %232 = vmatprep.subr.mxu0 0.0
    %233 = vmatpush1.msra.mxu0 0.0
    %234 = vmatprep.subr.mxu0 0.0
    %235 = vmatpush1.msra.mxu0 0.0
    %236 = vmatprep.subr.mxu0 0.0
    %237 = vmatpush1.msra.mxu0 0.0
    %238 = vmatprep.subr.mxu0 0.0
    %239 = vmatpush1.msra.mxu0 0.0
    %240 = vmatprep.subr.mxu0 0.0
    %241 = vmatpush1.msra.mxu0 0.0
    %242 = vmatprep.subr.mxu0 0.0
    %243 = vmatpush1.msra.mxu0 0.0
    %244 = vmatprep.subr.mxu0 0.0
    %245 = vmatpush1.msra.mxu0 0.0
    %246 = vmatprep.subr.mxu0 0.0
    %247 = vmatpush1.msra.mxu0 0.0
    %248 = vmatprep.subr.mxu0 0.0
    %249 = vmatpush1.msra.mxu0 0.0
    %250 = vmatprep.subr.mxu0 0.0
    %251 = vmatpush1.msra.mxu0 0.0
    %252 = vmatprep.subr.mxu0 0.0
    %253 = vmatpush1.msra.mxu0 0.0
    %254 = vmatprep.subr.mxu0 0.0
    %255 = vmatpush1.msra.mxu0 0.0
    %256 = vmatprep.subr.mxu0 0.0
    %257 = vmatpush1.msra.mxu0 0.0
    %258 = vmatprep.subr.mxu0 0.0
    %259 = vmatpush1.msra.mxu0 0.0
    %260 = vmatprep.subr.mxu0 0.0
    %261 = vmatpush1.msra.mxu0 0.0
    %262 = vmatprep.subr.mxu0 0.0
    %263 = vmatpush1.msra.mxu0 0.0
    %264 = vmatprep.subr.mxu0 0.0
    %265 = vmatpush1.msra.mxu0 0.0
    %266 = vmatprep.mubr.f32.mxu0 0.0
    %267 = vmatmul.mubr.f32.gmra.mrb[0].mxu0 %v118
    %v268 = vpop.f32.mrb[0].mxu0
    %v269 = vadd.f32 0.0, %v268
    %v270 = vpop.f32.mrb[0].mxu0
    %271 = vmatprep.mubr.f32.mxu0 0.0
    %272 = vmatmul.mubr.f32.gmra.mrb[0].mxu0 %v121
    %v273 = vpop.f32.mrb[0].mxu0
    %v274 = vadd.f32 0.0, %v273
    %v275 = vpop.f32.mrb[0].mxu0
    %276 = vdwg.mxu0
    %v277 = vld [vmem:[%s6] sm:$0xff]
    %v278 = vld [vmem:[%s6 + $0x8] sm:$0xff]
    %v279 = vld [vmem:[%s6 + $0x10] sm:$0xff]
    %v280 = vld [vmem:[%s6 + $0x18] sm:$0xff]
    %281 = vmatprep.subr.mxu0 0.0
    %282 = vmatpush1.msra.mxu0 %v277
    %283 = vmatprep.subr.mxu0 0.0
    %284 = vmatpush1.msra.mxu0 %v278
    %285 = vmatprep.subr.mxu0 0.0
    %286 = vmatpush1.msra.mxu0 %v279
    %287 = vmatprep.subr.mxu0 0.0
    %288 = vmatpush1.msra.mxu0 %v280
    %289 = vmatprep.subr.mxu0 0.0
    %290 = vmatpush1.msra.mxu0 0.0
    %291 = vmatprep.subr.mxu0 0.0
    %292 = vmatpush1.msra.mxu0 0.0
    %293 = vmatprep.subr.mxu0 0.0
    %294 = vmatpush1.msra.mxu0 0.0
    %295 = vmatprep.subr.mxu0 0.0
    %296 = vmatpush1.msra.mxu0 0.0
    %297 = vmatprep.subr.mxu0 0.0
    %298 = vmatpush1.msra.mxu0 0.0
    %299 = vmatprep.subr.mxu0 0.0
    %300 = vmatpush1.msra.mxu0 0.0
    %301 = vmatprep.subr.mxu0 0.0
    %302 = vmatpush1.msra.mxu0 0.0
    %303 = vmatprep.subr.mxu0 0.0
    %304 = vmatpush1.msra.mxu0 0.0
    %305 = vmatprep.subr.mxu0 0.0
    %306 = vmatpush1.msra.mxu0 0.0
    %307 = vmatprep.subr.mxu0 0.0
    %308 = vmatpush1.msra.mxu0 0.0
    %309 = vmatprep.subr.mxu0 0.0
    %310 = vmatpush1.msra.mxu0 0.0
    %311 = vmatprep.subr.mxu0 0.0
    %312 = vmatpush1.msra.mxu0 0.0
    %313 = vmatprep.subr.mxu0 0.0
    %314 = vmatpush1.msra.mxu0 0.0
    %315 = vmatprep.subr.mxu0 0.0
    %316 = vmatpush1.msra.mxu0 0.0
    %317 = vmatprep.subr.mxu0 0.0
    %318 = vmatpush1.msra.mxu0 0.0
    %319 = vmatprep.subr.mxu0 0.0
    %320 = vmatpush1.msra.mxu0 0.0
    %321 = vmatprep.subr.mxu0 0.0
    %322 = vmatpush1.msra.mxu0 0.0
    %323 = vmatprep.subr.mxu0 0.0
    %324 = vmatpush1.msra.mxu0 0.0
    %325 = vmatprep.subr.mxu0 0.0
    %326 = vmatpush1.msra.mxu0 0.0
    %327 = vmatprep.subr.mxu0 0.0
    %328 = vmatpush1.msra.mxu0 0.0
    %329 = vmatprep.subr.mxu0 0.0
    %330 = vmatpush1.msra.mxu0 0.0
    %331 = vmatprep.subr.mxu0 0.0
    %332 = vmatpush1.msra.mxu0 0.0
    %333 = vmatprep.subr.mxu0 0.0
    %334 = vmatpush1.msra.mxu0 0.0
    %335 = vmatprep.subr.mxu0 0.0
    %336 = vmatpush1.msra.mxu0 0.0
    %337 = vmatprep.subr.mxu0 0.0
    %338 = vmatpush1.msra.mxu0 0.0
    %339 = vmatprep.subr.mxu0 0.0
    %340 = vmatpush1.msra.mxu0 0.0
    %341 = vmatprep.subr.mxu0 0.0
    %342 = vmatpush1.msra.mxu0 0.0
    %343 = vmatprep.subr.mxu0 0.0
    %344 = vmatpush1.msra.mxu0 0.0
    %345 = vmatprep.mubr.f32.mxu0 0.0
    %346 = vmatmul.mubr.f32.gmra.mrb[0].mxu0 %v118
    %v347 = vpop.f32.mrb[0].mxu0
    %v348 = vadd.f32 0.0, %v347
    %v349 = vpop.f32.mrb[0].mxu0
    %350 = vmatprep.mubr.f32.mxu0 0.0
    %351 = vmatmul.mubr.f32.gmra.mrb[0].mxu0 %v121
    %v352 = vpop.f32.mrb[0].mxu0
    %v353 = vadd.f32 0.0, %v352
    %v354 = vpop.f32.mrb[0].mxu0
    %355 = vdwg.mxu0
    %vm356 = vcmask 64512
    %v358 = vsel %vm356, %v190, 0
    %v361 = vsel %vm356, %v195, 0
    %v364 = vsel %vm356, %v269, 0
    %v367 = vsel %vm356, %v274, 0
    %369 = vmatprep.subr.mxu0 0.0
    %370 = vmatpush1.xpose.msra.mxu0 %v364
    %371 = vmatprep.subr.mxu0 0.0
    %372 = vmatpush1.xpose.msra.mxu0 %v367
    %373 = vmatprep.subr.mxu0 0.0
    %374 = vmatpush1.xpose.msra.mxu0 0.0
    %375 = vmatprep.subr.mxu0 0.0
    %376 = vmatpush1.xpose.msra.mxu0 0.0
    %377 = vmatprep.subr.mxu0 0.0
    %378 = vmatpush1.xpose.msra.mxu0 0.0
    %379 = vmatprep.subr.mxu0 0.0
    %380 = vmatpush1.xpose.msra.mxu0 0.0
    %381 = vmatprep.subr.mxu0 0.0
    %382 = vmatpush1.xpose.msra.mxu0 0.0
    %383 = vmatprep.subr.mxu0 0.0
    %384 = vmatpush1.xpose.msra.mxu0 0.0
    %385 = vmatprep.subr.mxu0 0.0
    %386 = vmatpush1.xpose.msra.mxu0 0.0
    %387 = vmatprep.subr.mxu0 0.0
    %388 = vmatpush1.xpose.msra.mxu0 0.0
    %389 = vmatprep.subr.mxu0 0.0
    %390 = vmatpush1.xpose.msra.mxu0 0.0
    %391 = vmatprep.subr.mxu0 0.0
    %392 = vmatpush1.xpose.msra.mxu0 0.0
    %393 = vmatprep.subr.mxu0 0.0
    %394 = vmatpush1.xpose.msra.mxu0 0.0
    %395 = vmatprep.subr.mxu0 0.0
    %396 = vmatpush1.xpose.msra.mxu0 0.0
    %397 = vmatprep.subr.mxu0 0.0
    %398 = vmatpush1.xpose.msra.mxu0 0.0
    %399 = vmatprep.subr.mxu0 0.0
    %400 = vmatpush1.xpose.msra.mxu0 0.0
    %401 = vmatprep.subr.mxu0 0.0
    %402 = vmatpush1.xpose.msra.mxu0 0.0
    %403 = vmatprep.subr.mxu0 0.0
    %404 = vmatpush1.xpose.msra.mxu0 0.0
    %405 = vmatprep.subr.mxu0 0.0
    %406 = vmatpush1.xpose.msra.mxu0 0.0
    %407 = vmatprep.subr.mxu0 0.0
    %408 = vmatpush1.xpose.msra.mxu0 0.0
    %409 = vmatprep.subr.mxu0 0.0
    %410 = vmatpush1.xpose.msra.mxu0 0.0
    %411 = vmatprep.subr.mxu0 0.0
    %412 = vmatpush1.xpose.msra.mxu0 0.0
    %413 = vmatprep.subr.mxu0 0.0
    %414 = vmatpush1.xpose.msra.mxu0 0.0
    %415 = vmatprep.subr.mxu0 0.0
    %416 = vmatpush1.xpose.msra.mxu0 0.0
    %417 = vmatprep.subr.mxu0 0.0
    %418 = vmatpush1.xpose.msra.mxu0 0.0
    %419 = vmatprep.subr.mxu0 0.0
    %420 = vmatpush1.xpose.msra.mxu0 0.0
    %421 = vmatprep.subr.mxu0 0.0
    %422 = vmatpush1.xpose.msra.mxu0 0.0
    %423 = vmatprep.subr.mxu0 0.0
    %424 = vmatpush1.xpose.msra.mxu0 0.0
    %425 = vmatprep.subr.mxu0 0.0
    %426 = vmatpush1.xpose.msra.mxu0 0.0
    %427 = vmatprep.subr.mxu0 0.0
    %428 = vmatpush1.xpose.msra.mxu0 0.0
    %429 = vmatprep.subr.mxu0 0.0
    %430 = vmatpush1.xpose.msra.mxu0 0.0
    %431 = vmatprep.subr.mxu0 0.0
    %432 = vmatpush1.xpose.msra.mxu0 0.0
    %433 = vmatprep.mubr.f32.mxu0 0.0
    %434 = vmatmul.mubr.f32.gmra.mrb[0].mxu0 %v358
    %v435 = vpop.f32.mrb[0].mxu0
    %v436 = vadd.f32 0.0, %v435
    %v437 = vpop.f32.mrb[0].mxu0
    %438 = vmatprep.mubr.f32.mxu0 0.0
    %439 = vmatmul.mubr.f32.gmra.mrb[0].mxu0 %v361
    %v440 = vpop.f32.mrb[0].mxu0
    %v441 = vadd.f32 0.0, %v440
    %v442 = vpop.f32.mrb[0].mxu0
    %443 = vdwg.mxu0
    %v444 = vmul.f32 %v436, 0.35355338
    %v445 = vmul.f32 %v441, 0.35355338
    %v446 = vadd.f32 %v444, %v65
    %v447 = vadd.f32 %v445, %v66
    %vm448 = vcmask 130048
    %v449 = vsel %vm448, %v446, -inf
    %450 = vmax.xlane.f32.xlu0 %v449
    %v451 = vpop.xlane.xlu0 %450
    %v452 = vsel %vm448, %v447, -inf
    %453 = vmax.xlane.f32.xlu0 %v452
    %v454 = vpop.xlane.xlu0 %453
    %v455 = vsub.f32 %v446, %v451
    %v456 = vsub.f32 %v447, %v454
    %v457 = vmul.f32 %v455, 1.442695
    %v458 = vpow.pop %v457
    %v459 = vmul.f32 %v456, 1.442695
    %v460 = vpow.pop %v459
    %v461 = vsel %vm448, %v458, 0.0
    %462 = vadd.xlane.f32.xlu0 %v461
    %v463 = vpop.xlane.xlu0 %462
    %v464 = vsel %vm448, %v460, 0.0
    %465 = vadd.xlane.f32.xlu0 %v464
    %v466 = vpop.xlane.xlu0 %465
    %v467 = vrcp.pop %v463
    %v468 = vrcp.pop %v466
    %v469 = vmul.f32 %v458, %v467
    %v470 = vmul.f32 %v460, %v468
    %v472 = vsel %vm448, %v469, 0
    %v475 = vsel %vm448, %v470, 0
    %477 = vmatprep.subr.mxu0 0.0
    %478 = vmatpush1.msra.mxu0 %v348
    %479 = vmatprep.subr.mxu0 0.0
    %480 = vmatpush1.msra.mxu0 %v353
    %481 = vmatprep.subr.mxu0 0.0
    %482 = vmatpush1.msra.mxu0 0.0
    %483 = vmatprep.subr.mxu0 0.0
    %484 = vmatpush1.msra.mxu0 0.0
    %485 = vmatprep.subr.mxu0 0.0
    %486 = vmatpush1.msra.mxu0 0.0
    %487 = vmatprep.subr.mxu0 0.0
    %488 = vmatpush1.msra.mxu0 0.0
    %489 = vmatprep.subr.mxu0 0.0
    %490 = vmatpush1.msra.mxu0 0.0
    %491 = vmatprep.subr.mxu0 0.0
    %492 = vmatpush1.msra.mxu0 0.0
    %493 = vmatprep.subr.mxu0 0.0
    %494 = vmatpush1.msra.mxu0 0.0
    %495 = vmatprep.subr.mxu0 0.0
    %496 = vmatpush1.msra.mxu0 0.0
    %497 = vmatprep.subr.mxu0 0.0
    %498 = vmatpush1.msra.mxu0 0.0
    %499 = vmatprep.subr.mxu0 0.0
    %500 = vmatpush1.msra.mxu0 0.0
    %501 = vmatprep.subr.mxu0 0.0
    %502 = vmatpush1.msra.mxu0 0.0
    %503 = vmatprep.subr.mxu0 0.0
    %504 = vmatpush1.msra.mxu0 0.0
    %505 = vmatprep.subr.mxu0 0.0
    %506 = vmatpush1.msra.mxu0 0.0
    %507 = vmatprep.subr.mxu0 0.0
    %508 = vmatpush1.msra.mxu0 0.0
    %509 = vmatprep.subr.mxu0 0.0
    %510 = vmatpush1.msra.mxu0 0.0
    %511 = vmatprep.subr.mxu0 0.0
    %512 = vmatpush1.msra.mxu0 0.0
    %513 = vmatprep.subr.mxu0 0.0
    %514 = vmatpush1.msra.mxu0 0.0
    %515 = vmatprep.subr.mxu0 0.0
    %516 = vmatpush1.msra.mxu0 0.0
    %517 = vmatprep.subr.mxu0 0.0
    %518 = vmatpush1.msra.mxu0 0.0
    %519 = vmatprep.subr.mxu0 0.0
    %520 = vmatpush1.msra.mxu0 0.0
    %521 = vmatprep.subr.mxu0 0.0
    %522 = vmatpush1.msra.mxu0 0.0
    %523 = vmatprep.subr.mxu0 0.0
    %524 = vmatpush1.msra.mxu0 0.0
    %525 = vmatprep.subr.mxu0 0.0
    %526 = vmatpush1.msra.mxu0 0.0
    %527 = vmatprep.subr.mxu0 0.0
    %528 = vmatpush1.msra.mxu0 0.0
    %529 = vmatprep.subr.mxu0 0.0
    %530 = vmatpush1.msra.mxu0 0.0
    %531 = vmatprep.subr.mxu0 0.0
    %532 = vmatpush1.msra.mxu0 0.0
    %533 = vmatprep.subr.mxu0 0.0
    %534 = vmatpush1.msra.mxu0 0.0
    %535 = vmatprep.subr.mxu0 0.0
    %536 = vmatpush1.msra.mxu0 0.0
    %537 = vmatprep.subr.mxu0 0.0
    %538 = vmatpush1.msra.mxu0 0.0
    %539 = vmatprep.subr.mxu0 0.0
    %540 = vmatpush1.msra.mxu0 0.0
    %541 = vmatprep.mubr.f32.mxu0 0.0
    %542 = vmatmul.mubr.f32.gmra.mrb[0].mxu0 %v472
    %v543 = vpop.f32.mrb[0].mxu0
    %v544 = vadd.f32 0.0, %v543
    %v545 = vpop.f32.mrb[0].mxu0
    %546 = vmatprep.mubr.f32.mxu0 0.0
    %547 = vmatmul.mubr.f32.gmra.mrb[0].mxu0 %v475
    %v548 = vpop.f32.mrb[0].mxu0
    %v549 = vadd.f32 0.0, %v548
    %v550 = vpop.f32.mrb[0].mxu0
    %551 = vdwg.mxu0
    %v552 = vld [vmem:[%s7] sm:$0xff]
    %s553 = scalar_lea.vmem %s4, 32
    %v554 = vld [vmem:[%s553] sm:$0xff]
    %v555 = vld [vmem:[%s553 + $0x8] sm:$0xff]
    %v556 = vld [vmem:[%s553 + $0x10] sm:$0xff]
    %v557 = vld [vmem:[%s553 + $0x18] sm:$0xff]
    %558 = vmatprep.subr.mxu0 0.0
    %559 = vmatpush1.msra.mxu0 %v554
    %560 = vmatprep.subr.mxu0 0.0
    %561 = vmatpush1.msra.mxu0 %v555
    %562 = vmatprep.subr.mxu0 0.0
    %563 = vmatpush1.msra.mxu0 %v556
    %564 = vmatprep.subr.mxu0 0.0
    %565 = vmatpush1.msra.mxu0 %v557
    %566 = vmatprep.subr.mxu0 0.0
    %567 = vmatpush1.msra.mxu0 0.0
    %568 = vmatprep.subr.mxu0 0.0
    %569 = vmatpush1.msra.mxu0 0.0
    %570 = vmatprep.subr.mxu0 0.0
    %571 = vmatpush1.msra.mxu0 0.0
    %572 = vmatprep.subr.mxu0 0.0
    %573 = vmatpush1.msra.mxu0 0.0
    %574 = vmatprep.subr.mxu0 0.0
    %575 = vmatpush1.msra.mxu0 0.0
    %576 = vmatprep.subr.mxu0 0.0
    %577 = vmatpush1.msra.mxu0 0.0
    %578 = vmatprep.subr.mxu0 0.0
    %579 = vmatpush1.msra.mxu0 0.0
    %580 = vmatprep.subr.mxu0 0.0
    %581 = vmatpush1.msra.mxu0 0.0
    %582 = vmatprep.subr.mxu0 0.0
    %583 = vmatpush1.msra.mxu0 0.0
    %584 = vmatprep.subr.mxu0 0.0
    %585 = vmatpush1.msra.mxu0 0.0
    %586 = vmatprep.subr.mxu0 0.0
    %587 = vmatpush1.msra.mxu0 0.0
    %588 = vmatprep.subr.mxu0 0.0
    %589 = vmatpush1.msra.mxu0 0.0
    %590 = vmatprep.subr.mxu0 0.0
    %591 = vmatpush1.msra.mxu0 0.0
    %592 = vmatprep.subr.mxu0 0.0
    %593 = vmatpush1.msra.mxu0 0.0
    %594 = vmatprep.subr.mxu0 0.0
    %595 = vmatpush1.msra.mxu0 0.0
    %596 = vmatprep.subr.mxu0 0.0
    %597 = vmatpush1.msra.mxu0 0.0
    %598 = vmatprep.subr.mxu0 0.0
    %599 = vmatpush1.msra.mxu0 0.0
    %600 = vmatprep.subr.mxu0 0.0
    %601 = vmatpush1.msra.mxu0 0.0
    %602 = vmatprep.subr.mxu0 0.0
    %603 = vmatpush1.msra.mxu0 0.0
    %604 = vmatprep.subr.mxu0 0.0
    %605 = vmatpush1.msra.mxu0 0.0
    %606 = vmatprep.subr.mxu0 0.0
    %607 = vmatpush1.msra.mxu0 0.0
    %608 = vmatprep.subr.mxu0 0.0
    %609 = vmatpush1.msra.mxu0 0.0
    %610 = vmatprep.subr.mxu0 0.0
    %611 = vmatpush1.msra.mxu0 0.0
    %612 = vmatprep.subr.mxu0 0.0
    %613 = vmatpush1.msra.mxu0 0.0
    %614 = vmatprep.subr.mxu0 0.0
    %615 = vmatpush1.msra.mxu0 0.0
    %616 = vmatprep.subr.mxu0 0.0
    %617 = vmatpush1.msra.mxu0 0.0
    %618 = vmatprep.subr.mxu0 0.0
    %619 = vmatpush1.msra.mxu0 0.0
    %620 = vmatprep.subr.mxu0 0.0
    %621 = vmatpush1.msra.mxu0 0.0
    %622 = vmatprep.mubr.f32.mxu0 0.0
    %623 = vmatmul.mubr.f32.gmra.mrb[0].mxu0 %v118
    %v624 = vpop.f32.mrb[0].mxu0
    %v625 = vadd.f32 0.0, %v624
    %v626 = vpop.f32.mrb[0].mxu0
    %627 = vmatprep.mubr.f32.mxu0 0.0
    %628 = vmatmul.mubr.f32.gmra.mrb[0].mxu0 %v121
    %v629 = vpop.f32.mrb[0].mxu0
    %v630 = vadd.f32 0.0, %v629
    %v631 = vpop.f32.mrb[0].mxu0
    %632 = vdwg.mxu0
    %s633 = scalar_lea.vmem %s5, 32
    %v634 = vld [vmem:[%s633] sm:$0xff]
    %v635 = vld [vmem:[%s633 + $0x8] sm:$0xff]
    %v636 = vld [vmem:[%s633 + $0x10] sm:$0xff]
    %v637 = vld [vmem:[%s633 + $0x18] sm:$0xff]
    %638 = vmatprep.subr.mxu0 0.0
    %639 = vmatpush1.msra.mxu0 %v634
    %640 = vmatprep.subr.mxu0 0.0
    %641 = vmatpush1.msra.mxu0 %v635
    %642 = vmatprep.subr.mxu0 0.0
    %643 = vmatpush1.msra.mxu0 %v636
    %644 = vmatprep.subr.mxu0 0.0
    %645 = vmatpush1.msra.mxu0 %v637
    %646 = vmatprep.subr.mxu0 0.0
    %647 = vmatpush1.msra.mxu0 0.0
    %648 = vmatprep.subr.mxu0 0.0
    %649 = vmatpush1.msra.mxu0 0.0
    %650 = vmatprep.subr.mxu0 0.0
    %651 = vmatpush1.msra.mxu0 0.0
    %652 = vmatprep.subr.mxu0 0.0
    %653 = vmatpush1.msra.mxu0 0.0
    %654 = vmatprep.subr.mxu0 0.0
    %655 = vmatpush1.msra.mxu0 0.0
    %656 = vmatprep.subr.mxu0 0.0
    %657 = vmatpush1.msra.mxu0 0.0
    %658 = vmatprep.subr.mxu0 0.0
    %659 = vmatpush1.msra.mxu0 0.0
    %660 = vmatprep.subr.mxu0 0.0
    %661 = vmatpush1.msra.mxu0 0.0
    %662 = vmatprep.subr.mxu0 0.0
    %663 = vmatpush1.msra.mxu0 0.0
    %664 = vmatprep.subr.mxu0 0.0
    %665 = vmatpush1.msra.mxu0 0.0
    %666 = vmatprep.subr.mxu0 0.0
    %667 = vmatpush1.msra.mxu0 0.0
    %668 = vmatprep.subr.mxu0 0.0
    %669 = vmatpush1.msra.mxu0 0.0
    %670 = vmatprep.subr.mxu0 0.0
    %671 = vmatpush1.msra.mxu0 0.0
    %672 = vmatprep.subr.mxu0 0.0
    %673 = vmatpush1.msra.mxu0 0.0
    %674 = vmatprep.subr.mxu0 0.0
    %675 = vmatpush1.msra.mxu0 0.0
    %676 = vmatprep.subr.mxu0 0.0
    %677 = vmatpush1.msra.mxu0 0.0
    %678 = vmatprep.subr.mxu0 0.0
    %679 = vmatpush1.msra.mxu0 0.0
    %680 = vmatprep.subr.mxu0 0.0
    %681 = vmatpush1.msra.mxu0 0.0
    %682 = vmatprep.subr.mxu0 0.0
    %683 = vmatpush1.msra.mxu0 0.0
    %684 = vmatprep.subr.mxu0 0.0
    %685 = vmatpush1.msra.mxu0 0.0
    %686 = vmatprep.subr.mxu0 0.0
    %687 = vmatpush1.msra.mxu0 0.0
    %688 = vmatprep.subr.mxu0 0.0
    %689 = vmatpush1.msra.mxu0 0.0
    %690 = vmatprep.subr.mxu0 0.0
    %691 = vmatpush1.msra.mxu0 0.0
    %692 = vmatprep.subr.mxu0 0.0
    %693 = vmatpush1.msra.mxu0 0.0
    %694 = vmatprep.subr.mxu0 0.0
    %695 = vmatpush1.msra.mxu0 0.0
    %696 = vmatprep.subr.mxu0 0.0
    %697 = vmatpush1.msra.mxu0 0.0
    %698 = vmatprep.subr.mxu0 0.0
    %699 = vmatpush1.msra.mxu0 0.0
    %700 = vmatprep.subr.mxu0 0.0
    %701 = vmatpush1.msra.mxu0 0.0
    %702 = vmatprep.mubr.f32.mxu0 0.0
    %703 = vmatmul.mubr.f32.gmra.mrb[0].mxu0 %v118
    %v704 = vpop.f32.mrb[0].mxu0
    %v705 = vadd.f32 0.0, %v704
    %v706 = vpop.f32.mrb[0].mxu0
    %707 = vmatprep.mubr.f32.mxu0 0.0
    %708 = vmatmul.mubr.f32.gmra.mrb[0].mxu0 %v121
    %v709 = vpop.f32.mrb[0].mxu0
    %v710 = vadd.f32 0.0, %v709
    %v711 = vpop.f32.mrb[0].mxu0
    %712 = vdwg.mxu0
    %s713 = scalar_lea.vmem %s6, 32
    %v714 = vld [vmem:[%s713] sm:$0xff]
    %v715 = vld [vmem:[%s713 + $0x8] sm:$0xff]
    %v716 = vld [vmem:[%s713 + $0x10] sm:$0xff]
    %v717 = vld [vmem:[%s713 + $0x18] sm:$0xff]
    %718 = vmatprep.subr.mxu0 0.0
    %719 = vmatpush1.msra.mxu0 %v714
    %720 = vmatprep.subr.mxu0 0.0
    %721 = vmatpush1.msra.mxu0 %v715
    %722 = vmatprep.subr.mxu0 0.0
    %723 = vmatpush1.msra.mxu0 %v716
    %724 = vmatprep.subr.mxu0 0.0
    %725 = vmatpush1.msra.mxu0 %v717
    %726 = vmatprep.subr.mxu0 0.0
    %727 = vmatpush1.msra.mxu0 0.0
    %728 = vmatprep.subr.mxu0 0.0
    %729 = vmatpush1.msra.mxu0 0.0
    %730 = vmatprep.subr.mxu0 0.0
    %731 = vmatpush1.msra.mxu0 0.0
    %732 = vmatprep.subr.mxu0 0.0
    %733 = vmatpush1.msra.mxu0 0.0
    %734 = vmatprep.subr.mxu0 0.0
    %735 = vmatpush1.msra.mxu0 0.0
    %736 = vmatprep.subr.mxu0 0.0
    %737 = vmatpush1.msra.mxu0 0.0
    %738 = vmatprep.subr.mxu0 0.0
    %739 = vmatpush1.msra.mxu0 0.0
    %740 = vmatprep.subr.mxu0 0.0
    %741 = vmatpush1.msra.mxu0 0.0
    %742 = vmatprep.subr.mxu0 0.0
    %743 = vmatpush1.msra.mxu0 0.0
    %744 = vmatprep.subr.mxu0 0.0
    %745 = vmatpush1.msra.mxu0 0.0
    %746 = vmatprep.subr.mxu0 0.0
    %747 = vmatpush1.msra.mxu0 0.0
    %748 = vmatprep.subr.mxu0 0.0
    %749 = vmatpush1.msra.mxu0 0.0
    %750 = vmatprep.subr.mxu0 0.0
    %751 = vmatpush1.msra.mxu0 0.0
    %752 = vmatprep.subr.mxu0 0.0
    %753 = vmatpush1.msra.mxu0 0.0
    %754 = vmatprep.subr.mxu0 0.0
    %755 = vmatpush1.msra.mxu0 0.0
    %756 = vmatprep.subr.mxu0 0.0
    %757 = vmatpush1.msra.mxu0 0.0
    %758 = vmatprep.subr.mxu0 0.0
    %759 = vmatpush1.msra.mxu0 0.0
    %760 = vmatprep.subr.mxu0 0.0
    %761 = vmatpush1.msra.mxu0 0.0
    %762 = vmatprep.subr.mxu0 0.0
    %763 = vmatpush1.msra.mxu0 0.0
    %764 = vmatprep.subr.mxu0 0.0
    %765 = vmatpush1.msra.mxu0 0.0
    %766 = vmatprep.subr.mxu0 0.0
    %767 = vmatpush1.msra.mxu0 0.0
    %768 = vmatprep.subr.mxu0 0.0
    %769 = vmatpush1.msra.mxu0 0.0
    %770 = vmatprep.subr.mxu0 0.0
    %771 = vmatpush1.msra.mxu0 0.0
    %772 = vmatprep.subr.mxu0 0.0
    %773 = vmatpush1.msra.mxu0 0.0
    %774 = vmatprep.subr.mxu0 0.0
    %775 = vmatpush1.msra.mxu0 0.0
    %776 = vmatprep.subr.mxu0 0.0
    %777 = vmatpush1.msra.mxu0 0.0
    %778 = vmatprep.subr.mxu0 0.0
    %779 = vmatpush1.msra.mxu0 0.0
    %780 = vmatprep.subr.mxu0 0.0
    %781 = vmatpush1.msra.mxu0 0.0
    %782 = vmatprep.mubr.f32.mxu0 0.0
    %783 = vmatmul.mubr.f32.gmra.mrb[0].mxu0 %v118
    %v784 = vpop.f32.mrb[0].mxu0
    %v785 = vadd.f32 0.0, %v784
    %v786 = vpop.f32.mrb[0].mxu0
    %787 = vmatprep.mubr.f32.mxu0 0.0
    %788 = vmatmul.mubr.f32.gmra.mrb[0].mxu0 %v121
    %v789 = vpop.f32.mrb[0].mxu0
    %v790 = vadd.f32 0.0, %v789
    %v791 = vpop.f32.mrb[0].mxu0
    %792 = vdwg.mxu0
    %v794 = vsel %vm356, %v625, 0
    %v797 = vsel %vm356, %v630, 0
    %v800 = vsel %vm356, %v705, 0
    %v803 = vsel %vm356, %v710, 0
    %805 = vmatprep.subr.mxu0 0.0
    %806 = vmatpush1.xpose.msra.mxu0 %v800
    %807 = vmatprep.subr.mxu0 0.0
    %808 = vmatpush1.xpose.msra.mxu0 %v803
    %809 = vmatprep.subr.mxu0 0.0
    %810 = vmatpush1.xpose.msra.mxu0 0.0
    %811 = vmatprep.subr.mxu0 0.0
    %812 = vmatpush1.xpose.msra.mxu0 0.0
    %813 = vmatprep.subr.mxu0 0.0
    %814 = vmatpush1.xpose.msra.mxu0 0.0
    %815 = vmatprep.subr.mxu0 0.0
    %816 = vmatpush1.xpose.msra.mxu0 0.0
    %817 = vmatprep.subr.mxu0 0.0
    %818 = vmatpush1.xpose.msra.mxu0 0.0
    %819 = vmatprep.subr.mxu0 0.0
    %820 = vmatpush1.xpose.msra.mxu0 0.0
    %821 = vmatprep.subr.mxu0 0.0
    %822 = vmatpush1.xpose.msra.mxu0 0.0
    %823 = vmatprep.subr.mxu0 0.0
    %824 = vmatpush1.xpose.msra.mxu0 0.0
    %825 = vmatprep.subr.mxu0 0.0
    %826 = vmatpush1.xpose.msra.mxu0 0.0
    %827 = vmatprep.subr.mxu0 0.0
    %828 = vmatpush1.xpose.msra.mxu0 0.0
    %829 = vmatprep.subr.mxu0 0.0
    %830 = vmatpush1.xpose.msra.mxu0 0.0
    %831 = vmatprep.subr.mxu0 0.0
    %832 = vmatpush1.xpose.msra.mxu0 0.0
    %833 = vmatprep.subr.mxu0 0.0
    %834 = vmatpush1.xpose.msra.mxu0 0.0
    %835 = vmatprep.subr.mxu0 0.0
    %836 = vmatpush1.xpose.msra.mxu0 0.0
    %837 = vmatprep.subr.mxu0 0.0
    %838 = vmatpush1.xpose.msra.mxu0 0.0
    %839 = vmatprep.subr.mxu0 0.0
    %840 = vmatpush1.xpose.msra.mxu0 0.0
    %841 = vmatprep.subr.mxu0 0.0
    %842 = vmatpush1.xpose.msra.mxu0 0.0
    %843 = vmatprep.subr.mxu0 0.0
    %844 = vmatpush1.xpose.msra.mxu0 0.0
    %845 = vmatprep.subr.mxu0 0.0
    %846 = vmatpush1.xpose.msra.mxu0 0.0
    %847 = vmatprep.subr.mxu0 0.0
    %848 = vmatpush1.xpose.msra.mxu0 0.0
    %849 = vmatprep.subr.mxu0 0.0
    %850 = vmatpush1.xpose.msra.mxu0 0.0
    %851 = vmatprep.subr.mxu0 0.0
    %852 = vmatpush1.xpose.msra.mxu0 0.0
    %853 = vmatprep.subr.mxu0 0.0
    %854 = vmatpush1.xpose.msra.mxu0 0.0
    %855 = vmatprep.subr.mxu0 0.0
    %856 = vmatpush1.xpose.msra.mxu0 0.0
    %857 = vmatprep.subr.mxu0 0.0
    %858 = vmatpush1.xpose.msra.mxu0 0.0
    %859 = vmatprep.subr.mxu0 0.0
    %860 = vmatpush1.xpose.msra.mxu0 0.0
    %861 = vmatprep.subr.mxu0 0.0
    %862 = vmatpush1.xpose.msra.mxu0 0.0
    %863 = vmatprep.subr.mxu0 0.0
    %864 = vmatpush1.xpose.msra.mxu0 0.0
    %865 = vmatprep.subr.mxu0 0.0
    %866 = vmatpush1.xpose.msra.mxu0 0.0
    %867 = vmatprep.subr.mxu0 0.0
    %868 = vmatpush1.xpose.msra.mxu0 0.0
    %869 = vmatprep.mubr.f32.mxu0 0.0
    %870 = vmatmul.mubr.f32.gmra.mrb[0].mxu0 %v794
    %v871 = vpop.f32.mrb[0].mxu0
    %v872 = vadd.f32 0.0, %v871
    %v873 = vpop.f32.mrb[0].mxu0
    %874 = vmatprep.mubr.f32.mxu0 0.0
    %875 = vmatmul.mubr.f32.gmra.mrb[0].mxu0 %v797
    %v876 = vpop.f32.mrb[0].mxu0
    %v877 = vadd.f32 0.0, %v876
    %v878 = vpop.f32.mrb[0].mxu0
    %879 = vdwg.mxu0
    %v880 = vmul.f32 %v872, 0.35355338
    %v881 = vmul.f32 %v877, 0.35355338
    %v882 = vadd.f32 %v880, %v65
    %v883 = vadd.f32 %v881, %v66
    %v884 = vsel %vm448, %v882, -inf
    %885 = vmax.xlane.f32.xlu0 %v884
    %v886 = vpop.xlane.xlu0 %885
    %v887 = vsel %vm448, %v883, -inf
    %888 = vmax.xlane.f32.xlu0 %v887
    %v889 = vpop.xlane.xlu0 %888
    %v890 = vsub.f32 %v882, %v886
    %v891 = vsub.f32 %v883, %v889
    %v892 = vmul.f32 %v890, 1.442695
    %v893 = vpow.pop %v892
    %v894 = vmul.f32 %v891, 1.442695
    %v895 = vpow.pop %v894
    %v896 = vsel %vm448, %v893, 0.0
    %897 = vadd.xlane.f32.xlu0 %v896
    %v898 = vpop.xlane.xlu0 %897
    %v899 = vsel %vm448, %v895, 0.0
    %900 = vadd.xlane.f32.xlu0 %v899
    %v901 = vpop.xlane.xlu0 %900
    %v902 = vrcp.pop %v898
    %v903 = vrcp.pop %v901
    %v904 = vmul.f32 %v893, %v902
    %v905 = vmul.f32 %v895, %v903
    %v907 = vsel %vm448, %v904, 0
    %v910 = vsel %vm448, %v905, 0
    %912 = vmatprep.subr.mxu0 0.0
    %913 = vmatpush1.msra.mxu0 %v785
    %914 = vmatprep.subr.mxu0 0.0
    %915 = vmatpush1.msra.mxu0 %v790
    %916 = vmatprep.subr.mxu0 0.0
    %917 = vmatpush1.msra.mxu0 0.0
    %918 = vmatprep.subr.mxu0 0.0
    %919 = vmatpush1.msra.mxu0 0.0
    %920 = vmatprep.subr.mxu0 0.0
    %921 = vmatpush1.msra.mxu0 0.0
    %922 = vmatprep.subr.mxu0 0.0
    %923 = vmatpush1.msra.mxu0 0.0
    %924 = vmatprep.subr.mxu0 0.0
    %925 = vmatpush1.msra.mxu0 0.0
    %926 = vmatprep.subr.mxu0 0.0
    %927 = vmatpush1.msra.mxu0 0.0
    %928 = vmatprep.subr.mxu0 0.0
    %929 = vmatpush1.msra.mxu0 0.0
    %930 = vmatprep.subr.mxu0 0.0
    %931 = vmatpush1.msra.mxu0 0.0
    %932 = vmatprep.subr.mxu0 0.0
    %933 = vmatpush1.msra.mxu0 0.0
    %934 = vmatprep.subr.mxu0 0.0
    %935 = vmatpush1.msra.mxu0 0.0
    %936 = vmatprep.subr.mxu0 0.0
    %937 = vmatpush1.msra.mxu0 0.0
    %938 = vmatprep.subr.mxu0 0.0
    %939 = vmatpush1.msra.mxu0 0.0
    %940 = vmatprep.subr.mxu0 0.0
    %941 = vmatpush1.msra.mxu0 0.0
    %942 = vmatprep.subr.mxu0 0.0
    %943 = vmatpush1.msra.mxu0 0.0
    %944 = vmatprep.subr.mxu0 0.0
    %945 = vmatpush1.msra.mxu0 0.0
    %946 = vmatprep.subr.mxu0 0.0
    %947 = vmatpush1.msra.mxu0 0.0
    %948 = vmatprep.subr.mxu0 0.0
    %949 = vmatpush1.msra.mxu0 0.0
    %950 = vmatprep.subr.mxu0 0.0
    %951 = vmatpush1.msra.mxu0 0.0
    %952 = vmatprep.subr.mxu0 0.0
    %953 = vmatpush1.msra.mxu0 0.0
    %954 = vmatprep.subr.mxu0 0.0
    %955 = vmatpush1.msra.mxu0 0.0
    %956 = vmatprep.subr.mxu0 0.0
    %957 = vmatpush1.msra.mxu0 0.0
    %958 = vmatprep.subr.mxu0 0.0
    %959 = vmatpush1.msra.mxu0 0.0
    %960 = vmatprep.subr.mxu0 0.0
    %961 = vmatpush1.msra.mxu0 0.0
    %962 = vmatprep.subr.mxu0 0.0
    %963 = vmatpush1.msra.mxu0 0.0
    %964 = vmatprep.subr.mxu0 0.0
    %965 = vmatpush1.msra.mxu0 0.0
    %966 = vmatprep.subr.mxu0 0.0
    %967 = vmatpush1.msra.mxu0 0.0
    %968 = vmatprep.subr.mxu0 0.0
    %969 = vmatpush1.msra.mxu0 0.0
    %970 = vmatprep.subr.mxu0 0.0
    %971 = vmatpush1.msra.mxu0 0.0
    %972 = vmatprep.subr.mxu0 0.0
    %973 = vmatpush1.msra.mxu0 0.0
    %974 = vmatprep.subr.mxu0 0.0
    %975 = vmatpush1.msra.mxu0 0.0
    %976 = vmatprep.mubr.f32.mxu0 0.0
    %977 = vmatmul.mubr.f32.gmra.mrb[0].mxu0 %v907
    %v978 = vpop.f32.mrb[0].mxu0
    %v979 = vadd.f32 0.0, %v978
    %v980 = vpop.f32.mrb[0].mxu0
    %981 = vmatprep.mubr.f32.mxu0 0.0
    %982 = vmatmul.mubr.f32.gmra.mrb[0].mxu0 %v910
    %v983 = vpop.f32.mrb[0].mxu0
    %v984 = vadd.f32 0.0, %v983
    %v985 = vpop.f32.mrb[0].mxu0
    %986 = vdwg.mxu0
    %s987 = scalar_lea.vmem %s7, 8
    %v988 = vld [vmem:[%s987] sm:$0xff]
    %v990 = vsel %vm356, %v979, 0
    %v993 = vsel %vm356, %v984, 0
    %995 = vmatprep.subr.mxu0 0.0
    %996 = vmatpush1.msra.mxu0 %v988
    %997 = vmatprep.subr.mxu0 0.0
    %998 = vmatpush1.msra.mxu0 0.0
    %999 = vmatprep.subr.mxu0 0.0
    %1000 = vmatpush1.msra.mxu0 0.0
    %1001 = vmatprep.subr.mxu0 0.0
    %1002 = vmatpush1.msra.mxu0 0.0
    %1003 = vmatprep.subr.mxu0 0.0
    %1004 = vmatpush1.msra.mxu0 0.0
    %1005 = vmatprep.subr.mxu0 0.0
    %1006 = vmatpush1.msra.mxu0 0.0
    %1007 = vmatprep.subr.mxu0 0.0
    %1008 = vmatpush1.msra.mxu0 0.0
    %1009 = vmatprep.subr.mxu0 0.0
    %1010 = vmatpush1.msra.mxu0 0.0
    %1011 = vmatprep.subr.mxu0 0.0
    %1012 = vmatpush1.msra.mxu0 0.0
    %1013 = vmatprep.subr.mxu0 0.0
    %1014 = vmatpush1.msra.mxu0 0.0
    %1015 = vmatprep.subr.mxu0 0.0
    %1016 = vmatpush1.msra.mxu0 0.0
    %1017 = vmatprep.subr.mxu0 0.0
    %1018 = vmatpush1.msra.mxu0 0.0
    %1019 = vmatprep.subr.mxu0 0.0
    %1020 = vmatpush1.msra.mxu0 0.0
    %1021 = vmatprep.subr.mxu0 0.0
    %1022 = vmatpush1.msra.mxu0 0.0
    %1023 = vmatprep.subr.mxu0 0.0
    %1024 = vmatpush1.msra.mxu0 0.0
    %1025 = vmatprep.subr.mxu0 0.0
    %1026 = vmatpush1.msra.mxu0 0.0
    %1027 = vmatprep.subr.mxu0 0.0
    %1028 = vmatpush1.msra.mxu0 0.0
    %1029 = vmatprep.subr.mxu0 0.0
    %1030 = vmatpush1.msra.mxu0 0.0
    %1031 = vmatprep.subr.mxu0 0.0
    %1032 = vmatpush1.msra.mxu0 0.0
    %1033 = vmatprep.subr.mxu0 0.0
    %1034 = vmatpush1.msra.mxu0 0.0
    %1035 = vmatprep.subr.mxu0 0.0
    %1036 = vmatpush1.msra.mxu0 0.0
    %1037 = vmatprep.subr.mxu0 0.0
    %1038 = vmatpush1.msra.mxu0 0.0
    %1039 = vmatprep.subr.mxu0 0.0
    %1040 = vmatpush1.msra.mxu0 0.0
    %1041 = vmatprep.subr.mxu0 0.0
    %1042 = vmatpush1.msra.mxu0 0.0
    %1043 = vmatprep.subr.mxu0 0.0
    %1044 = vmatpush1.msra.mxu0 0.0
    %1045 = vmatprep.subr.mxu0 0.0
    %1046 = vmatpush1.msra.mxu0 0.0
    %1047 = vmatprep.subr.mxu0 0.0
    %1048 = vmatpush1.msra.mxu0 0.0
    %1049 = vmatprep.subr.mxu0 0.0
    %1050 = vmatpush1.msra.mxu0 0.0
    %1051 = vmatprep.subr.mxu0 0.0
    %1052 = vmatpush1.msra.mxu0 0.0
    %1053 = vmatprep.subr.mxu0 0.0
    %1054 = vmatpush1.msra.mxu0 0.0
    %1055 = vmatprep.subr.mxu0 0.0
    %1056 = vmatpush1.msra.mxu0 0.0
    %1057 = vmatprep.subr.mxu0 0.0
    %1058 = vmatpush1.msra.mxu0 0.0
    %1059 = vmatprep.mubr.f32.mxu0 0.0
    %1060 = vmatmul.mubr.f32.gmra.mrb[0].mxu0 %v990
    %v1061 = vpop.f32.mrb[0].mxu0
    %v1062 = vadd.f32 0.0, %v1061
    %v1063 = vpop.f32.mrb[0].mxu0
    %1064 = vmatprep.mubr.f32.mxu0 0.0
    %1065 = vmatmul.mubr.f32.gmra.mrb[0].mxu0 %v993
    %v1066 = vpop.f32.mrb[0].mxu0
    %v1067 = vadd.f32 0.0, %v1066
    %v1068 = vpop.f32.mrb[0].mxu0
    %1069 = vdwg.mxu0
    %v1071 = vsel %vm356, %v544, 0
    %v1074 = vsel %vm356, %v549, 0
    %1076 = vmatprep.subr.mxu0 0.0
    %1077 = vmatpush1.msra.mxu0 %v552
    %1078 = vmatprep.subr.mxu0 0.0
    %1079 = vmatpush1.msra.mxu0 0.0
    %1080 = vmatprep.subr.mxu0 0.0
    %1081 = vmatpush1.msra.mxu0 0.0
    %1082 = vmatprep.subr.mxu0 0.0
    %1083 = vmatpush1.msra.mxu0 0.0
    %1084 = vmatprep.subr.mxu0 0.0
    %1085 = vmatpush1.msra.mxu0 0.0
    %1086 = vmatprep.subr.mxu0 0.0
    %1087 = vmatpush1.msra.mxu0 0.0
    %1088 = vmatprep.subr.mxu0 0.0
    %1089 = vmatpush1.msra.mxu0 0.0
    %1090 = vmatprep.subr.mxu0 0.0
    %1091 = vmatpush1.msra.mxu0 0.0
    %1092 = vmatprep.subr.mxu0 0.0
    %1093 = vmatpush1.msra.mxu0 0.0
    %1094 = vmatprep.subr.mxu0 0.0
    %1095 = vmatpush1.msra.mxu0 0.0
    %1096 = vmatprep.subr.mxu0 0.0
    %1097 = vmatpush1.msra.mxu0 0.0
    %1098 = vmatprep.subr.mxu0 0.0
    %1099 = vmatpush1.msra.mxu0 0.0
    %1100 = vmatprep.subr.mxu0 0.0
    %1101 = vmatpush1.msra.mxu0 0.0
    %1102 = vmatprep.subr.mxu0 0.0
    %1103 = vmatpush1.msra.mxu0 0.0
    %1104 = vmatprep.subr.mxu0 0.0
    %1105 = vmatpush1.msra.mxu0 0.0
    %1106 = vmatprep.subr.mxu0 0.0
    %1107 = vmatpush1.msra.mxu0 0.0
    %1108 = vmatprep.subr.mxu0 0.0
    %1109 = vmatpush1.msra.mxu0 0.0
    %1110 = vmatprep.subr.mxu0 0.0
    %1111 = vmatpush1.msra.mxu0 0.0
    %1112 = vmatprep.subr.mxu0 0.0
    %1113 = vmatpush1.msra.mxu0 0.0
    %1114 = vmatprep.subr.mxu0 0.0
    %1115 = vmatpush1.msra.mxu0 0.0
    %1116 = vmatprep.subr.mxu0 0.0
    %1117 = vmatpush1.msra.mxu0 0.0
    %1118 = vmatprep.subr.mxu0 0.0
    %1119 = vmatpush1.msra.mxu0 0.0
    %1120 = vmatprep.subr.mxu0 0.0
    %1121 = vmatpush1.msra.mxu0 0.0
    %1122 = vmatprep.subr.mxu0 0.0
    %1123 = vmatpush1.msra.mxu0 0.0
    %1124 = vmatprep.subr.mxu0 0.0
    %1125 = vmatpush1.msra.mxu0 0.0
    %1126 = vmatprep.subr.mxu0 0.0
    %1127 = vmatpush1.msra.mxu0 0.0
    %1128 = vmatprep.subr.mxu0 0.0
    %1129 = vmatpush1.msra.mxu0 0.0
    %1130 = vmatprep.subr.mxu0 0.0
    %1131 = vmatpush1.msra.mxu0 0.0
    %1132 = vmatprep.subr.mxu0 0.0
    %1133 = vmatpush1.msra.mxu0 0.0
    %1134 = vmatprep.subr.mxu0 0.0
    %1135 = vmatpush1.msra.mxu0 0.0
    %1136 = vmatprep.subr.mxu0 0.0
    %1137 = vmatpush1.msra.mxu0 0.0
    %1138 = vmatprep.subr.mxu0 0.0
    %1139 = vmatpush1.msra.mxu0 0.0
    %1140 = vmatprep.mubr.f32.mxu0 0.0
    %1141 = vmatmul.mubr.f32.gmra.mrb[0].mxu0 %v1071
    %v1142 = vpop.f32.mrb[0].mxu0
    %v1143 = vadd.f32 %v1062, %v1142
    %v1144 = vpop.f32.mrb[0].mxu0
    %1145 = vmatprep.mubr.f32.mxu0 0.0
    %1146 = vmatmul.mubr.f32.gmra.mrb[0].mxu0 %v1074
    %v1147 = vpop.f32.mrb[0].mxu0
    %v1148 = vadd.f32 %v1067, %v1147
    %v1149 = vpop.f32.mrb[0].mxu0
    %1150 = vdwg.mxu0
    %s1151 = scalar_lea.vmem %s4, 64
    %v1152 = vld [vmem:[%s1151] sm:$0xff]
    %v1153 = vld [vmem:[%s1151 + $0x8] sm:$0xff]
    %v1154 = vld [vmem:[%s1151 + $0x10] sm:$0xff]
    %v1155 = vld [vmem:[%s1151 + $0x18] sm:$0xff]
    %1156 = vmatprep.subr.mxu0 0.0
    %1157 = vmatpush1.msra.mxu0 %v1152
    %1158 = vmatprep.subr.mxu0 0.0
    %1159 = vmatpush1.msra.mxu0 %v1153
    %1160 = vmatprep.subr.mxu0 0.0
    %1161 = vmatpush1.msra.mxu0 %v1154
    %1162 = vmatprep.subr.mxu0 0.0
    %1163 = vmatpush1.msra.mxu0 %v1155
    %1164 = vmatprep.subr.mxu0 0.0
    %1165 = vmatpush1.msra.mxu0 0.0
    %1166 = vmatprep.subr.mxu0 0.0
    %1167 = vmatpush1.msra.mxu0 0.0
    %1168 = vmatprep.subr.mxu0 0.0
    %1169 = vmatpush1.msra.mxu0 0.0
    %1170 = vmatprep.subr.mxu0 0.0
    %1171 = vmatpush1.msra.mxu0 0.0
    %1172 = vmatprep.subr.mxu0 0.0
    %1173 = vmatpush1.msra.mxu0 0.0
    %1174 = vmatprep.subr.mxu0 0.0
    %1175 = vmatpush1.msra.mxu0 0.0
    %1176 = vmatprep.subr.mxu0 0.0
    %1177 = vmatpush1.msra.mxu0 0.0
    %1178 = vmatprep.subr.mxu0 0.0
    %1179 = vmatpush1.msra.mxu0 0.0
    %1180 = vmatprep.subr.mxu0 0.0
    %1181 = vmatpush1.msra.mxu0 0.0
    %1182 = vmatprep.subr.mxu0 0.0
    %1183 = vmatpush1.msra.mxu0 0.0
    %1184 = vmatprep.subr.mxu0 0.0
    %1185 = vmatpush1.msra.mxu0 0.0
    %1186 = vmatprep.subr.mxu0 0.0
    %1187 = vmatpush1.msra.mxu0 0.0
    %1188 = vmatprep.subr.mxu0 0.0
    %1189 = vmatpush1.msra.mxu0 0.0
    %1190 = vmatprep.subr.mxu0 0.0
    %1191 = vmatpush1.msra.mxu0 0.0
    %1192 = vmatprep.subr.mxu0 0.0
    %1193 = vmatpush1.msra.mxu0 0.0
    %1194 = vmatprep.subr.mxu0 0.0
    %1195 = vmatpush1.msra.mxu0 0.0
    %1196 = vmatprep.subr.mxu0 0.0
    %1197 = vmatpush1.msra.mxu0 0.0
    %1198 = vmatprep.subr.mxu0 0.0
    %1199 = vmatpush1.msra.mxu0 0.0
    %1200 = vmatprep.subr.mxu0 0.0
    %1201 = vmatpush1.msra.mxu0 0.0
    %1202 = vmatprep.subr.mxu0 0.0
    %1203 = vmatpush1.msra.mxu0 0.0
    %1204 = vmatprep.subr.mxu0 0.0
    %1205 = vmatpush1.msra.mxu0 0.0
    %1206 = vmatprep.subr.mxu0 0.0
    %1207 = vmatpush1.msra.mxu0 0.0
    %1208 = vmatprep.subr.mxu0 0.0
    %1209 = vmatpush1.msra.mxu0 0.0
    %1210 = vmatprep.subr.mxu0 0.0
    %1211 = vmatpush1.msra.mxu0 0.0
    %1212 = vmatprep.subr.mxu0 0.0
    %1213 = vmatpush1.msra.mxu0 0.0
    %1214 = vmatprep.subr.mxu0 0.0
    %1215 = vmatpush1.msra.mxu0 0.0
    %1216 = vmatprep.subr.mxu0 0.0
    %1217 = vmatpush1.msra.mxu0 0.0
    %1218 = vmatprep.subr.mxu0 0.0
    %1219 = vmatpush1.msra.mxu0 0.0
    %1220 = vmatprep.mubr.f32.mxu0 0.0
    %1221 = vmatmul.mubr.f32.gmra.mrb[0].mxu0 %v118
    %v1222 = vpop.f32.mrb[0].mxu0
    %v1223 = vadd.f32 0.0, %v1222
    %v1224 = vpop.f32.mrb[0].mxu0
    %1225 = vmatprep.mubr.f32.mxu0 0.0
    %1226 = vmatmul.mubr.f32.gmra.mrb[0].mxu0 %v121
    %v1227 = vpop.f32.mrb[0].mxu0
    %v1228 = vadd.f32 0.0, %v1227
    %v1229 = vpop.f32.mrb[0].mxu0
    %1230 = vdwg.mxu0
    %s1231 = scalar_lea.vmem %s5, 64
    %v1232 = vld [vmem:[%s1231] sm:$0xff]
    %v1233 = vld [vmem:[%s1231 + $0x8] sm:$0xff]
    %v1234 = vld [vmem:[%s1231 + $0x10] sm:$0xff]
    %v1235 = vld [vmem:[%s1231 + $0x18] sm:$0xff]
    %1236 = vmatprep.subr.mxu0 0.0
    %1237 = vmatpush1.msra.mxu0 %v1232
    %1238 = vmatprep.subr.mxu0 0.0
    %1239 = vmatpush1.msra.mxu0 %v1233
    %1240 = vmatprep.subr.mxu0 0.0
    %1241 = vmatpush1.msra.mxu0 %v1234
    %1242 = vmatprep.subr.mxu0 0.0
    %1243 = vmatpush1.msra.mxu0 %v1235
    %1244 = vmatprep.subr.mxu0 0.0
    %1245 = vmatpush1.msra.mxu0 0.0
    %1246 = vmatprep.subr.mxu0 0.0
    %1247 = vmatpush1.msra.mxu0 0.0
    %1248 = vmatprep.subr.mxu0 0.0
    %1249 = vmatpush1.msra.mxu0 0.0
    %1250 = vmatprep.subr.mxu0 0.0
    %1251 = vmatpush1.msra.mxu0 0.0
    %1252 = vmatprep.subr.mxu0 0.0
    %1253 = vmatpush1.msra.mxu0 0.0
    %1254 = vmatprep.subr.mxu0 0.0
    %1255 = vmatpush1.msra.mxu0 0.0
    %1256 = vmatprep.subr.mxu0 0.0
    %1257 = vmatpush1.msra.mxu0 0.0
    %1258 = vmatprep.subr.mxu0 0.0
    %1259 = vmatpush1.msra.mxu0 0.0
    %1260 = vmatprep.subr.mxu0 0.0
    %1261 = vmatpush1.msra.mxu0 0.0
    %1262 = vmatprep.subr.mxu0 0.0
    %1263 = vmatpush1.msra.mxu0 0.0
    %1264 = vmatprep.subr.mxu0 0.0
    %1265 = vmatpush1.msra.mxu0 0.0
    %1266 = vmatprep.subr.mxu0 0.0
    %1267 = vmatpush1.msra.mxu0 0.0
    %1268 = vmatprep.subr.mxu0 0.0
    %1269 = vmatpush1.msra.mxu0 0.0
    %1270 = vmatprep.subr.mxu0 0.0
    %1271 = vmatpush1.msra.mxu0 0.0
    %1272 = vmatprep.subr.mxu0 0.0
    %1273 = vmatpush1.msra.mxu0 0.0
    %1274 = vmatprep.subr.mxu0 0.0
    %1275 = vmatpush1.msra.mxu0 0.0
    %1276 = vmatprep.subr.mxu0 0.0
    %1277 = vmatpush1.msra.mxu0 0.0
    %1278 = vmatprep.subr.mxu0 0.0
    %1279 = vmatpush1.msra.mxu0 0.0
    %1280 = vmatprep.subr.mxu0 0.0
    %1281 = vmatpush1.msra.mxu0 0.0
    %1282 = vmatprep.subr.mxu0 0.0
    %1283 = vmatpush1.msra.mxu0 0.0
    %1284 = vmatprep.subr.mxu0 0.0
    %1285 = vmatpush1.msra.mxu0 0.0
    %1286 = vmatprep.subr.mxu0 0.0
    %1287 = vmatpush1.msra.mxu0 0.0
    %1288 = vmatprep.subr.mxu0 0.0
    %1289 = vmatpush1.msra.mxu0 0.0
    %1290 = vmatprep.subr.mxu0 0.0
    %1291 = vmatpush1.msra.mxu0 0.0
    %1292 = vmatprep.subr.mxu0 0.0
    %1293 = vmatpush1.msra.mxu0 0.0
    %1294 = vmatprep.subr.mxu0 0.0
    %1295 = vmatpush1.msra.mxu0 0.0
    %1296 = vmatprep.subr.mxu0 0.0
    %1297 = vmatpush1.msra.mxu0 0.0
    %1298 = vmatprep.subr.mxu0 0.0
    %1299 = vmatpush1.msra.mxu0 0.0
    %1300 = vmatprep.mubr.f32.mxu0 0.0
    %1301 = vmatmul.mubr.f32.gmra.mrb[0].mxu0 %v118
    %v1302 = vpop.f32.mrb[0].mxu0
    %v1303 = vadd.f32 0.0, %v1302
    %v1304 = vpop.f32.mrb[0].mxu0
    %1305 = vmatprep.mubr.f32.mxu0 0.0
    %1306 = vmatmul.mubr.f32.gmra.mrb[0].mxu0 %v121
    %v1307 = vpop.f32.mrb[0].mxu0
    %v1308 = vadd.f32 0.0, %v1307
    %v1309 = vpop.f32.mrb[0].mxu0
    %1310 = vdwg.mxu0
    %s1311 = scalar_lea.vmem %s6, 64
    %v1312 = vld [vmem:[%s1311] sm:$0xff]
    %v1313 = vld [vmem:[%s1311 + $0x8] sm:$0xff]
    %v1314 = vld [vmem:[%s1311 + $0x10] sm:$0xff]
    %v1315 = vld [vmem:[%s1311 + $0x18] sm:$0xff]
    %1316 = vmatprep.subr.mxu0 0.0
    %1317 = vmatpush1.msra.mxu0 %v1312
    %1318 = vmatprep.subr.mxu0 0.0
    %1319 = vmatpush1.msra.mxu0 %v1313
    %1320 = vmatprep.subr.mxu0 0.0
    %1321 = vmatpush1.msra.mxu0 %v1314
    %1322 = vmatprep.subr.mxu0 0.0
    %1323 = vmatpush1.msra.mxu0 %v1315
    %1324 = vmatprep.subr.mxu0 0.0
    %1325 = vmatpush1.msra.mxu0 0.0
    %1326 = vmatprep.subr.mxu0 0.0
    %1327 = vmatpush1.msra.mxu0 0.0
    %1328 = vmatprep.subr.mxu0 0.0
    %1329 = vmatpush1.msra.mxu0 0.0
    %1330 = vmatprep.subr.mxu0 0.0
    %1331 = vmatpush1.msra.mxu0 0.0
    %1332 = vmatprep.subr.mxu0 0.0
    %1333 = vmatpush1.msra.mxu0 0.0
    %1334 = vmatprep.subr.mxu0 0.0
    %1335 = vmatpush1.msra.mxu0 0.0
    %1336 = vmatprep.subr.mxu0 0.0
    %1337 = vmatpush1.msra.mxu0 0.0
    %1338 = vmatprep.subr.mxu0 0.0
    %1339 = vmatpush1.msra.mxu0 0.0
    %1340 = vmatprep.subr.mxu0 0.0
    %1341 = vmatpush1.msra.mxu0 0.0
    %1342 = vmatprep.subr.mxu0 0.0
    %1343 = vmatpush1.msra.mxu0 0.0
    %1344 = vmatprep.subr.mxu0 0.0
    %1345 = vmatpush1.msra.mxu0 0.0
    %1346 = vmatprep.subr.mxu0 0.0
    %1347 = vmatpush1.msra.mxu0 0.0
    %1348 = vmatprep.subr.mxu0 0.0
    %1349 = vmatpush1.msra.mxu0 0.0
    %1350 = vmatprep.subr.mxu0 0.0
    %1351 = vmatpush1.msra.mxu0 0.0
    %1352 = vmatprep.subr.mxu0 0.0
    %1353 = vmatpush1.msra.mxu0 0.0
    %1354 = vmatprep.subr.mxu0 0.0
    %1355 = vmatpush1.msra.mxu0 0.0
    %1356 = vmatprep.subr.mxu0 0.0
    %1357 = vmatpush1.msra.mxu0 0.0
    %1358 = vmatprep.subr.mxu0 0.0
    %1359 = vmatpush1.msra.mxu0 0.0
    %1360 = vmatprep.subr.mxu0 0.0
    %1361 = vmatpush1.msra.mxu0 0.0
    %1362 = vmatprep.subr.mxu0 0.0
    %1363 = vmatpush1.msra.mxu0 0.0
    %1364 = vmatprep.subr.mxu0 0.0
    %1365 = vmatpush1.msra.mxu0 0.0
    %1366 = vmatprep.subr.mxu0 0.0
    %1367 = vmatpush1.msra.mxu0 0.0
    %1368 = vmatprep.subr.mxu0 0.0
    %1369 = vmatpush1.msra.mxu0 0.0
    %1370 = vmatprep.subr.mxu0 0.0
    %1371 = vmatpush1.msra.mxu0 0.0
    %1372 = vmatprep.subr.mxu0 0.0
    %1373 = vmatpush1.msra.mxu0 0.0
    %1374 = vmatprep.subr.mxu0 0.0
    %1375 = vmatpush1.msra.mxu0 0.0
    %1376 = vmatprep.subr.mxu0 0.0
    %1377 = vmatpush1.msra.mxu0 0.0
    %1378 = vmatprep.subr.mxu0 0.0
    %1379 = vmatpush1.msra.mxu0 0.0
    %1380 = vmatprep.mubr.f32.mxu0 0.0
    %1381 = vmatmul.mubr.f32.gmra.mrb[0].mxu0 %v118
    %v1382 = vpop.f32.mrb[0].mxu0
    %v1383 = vadd.f32 0.0, %v1382
    %v1384 = vpop.f32.mrb[0].mxu0
    %1385 = vmatprep.mubr.f32.mxu0 0.0
    %1386 = vmatmul.mubr.f32.gmra.mrb[0].mxu0 %v121
    %v1387 = vpop.f32.mrb[0].mxu0
    %v1388 = vadd.f32 0.0, %v1387
    %v1389 = vpop.f32.mrb[0].mxu0
    %1390 = vdwg.mxu0
    %v1392 = vsel %vm356, %v1223, 0
    %v1395 = vsel %vm356, %v1228, 0
    %v1398 = vsel %vm356, %v1303, 0
    %v1401 = vsel %vm356, %v1308, 0
    %1403 = vmatprep.subr.mxu0 0.0
    %1404 = vmatpush1.xpose.msra.mxu0 %v1398
    %1405 = vmatprep.subr.mxu0 0.0
    %1406 = vmatpush1.xpose.msra.mxu0 %v1401
    %1407 = vmatprep.subr.mxu0 0.0
    %1408 = vmatpush1.xpose.msra.mxu0 0.0
    %1409 = vmatprep.subr.mxu0 0.0
    %1410 = vmatpush1.xpose.msra.mxu0 0.0
    %1411 = vmatprep.subr.mxu0 0.0
    %1412 = vmatpush1.xpose.msra.mxu0 0.0
    %1413 = vmatprep.subr.mxu0 0.0
    %1414 = vmatpush1.xpose.msra.mxu0 0.0
    %1415 = vmatprep.subr.mxu0 0.0
    %1416 = vmatpush1.xpose.msra.mxu0 0.0
    %1417 = vmatprep.subr.mxu0 0.0
    %1418 = vmatpush1.xpose.msra.mxu0 0.0
    %1419 = vmatprep.subr.mxu0 0.0
    %1420 = vmatpush1.xpose.msra.mxu0 0.0
    %1421 = vmatprep.subr.mxu0 0.0
    %1422 = vmatpush1.xpose.msra.mxu0 0.0
    %1423 = vmatprep.subr.mxu0 0.0
    %1424 = vmatpush1.xpose.msra.mxu0 0.0
    %1425 = vmatprep.subr.mxu0 0.0
    %1426 = vmatpush1.xpose.msra.mxu0 0.0
    %1427 = vmatprep.subr.mxu0 0.0
    %1428 = vmatpush1.xpose.msra.mxu0 0.0
    %1429 = vmatprep.subr.mxu0 0.0
    %1430 = vmatpush1.xpose.msra.mxu0 0.0
    %1431 = vmatprep.subr.mxu0 0.0
    %1432 = vmatpush1.xpose.msra.mxu0 0.0
    %1433 = vmatprep.subr.mxu0 0.0
    %1434 = vmatpush1.xpose.msra.mxu0 0.0
    %1435 = vmatprep.subr.mxu0 0.0
    %1436 = vmatpush1.xpose.msra.mxu0 0.0
    %1437 = vmatprep.subr.mxu0 0.0
    %1438 = vmatpush1.xpose.msra.mxu0 0.0
    %1439 = vmatprep.subr.mxu0 0.0
    %1440 = vmatpush1.xpose.msra.mxu0 0.0
    %1441 = vmatprep.subr.mxu0 0.0
    %1442 = vmatpush1.xpose.msra.mxu0 0.0
    %1443 = vmatprep.subr.mxu0 0.0
    %1444 = vmatpush1.xpose.msra.mxu0 0.0
    %1445 = vmatprep.subr.mxu0 0.0
    %1446 = vmatpush1.xpose.msra.mxu0 0.0
    %1447 = vmatprep.subr.mxu0 0.0
    %1448 = vmatpush1.xpose.msra.mxu0 0.0
    %1449 = vmatprep.subr.mxu0 0.0
    %1450 = vmatpush1.xpose.msra.mxu0 0.0
    %1451 = vmatprep.subr.mxu0 0.0
    %1452 = vmatpush1.xpose.msra.mxu0 0.0
    %1453 = vmatprep.subr.mxu0 0.0
    %1454 = vmatpush1.xpose.msra.mxu0 0.0
    %1455 = vmatprep.subr.mxu0 0.0
    %1456 = vmatpush1.xpose.msra.mxu0 0.0
    %1457 = vmatprep.subr.mxu0 0.0
    %1458 = vmatpush1.xpose.msra.mxu0 0.0
    %1459 = vmatprep.subr.mxu0 0.0
    %1460 = vmatpush1.xpose.msra.mxu0 0.0
    %1461 = vmatprep.subr.mxu0 0.0
    %1462 = vmatpush1.xpose.msra.mxu0 0.0
    %1463 = vmatprep.subr.mxu0 0.0
    %1464 = vmatpush1.xpose.msra.mxu0 0.0
    %1465 = vmatprep.subr.mxu0 0.0
    %1466 = vmatpush1.xpose.msra.mxu0 0.0
    %1467 = vmatprep.mubr.f32.mxu0 0.0
    %1468 = vmatmul.mubr.f32.gmra.mrb[0].mxu0 %v1392
    %v1469 = vpop.f32.mrb[0].mxu0
    %v1470 = vadd.f32 0.0, %v1469
    %v1471 = vpop.f32.mrb[0].mxu0
    %1472 = vmatprep.mubr.f32.mxu0 0.0
    %1473 = vmatmul.mubr.f32.gmra.mrb[0].mxu0 %v1395
    %v1474 = vpop.f32.mrb[0].mxu0
    %v1475 = vadd.f32 0.0, %v1474
    %v1476 = vpop.f32.mrb[0].mxu0
    %1477 = vdwg.mxu0
    %v1478 = vmul.f32 %v1470, 0.35355338
    %v1479 = vmul.f32 %v1475, 0.35355338
    %v1480 = vadd.f32 %v1478, %v65
    %v1481 = vadd.f32 %v1479, %v66
    %v1482 = vsel %vm448, %v1480, -inf
    %1483 = vmax.xlane.f32.xlu0 %v1482
    %v1484 = vpop.xlane.xlu0 %1483
    %v1485 = vsel %vm448, %v1481, -inf
    %1486 = vmax.xlane.f32.xlu0 %v1485
    %v1487 = vpop.xlane.xlu0 %1486
    %v1488 = vsub.f32 %v1480, %v1484
    %v1489 = vsub.f32 %v1481, %v1487
    %v1490 = vmul.f32 %v1488, 1.442695
    %v1491 = vpow.pop %v1490
    %v1492 = vmul.f32 %v1489, 1.442695
    %v1493 = vpow.pop %v1492
    %v1494 = vsel %vm448, %v1491, 0.0
    %1495 = vadd.xlane.f32.xlu0 %v1494
    %v1496 = vpop.xlane.xlu0 %1495
    %v1497 = vsel %vm448, %v1493, 0.0
    %1498 = vadd.xlane.f32.xlu0 %v1497
    %v1499 = vpop.xlane.xlu0 %1498
    %v1500 = vrcp.pop %v1496
    %v1501 = vrcp.pop %v1499
    %v1502 = vmul.f32 %v1491, %v1500
    %v1503 = vmul.f32 %v1493, %v1501
    %v1505 = vsel %vm448, %v1502, 0
    %v1508 = vsel %vm448, %v1503, 0
    %1510 = vmatprep.subr.mxu0 0.0
    %1511 = vmatpush1.msra.mxu0 %v1383
    %1512 = vmatprep.subr.mxu0 0.0
    %1513 = vmatpush1.msra.mxu0 %v1388
    %1514 = vmatprep.subr.mxu0 0.0
    %1515 = vmatpush1.msra.mxu0 0.0
    %1516 = vmatprep.subr.mxu0 0.0
    %1517 = vmatpush1.msra.mxu0 0.0
    %1518 = vmatprep.subr.mxu0 0.0
    %1519 = vmatpush1.msra.mxu0 0.0
    %1520 = vmatprep.subr.mxu0 0.0
    %1521 = vmatpush1.msra.mxu0 0.0
    %1522 = vmatprep.subr.mxu0 0.0
    %1523 = vmatpush1.msra.mxu0 0.0
    %1524 = vmatprep.subr.mxu0 0.0
    %1525 = vmatpush1.msra.mxu0 0.0
    %1526 = vmatprep.subr.mxu0 0.0
    %1527 = vmatpush1.msra.mxu0 0.0
    %1528 = vmatprep.subr.mxu0 0.0
    %1529 = vmatpush1.msra.mxu0 0.0
    %1530 = vmatprep.subr.mxu0 0.0
    %1531 = vmatpush1.msra.mxu0 0.0
    %1532 = vmatprep.subr.mxu0 0.0
    %1533 = vmatpush1.msra.mxu0 0.0
    %1534 = vmatprep.subr.mxu0 0.0
    %1535 = vmatpush1.msra.mxu0 0.0
    %1536 = vmatprep.subr.mxu0 0.0
    %1537 = vmatpush1.msra.mxu0 0.0
    %1538 = vmatprep.subr.mxu0 0.0
    %1539 = vmatpush1.msra.mxu0 0.0
    %1540 = vmatprep.subr.mxu0 0.0
    %1541 = vmatpush1.msra.mxu0 0.0
    %1542 = vmatprep.subr.mxu0 0.0
    %1543 = vmatpush1.msra.mxu0 0.0
    %1544 = vmatprep.subr.mxu0 0.0
    %1545 = vmatpush1.msra.mxu0 0.0
    %1546 = vmatprep.subr.mxu0 0.0
    %1547 = vmatpush1.msra.mxu0 0.0
    %1548 = vmatprep.subr.mxu0 0.0
    %1549 = vmatpush1.msra.mxu0 0.0
    %1550 = vmatprep.subr.mxu0 0.0
    %1551 = vmatpush1.msra.mxu0 0.0
    %1552 = vmatprep.subr.mxu0 0.0
    %1553 = vmatpush1.msra.mxu0 0.0
    %1554 = vmatprep.subr.mxu0 0.0
    %1555 = vmatpush1.msra.mxu0 0.0
    %1556 = vmatprep.subr.mxu0 0.0
    %1557 = vmatpush1.msra.mxu0 0.0
    %1558 = vmatprep.subr.mxu0 0.0
    %1559 = vmatpush1.msra.mxu0 0.0
    %1560 = vmatprep.subr.mxu0 0.0
    %1561 = vmatpush1.msra.mxu0 0.0
    %1562 = vmatprep.subr.mxu0 0.0
    %1563 = vmatpush1.msra.mxu0 0.0
    %1564 = vmatprep.subr.mxu0 0.0
    %1565 = vmatpush1.msra.mxu0 0.0
    %1566 = vmatprep.subr.mxu0 0.0
    %1567 = vmatpush1.msra.mxu0 0.0
    %1568 = vmatprep.subr.mxu0 0.0
    %1569 = vmatpush1.msra.mxu0 0.0
    %1570 = vmatprep.subr.mxu0 0.0
    %1571 = vmatpush1.msra.mxu0 0.0
    %1572 = vmatprep.subr.mxu0 0.0
    %1573 = vmatpush1.msra.mxu0 0.0
    %1574 = vmatprep.mubr.f32.mxu0 0.0
    %1575 = vmatmul.mubr.f32.gmra.mrb[0].mxu0 %v1505
    %v1576 = vpop.f32.mrb[0].mxu0
    %v1577 = vadd.f32 0.0, %v1576
    %v1578 = vpop.f32.mrb[0].mxu0
    %1579 = vmatprep.mubr.f32.mxu0 0.0
    %1580 = vmatmul.mubr.f32.gmra.mrb[0].mxu0 %v1508
    %v1581 = vpop.f32.mrb[0].mxu0
    %v1582 = vadd.f32 0.0, %v1581
    %v1583 = vpop.f32.mrb[0].mxu0
    %1584 = vdwg.mxu0
    %s1585 = scalar_lea.vmem %s7, 16
    %v1586 = vld [vmem:[%s1585] sm:$0xff]
    %v1588 = vsel %vm356, %v1577, 0
    %v1591 = vsel %vm356, %v1582, 0
    %1593 = vmatprep.subr.mxu0 0.0
    %1594 = vmatpush1.msra.mxu0 %v1586
    %1595 = vmatprep.subr.mxu0 0.0
    %1596 = vmatpush1.msra.mxu0 0.0
    %1597 = vmatprep.subr.mxu0 0.0
    %1598 = vmatpush1.msra.mxu0 0.0
    %1599 = vmatprep.subr.mxu0 0.0
    %1600 = vmatpush1.msra.mxu0 0.0
    %1601 = vmatprep.subr.mxu0 0.0
    %1602 = vmatpush1.msra.mxu0 0.0
    %1603 = vmatprep.subr.mxu0 0.0
    %1604 = vmatpush1.msra.mxu0 0.0
    %1605 = vmatprep.subr.mxu0 0.0
    %1606 = vmatpush1.msra.mxu0 0.0
    %1607 = vmatprep.subr.mxu0 0.0
    %1608 = vmatpush1.msra.mxu0 0.0
    %1609 = vmatprep.subr.mxu0 0.0
    %1610 = vmatpush1.msra.mxu0 0.0
    %1611 = vmatprep.subr.mxu0 0.0
    %1612 = vmatpush1.msra.mxu0 0.0
    %1613 = vmatprep.subr.mxu0 0.0
    %1614 = vmatpush1.msra.mxu0 0.0
    %1615 = vmatprep.subr.mxu0 0.0
    %1616 = vmatpush1.msra.mxu0 0.0
    %1617 = vmatprep.subr.mxu0 0.0
    %1618 = vmatpush1.msra.mxu0 0.0
    %1619 = vmatprep.subr.mxu0 0.0
    %1620 = vmatpush1.msra.mxu0 0.0
    %1621 = vmatprep.subr.mxu0 0.0
    %1622 = vmatpush1.msra.mxu0 0.0
    %1623 = vmatprep.subr.mxu0 0.0
    %1624 = vmatpush1.msra.mxu0 0.0
    %1625 = vmatprep.subr.mxu0 0.0
    %1626 = vmatpush1.msra.mxu0 0.0
    %1627 = vmatprep.subr.mxu0 0.0
    %1628 = vmatpush1.msra.mxu0 0.0
    %1629 = vmatprep.subr.mxu0 0.0
    %1630 = vmatpush1.msra.mxu0 0.0
    %1631 = vmatprep.subr.mxu0 0.0
    %1632 = vmatpush1.msra.mxu0 0.0
    %1633 = vmatprep.subr.mxu0 0.0
    %1634 = vmatpush1.msra.mxu0 0.0
    %1635 = vmatprep.subr.mxu0 0.0
    %1636 = vmatpush1.msra.mxu0 0.0
    %1637 = vmatprep.subr.mxu0 0.0
    %1638 = vmatpush1.msra.mxu0 0.0
    %1639 = vmatprep.subr.mxu0 0.0
    %1640 = vmatpush1.msra.mxu0 0.0
    %1641 = vmatprep.subr.mxu0 0.0
    %1642 = vmatpush1.msra.mxu0 0.0
    %1643 = vmatprep.subr.mxu0 0.0
    %1644 = vmatpush1.msra.mxu0 0.0
    %1645 = vmatprep.subr.mxu0 0.0
    %1646 = vmatpush1.msra.mxu0 0.0
    %1647 = vmatprep.subr.mxu0 0.0
    %1648 = vmatpush1.msra.mxu0 0.0
    %1649 = vmatprep.subr.mxu0 0.0
    %1650 = vmatpush1.msra.mxu0 0.0
    %1651 = vmatprep.subr.mxu0 0.0
    %1652 = vmatpush1.msra.mxu0 0.0
    %1653 = vmatprep.subr.mxu0 0.0
    %1654 = vmatpush1.msra.mxu0 0.0
    %1655 = vmatprep.subr.mxu0 0.0
    %1656 = vmatpush1.msra.mxu0 0.0
    %1657 = vmatprep.mubr.f32.mxu0 0.0
    %1658 = vmatmul.mubr.f32.gmra.mrb[0].mxu0 %v1588
    %v1659 = vpop.f32.mrb[0].mxu0
    %v1660 = vadd.f32 0.0, %v1659
    %v1661 = vpop.f32.mrb[0].mxu0
    %1662 = vmatprep.mubr.f32.mxu0 0.0
    %1663 = vmatmul.mubr.f32.gmra.mrb[0].mxu0 %v1591
    %v1664 = vpop.f32.mrb[0].mxu0
    %v1665 = vadd.f32 0.0, %v1664
    %v1666 = vpop.f32.mrb[0].mxu0
    %1667 = vdwg.mxu0
    %v1668 = vadd.f32 %v1143, %v1660
    %v1669 = vadd.f32 %v1148, %v1665
    %s1670 = scalar_lea.vmem %s4, 96
    %v1671 = vld [vmem:[%s1670] sm:$0xff]
    %v1672 = vld [vmem:[%s1670 + $0x8] sm:$0xff]
    %v1673 = vld [vmem:[%s1670 + $0x10] sm:$0xff]
    %v1674 = vld [vmem:[%s1670 + $0x18] sm:$0xff]
    %1675 = vmatprep.subr.mxu0 0.0
    %1676 = vmatpush1.msra.mxu0 %v1671
    %1677 = vmatprep.subr.mxu0 0.0
    %1678 = vmatpush1.msra.mxu0 %v1672
    %1679 = vmatprep.subr.mxu0 0.0
    %1680 = vmatpush1.msra.mxu0 %v1673
    %1681 = vmatprep.subr.mxu0 0.0
    %1682 = vmatpush1.msra.mxu0 %v1674
    %1683 = vmatprep.subr.mxu0 0.0
    %1684 = vmatpush1.msra.mxu0 0.0
    %1685 = vmatprep.subr.mxu0 0.0
    %1686 = vmatpush1.msra.mxu0 0.0
    %1687 = vmatprep.subr.mxu0 0.0
    %1688 = vmatpush1.msra.mxu0 0.0
    %1689 = vmatprep.subr.mxu0 0.0
    %1690 = vmatpush1.msra.mxu0 0.0
    %1691 = vmatprep.subr.mxu0 0.0
    %1692 = vmatpush1.msra.mxu0 0.0
    %1693 = vmatprep.subr.mxu0 0.0
    %1694 = vmatpush1.msra.mxu0 0.0
    %1695 = vmatprep.subr.mxu0 0.0
    %1696 = vmatpush1.msra.mxu0 0.0
    %1697 = vmatprep.subr.mxu0 0.0
    %1698 = vmatpush1.msra.mxu0 0.0
    %1699 = vmatprep.subr.mxu0 0.0
    %1700 = vmatpush1.msra.mxu0 0.0
    %1701 = vmatprep.subr.mxu0 0.0
    %1702 = vmatpush1.msra.mxu0 0.0
    %1703 = vmatprep.subr.mxu0 0.0
    %1704 = vmatpush1.msra.mxu0 0.0
    %1705 = vmatprep.subr.mxu0 0.0
    %1706 = vmatpush1.msra.mxu0 0.0
    %1707 = vmatprep.subr.mxu0 0.0
    %1708 = vmatpush1.msra.mxu0 0.0
    %1709 = vmatprep.subr.mxu0 0.0
    %1710 = vmatpush1.msra.mxu0 0.0
    %1711 = vmatprep.subr.mxu0 0.0
    %1712 = vmatpush1.msra.mxu0 0.0
    %1713 = vmatprep.subr.mxu0 0.0
    %1714 = vmatpush1.msra.mxu0 0.0
    %1715 = vmatprep.subr.mxu0 0.0
    %1716 = vmatpush1.msra.mxu0 0.0
    %1717 = vmatprep.subr.mxu0 0.0
    %1718 = vmatpush1.msra.mxu0 0.0
    %1719 = vmatprep.subr.mxu0 0.0
    %1720 = vmatpush1.msra.mxu0 0.0
    %1721 = vmatprep.subr.mxu0 0.0
    %1722 = vmatpush1.msra.mxu0 0.0
    %1723 = vmatprep.subr.mxu0 0.0
    %1724 = vmatpush1.msra.mxu0 0.0
    %1725 = vmatprep.subr.mxu0 0.0
    %1726 = vmatpush1.msra.mxu0 0.0
    %1727 = vmatprep.subr.mxu0 0.0
    %1728 = vmatpush1.msra.mxu0 0.0
    %1729 = vmatprep.subr.mxu0 0.0
    %1730 = vmatpush1.msra.mxu0 0.0
    %1731 = vmatprep.subr.mxu0 0.0
    %1732 = vmatpush1.msra.mxu0 0.0
    %1733 = vmatprep.subr.mxu0 0.0
    %1734 = vmatpush1.msra.mxu0 0.0
    %1735 = vmatprep.subr.mxu0 0.0
    %1736 = vmatpush1.msra.mxu0 0.0
    %1737 = vmatprep.subr.mxu0 0.0
    %1738 = vmatpush1.msra.mxu0 0.0
    %1739 = vmatprep.mubr.f32.mxu0 0.0
    %1740 = vmatmul.mubr.f32.gmra.mrb[0].mxu0 %v118
    %v1741 = vpop.f32.mrb[0].mxu0
    %v1742 = vadd.f32 0.0, %v1741
    %v1743 = vpop.f32.mrb[0].mxu0
    %1744 = vmatprep.mubr.f32.mxu0 0.0
    %1745 = vmatmul.mubr.f32.gmra.mrb[0].mxu0 %v121
    %v1746 = vpop.f32.mrb[0].mxu0
    %v1747 = vadd.f32 0.0, %v1746
    %v1748 = vpop.f32.mrb[0].mxu0
    %1749 = vdwg.mxu0
    %s1750 = scalar_lea.vmem %s5, 96
    %v1751 = vld [vmem:[%s1750] sm:$0xff]
    %v1752 = vld [vmem:[%s1750 + $0x8] sm:$0xff]
    %v1753 = vld [vmem:[%s1750 + $0x10] sm:$0xff]
    %v1754 = vld [vmem:[%s1750 + $0x18] sm:$0xff]
    %1755 = vmatprep.subr.mxu0 0.0
    %1756 = vmatpush1.msra.mxu0 %v1751
    %1757 = vmatprep.subr.mxu0 0.0
    %1758 = vmatpush1.msra.mxu0 %v1752
    %1759 = vmatprep.subr.mxu0 0.0
    %1760 = vmatpush1.msra.mxu0 %v1753
    %1761 = vmatprep.subr.mxu0 0.0
    %1762 = vmatpush1.msra.mxu0 %v1754
    %1763 = vmatprep.subr.mxu0 0.0
    %1764 = vmatpush1.msra.mxu0 0.0
    %1765 = vmatprep.subr.mxu0 0.0
    %1766 = vmatpush1.msra.mxu0 0.0
    %1767 = vmatprep.subr.mxu0 0.0
    %1768 = vmatpush1.msra.mxu0 0.0
    %1769 = vmatprep.subr.mxu0 0.0
    %1770 = vmatpush1.msra.mxu0 0.0
    %1771 = vmatprep.subr.mxu0 0.0
    %1772 = vmatpush1.msra.mxu0 0.0
    %1773 = vmatprep.subr.mxu0 0.0
    %1774 = vmatpush1.msra.mxu0 0.0
    %1775 = vmatprep.subr.mxu0 0.0
    %1776 = vmatpush1.msra.mxu0 0.0
    %1777 = vmatprep.subr.mxu0 0.0
    %1778 = vmatpush1.msra.mxu0 0.0
    %1779 = vmatprep.subr.mxu0 0.0
    %1780 = vmatpush1.msra.mxu0 0.0
    %1781 = vmatprep.subr.mxu0 0.0
    %1782 = vmatpush1.msra.mxu0 0.0
    %1783 = vmatprep.subr.mxu0 0.0
    %1784 = vmatpush1.msra.mxu0 0.0
    %1785 = vmatprep.subr.mxu0 0.0
    %1786 = vmatpush1.msra.mxu0 0.0
    %1787 = vmatprep.subr.mxu0 0.0
    %1788 = vmatpush1.msra.mxu0 0.0
    %1789 = vmatprep.subr.mxu0 0.0
    %1790 = vmatpush1.msra.mxu0 0.0
    %1791 = vmatprep.subr.mxu0 0.0
    %1792 = vmatpush1.msra.mxu0 0.0
    %1793 = vmatprep.subr.mxu0 0.0
    %1794 = vmatpush1.msra.mxu0 0.0
    %1795 = vmatprep.subr.mxu0 0.0
    %1796 = vmatpush1.msra.mxu0 0.0
    %1797 = vmatprep.subr.mxu0 0.0
    %1798 = vmatpush1.msra.mxu0 0.0
    %1799 = vmatprep.subr.mxu0 0.0
    %1800 = vmatpush1.msra.mxu0 0.0
    %1801 = vmatprep.subr.mxu0 0.0
    %1802 = vmatpush1.msra.mxu0 0.0
    %1803 = vmatprep.subr.mxu0 0.0
    %1804 = vmatpush1.msra.mxu0 0.0
    %1805 = vmatprep.subr.mxu0 0.0
    %1806 = vmatpush1.msra.mxu0 0.0
    %1807 = vmatprep.subr.mxu0 0.0
    %1808 = vmatpush1.msra.mxu0 0.0
    %1809 = vmatprep.subr.mxu0 0.0
    %1810 = vmatpush1.msra.mxu0 0.0
    %1811 = vmatprep.subr.mxu0 0.0
    %1812 = vmatpush1.msra.mxu0 0.0
    %1813 = vmatprep.subr.mxu0 0.0
    %1814 = vmatpush1.msra.mxu0 0.0
    %1815 = vmatprep.subr.mxu0 0.0
    %1816 = vmatpush1.msra.mxu0 0.0
    %1817 = vmatprep.subr.mxu0 0.0
    %1818 = vmatpush1.msra.mxu0 0.0
    %1819 = vmatprep.mubr.f32.mxu0 0.0
    %1820 = vmatmul.mubr.f32.gmra.mrb[0].mxu0 %v118
    %v1821 = vpop.f32.mrb[0].mxu0
    %v1822 = vadd.f32 0.0, %v1821
    %v1823 = vpop.f32.mrb[0].mxu0
    %1824 = vmatprep.mubr.f32.mxu0 0.0
    %1825 = vmatmul.mubr.f32.gmra.mrb[0].mxu0 %v121
    %v1826 = vpop.f32.mrb[0].mxu0
    %v1827 = vadd.f32 0.0, %v1826
    %v1828 = vpop.f32.mrb[0].mxu0
    %1829 = vdwg.mxu0
    %s1830 = scalar_lea.vmem %s6, 96
    %v1831 = vld [vmem:[%s1830] sm:$0xff]
    %v1832 = vld [vmem:[%s1830 + $0x8] sm:$0xff]
    %v1833 = vld [vmem:[%s1830 + $0x10] sm:$0xff]
    %v1834 = vld [vmem:[%s1830 + $0x18] sm:$0xff]
    %1835 = vmatprep.subr.mxu0 0.0
    %1836 = vmatpush1.msra.mxu0 %v1831
    %1837 = vmatprep.subr.mxu0 0.0
    %1838 = vmatpush1.msra.mxu0 %v1832
    %1839 = vmatprep.subr.mxu0 0.0
    %1840 = vmatpush1.msra.mxu0 %v1833
    %1841 = vmatprep.subr.mxu0 0.0
    %1842 = vmatpush1.msra.mxu0 %v1834
    %1843 = vmatprep.subr.mxu0 0.0
    %1844 = vmatpush1.msra.mxu0 0.0
    %1845 = vmatprep.subr.mxu0 0.0
    %1846 = vmatpush1.msra.mxu0 0.0
    %1847 = vmatprep.subr.mxu0 0.0
    %1848 = vmatpush1.msra.mxu0 0.0
    %1849 = vmatprep.subr.mxu0 0.0
    %1850 = vmatpush1.msra.mxu0 0.0
    %1851 = vmatprep.subr.mxu0 0.0
    %1852 = vmatpush1.msra.mxu0 0.0
    %1853 = vmatprep.subr.mxu0 0.0
    %1854 = vmatpush1.msra.mxu0 0.0
    %1855 = vmatprep.subr.mxu0 0.0
    %1856 = vmatpush1.msra.mxu0 0.0
    %1857 = vmatprep.subr.mxu0 0.0
    %1858 = vmatpush1.msra.mxu0 0.0
    %1859 = vmatprep.subr.mxu0 0.0
    %1860 = vmatpush1.msra.mxu0 0.0
    %1861 = vmatprep.subr.mxu0 0.0
    %1862 = vmatpush1.msra.mxu0 0.0
    %1863 = vmatprep.subr.mxu0 0.0
    %1864 = vmatpush1.msra.mxu0 0.0
    %1865 = vmatprep.subr.mxu0 0.0
    %1866 = vmatpush1.msra.mxu0 0.0
    %1867 = vmatprep.subr.mxu0 0.0
    %1868 = vmatpush1.msra.mxu0 0.0
    %1869 = vmatprep.subr.mxu0 0.0
    %1870 = vmatpush1.msra.mxu0 0.0
    %1871 = vmatprep.subr.mxu0 0.0
    %1872 = vmatpush1.msra.mxu0 0.0
    %1873 = vmatprep.subr.mxu0 0.0
    %1874 = vmatpush1.msra.mxu0 0.0
    %1875 = vmatprep.subr.mxu0 0.0
    %1876 = vmatpush1.msra.mxu0 0.0
    %1877 = vmatprep.subr.mxu0 0.0
    %1878 = vmatpush1.msra.mxu0 0.0
    %1879 = vmatprep.subr.mxu0 0.0
    %1880 = vmatpush1.msra.mxu0 0.0
    %1881 = vmatprep.subr.mxu0 0.0
    %1882 = vmatpush1.msra.mxu0 0.0
    %1883 = vmatprep.subr.mxu0 0.0
    %1884 = vmatpush1.msra.mxu0 0.0
    %1885 = vmatprep.subr.mxu0 0.0
    %1886 = vmatpush1.msra.mxu0 0.0
    %1887 = vmatprep.subr.mxu0 0.0
    %1888 = vmatpush1.msra.mxu0 0.0
    %1889 = vmatprep.subr.mxu0 0.0
    %1890 = vmatpush1.msra.mxu0 0.0
    %1891 = vmatprep.subr.mxu0 0.0
    %1892 = vmatpush1.msra.mxu0 0.0
    %1893 = vmatprep.subr.mxu0 0.0
    %1894 = vmatpush1.msra.mxu0 0.0
    %1895 = vmatprep.subr.mxu0 0.0
    %1896 = vmatpush1.msra.mxu0 0.0
    %1897 = vmatprep.subr.mxu0 0.0
    %1898 = vmatpush1.msra.mxu0 0.0
    %1899 = vmatprep.mubr.f32.mxu0 0.0
    %1900 = vmatmul.mubr.f32.gmra.mrb[0].mxu0 %v118
    %v1901 = vpop.f32.mrb[0].mxu0
    %v1902 = vadd.f32 0.0, %v1901
    %v1903 = vpop.f32.mrb[0].mxu0
    %1904 = vmatprep.mubr.f32.mxu0 0.0
    %1905 = vmatmul.mubr.f32.gmra.mrb[0].mxu0 %v121
    %v1906 = vpop.f32.mrb[0].mxu0
    %v1907 = vadd.f32 0.0, %v1906
    %v1908 = vpop.f32.mrb[0].mxu0
    %1909 = vdwg.mxu0
    %v1911 = vsel %vm356, %v1742, 0
    %v1914 = vsel %vm356, %v1747, 0
    %v1917 = vsel %vm356, %v1822, 0
    %v1920 = vsel %vm356, %v1827, 0
    %1922 = vmatprep.subr.mxu0 0.0
    %1923 = vmatpush1.xpose.msra.mxu0 %v1917
    %1924 = vmatprep.subr.mxu0 0.0
    %1925 = vmatpush1.xpose.msra.mxu0 %v1920
    %1926 = vmatprep.subr.mxu0 0.0
    %1927 = vmatpush1.xpose.msra.mxu0 0.0
    %1928 = vmatprep.subr.mxu0 0.0
    %1929 = vmatpush1.xpose.msra.mxu0 0.0
    %1930 = vmatprep.subr.mxu0 0.0
    %1931 = vmatpush1.xpose.msra.mxu0 0.0
    %1932 = vmatprep.subr.mxu0 0.0
    %1933 = vmatpush1.xpose.msra.mxu0 0.0
    %1934 = vmatprep.subr.mxu0 0.0
    %1935 = vmatpush1.xpose.msra.mxu0 0.0
    %1936 = vmatprep.subr.mxu0 0.0
    %1937 = vmatpush1.xpose.msra.mxu0 0.0
    %1938 = vmatprep.subr.mxu0 0.0
    %1939 = vmatpush1.xpose.msra.mxu0 0.0
    %1940 = vmatprep.subr.mxu0 0.0
    %1941 = vmatpush1.xpose.msra.mxu0 0.0
    %1942 = vmatprep.subr.mxu0 0.0
    %1943 = vmatpush1.xpose.msra.mxu0 0.0
    %1944 = vmatprep.subr.mxu0 0.0
    %1945 = vmatpush1.xpose.msra.mxu0 0.0
    %1946 = vmatprep.subr.mxu0 0.0
    %1947 = vmatpush1.xpose.msra.mxu0 0.0
    %1948 = vmatprep.subr.mxu0 0.0
    %1949 = vmatpush1.xpose.msra.mxu0 0.0
    %1950 = vmatprep.subr.mxu0 0.0
    %1951 = vmatpush1.xpose.msra.mxu0 0.0
    %1952 = vmatprep.subr.mxu0 0.0
    %1953 = vmatpush1.xpose.msra.mxu0 0.0
    %1954 = vmatprep.subr.mxu0 0.0
    %1955 = vmatpush1.xpose.msra.mxu0 0.0
    %1956 = vmatprep.subr.mxu0 0.0
    %1957 = vmatpush1.xpose.msra.mxu0 0.0
    %1958 = vmatprep.subr.mxu0 0.0
    %1959 = vmatpush1.xpose.msra.mxu0 0.0
    %1960 = vmatprep.subr.mxu0 0.0
    %1961 = vmatpush1.xpose.msra.mxu0 0.0
    %1962 = vmatprep.subr.mxu0 0.0
    %1963 = vmatpush1.xpose.msra.mxu0 0.0
    %1964 = vmatprep.subr.mxu0 0.0
    %1965 = vmatpush1.xpose.msra.mxu0 0.0
    %1966 = vmatprep.subr.mxu0 0.0
    %1967 = vmatpush1.xpose.msra.mxu0 0.0
    %1968 = vmatprep.subr.mxu0 0.0
    %1969 = vmatpush1.xpose.msra.mxu0 0.0
    %1970 = vmatprep.subr.mxu0 0.0
    %1971 = vmatpush1.xpose.msra.mxu0 0.0
    %1972 = vmatprep.subr.mxu0 0.0
    %1973 = vmatpush1.xpose.msra.mxu0 0.0
    %1974 = vmatprep.subr.mxu0 0.0
    %1975 = vmatpush1.xpose.msra.mxu0 0.0
    %1976 = vmatprep.subr.mxu0 0.0
    %1977 = vmatpush1.xpose.msra.mxu0 0.0
    %1978 = vmatprep.subr.mxu0 0.0
    %1979 = vmatpush1.xpose.msra.mxu0 0.0
    %1980 = vmatprep.subr.mxu0 0.0
    %1981 = vmatpush1.xpose.msra.mxu0 0.0
    %1982 = vmatprep.subr.mxu0 0.0
    %1983 = vmatpush1.xpose.msra.mxu0 0.0
    %1984 = vmatprep.subr.mxu0 0.0
    %1985 = vmatpush1.xpose.msra.mxu0 0.0
    %1986 = vmatprep.mubr.f32.mxu0 0.0
    %1987 = vmatmul.mubr.f32.gmra.mrb[0].mxu0 %v1911
    %v1988 = vpop.f32.mrb[0].mxu0
    %v1989 = vadd.f32 0.0, %v1988
    %v1990 = vpop.f32.mrb[0].mxu0
    %1991 = vmatprep.mubr.f32.mxu0 0.0
    %1992 = vmatmul.mubr.f32.gmra.mrb[0].mxu0 %v1914
    %v1993 = vpop.f32.mrb[0].mxu0
    %v1994 = vadd.f32 0.0, %v1993
    %v1995 = vpop.f32.mrb[0].mxu0
    %1996 = vdwg.mxu0
    %v1997 = vmul.f32 %v1989, 0.35355338
    %v1998 = vmul.f32 %v1994, 0.35355338
    %v1999 = vadd.f32 %v1997, %v65
    %v2000 = vadd.f32 %v1998, %v66
    %v2001 = vsel %vm448, %v1999, -inf
    %2002 = vmax.xlane.f32.xlu0 %v2001
    %v2003 = vpop.xlane.xlu0 %2002
    %v2004 = vsel %vm448, %v2000, -inf
    %2005 = vmax.xlane.f32.xlu0 %v2004
    %v2006 = vpop.xlane.xlu0 %2005
    %v2007 = vsub.f32 %v1999, %v2003
    %v2008 = vsub.f32 %v2000, %v2006
    %v2009 = vmul.f32 %v2007, 1.442695
    %v2010 = vpow.pop %v2009
    %v2011 = vmul.f32 %v2008, 1.442695
    %v2012 = vpow.pop %v2011
    %v2013 = vsel %vm448, %v2010, 0.0
    %2014 = vadd.xlane.f32.xlu0 %v2013
    %v2015 = vpop.xlane.xlu0 %2014
    %v2016 = vsel %vm448, %v2012, 0.0
    %2017 = vadd.xlane.f32.xlu0 %v2016
    %v2018 = vpop.xlane.xlu0 %2017
    %v2019 = vrcp.pop %v2015
    %v2020 = vrcp.pop %v2018
    %v2021 = vmul.f32 %v2010, %v2019
    %v2022 = vmul.f32 %v2012, %v2020
    %v2024 = vsel %vm448, %v2021, 0
    %v2027 = vsel %vm448, %v2022, 0
    %2029 = vmatprep.subr.mxu0 0.0
    %2030 = vmatpush1.msra.mxu0 %v1902
    %2031 = vmatprep.subr.mxu0 0.0
    %2032 = vmatpush1.msra.mxu0 %v1907
    %2033 = vmatprep.subr.mxu0 0.0
    %2034 = vmatpush1.msra.mxu0 0.0
    %2035 = vmatprep.subr.mxu0 0.0
    %2036 = vmatpush1.msra.mxu0 0.0
    %2037 = vmatprep.subr.mxu0 0.0
    %2038 = vmatpush1.msra.mxu0 0.0
    %2039 = vmatprep.subr.mxu0 0.0
    %2040 = vmatpush1.msra.mxu0 0.0
    %2041 = vmatprep.subr.mxu0 0.0
    %2042 = vmatpush1.msra.mxu0 0.0
    %2043 = vmatprep.subr.mxu0 0.0
    %2044 = vmatpush1.msra.mxu0 0.0
    %2045 = vmatprep.subr.mxu0 0.0
    %2046 = vmatpush1.msra.mxu0 0.0
    %2047 = vmatprep.subr.mxu0 0.0
    %2048 = vmatpush1.msra.mxu0 0.0
    %2049 = vmatprep.subr.mxu0 0.0
    %2050 = vmatpush1.msra.mxu0 0.0
    %2051 = vmatprep.subr.mxu0 0.0
    %2052 = vmatpush1.msra.mxu0 0.0
    %2053 = vmatprep.subr.mxu0 0.0
    %2054 = vmatpush1.msra.mxu0 0.0
    %2055 = vmatprep.subr.mxu0 0.0
    %2056 = vmatpush1.msra.mxu0 0.0
    %2057 = vmatprep.subr.mxu0 0.0
    %2058 = vmatpush1.msra.mxu0 0.0
    %2059 = vmatprep.subr.mxu0 0.0
    %2060 = vmatpush1.msra.mxu0 0.0
    %2061 = vmatprep.subr.mxu0 0.0
    %2062 = vmatpush1.msra.mxu0 0.0
    %2063 = vmatprep.subr.mxu0 0.0
    %2064 = vmatpush1.msra.mxu0 0.0
    %2065 = vmatprep.subr.mxu0 0.0
    %2066 = vmatpush1.msra.mxu0 0.0
    %2067 = vmatprep.subr.mxu0 0.0
    %2068 = vmatpush1.msra.mxu0 0.0
    %2069 = vmatprep.subr.mxu0 0.0
    %2070 = vmatpush1.msra.mxu0 0.0
    %2071 = vmatprep.subr.mxu0 0.0
    %2072 = vmatpush1.msra.mxu0 0.0
    %2073 = vmatprep.subr.mxu0 0.0
    %2074 = vmatpush1.msra.mxu0 0.0
    %2075 = vmatprep.subr.mxu0 0.0
    %2076 = vmatpush1.msra.mxu0 0.0
    %2077 = vmatprep.subr.mxu0 0.0
    %2078 = vmatpush1.msra.mxu0 0.0
    %2079 = vmatprep.subr.mxu0 0.0
    %2080 = vmatpush1.msra.mxu0 0.0
    %2081 = vmatprep.subr.mxu0 0.0
    %2082 = vmatpush1.msra.mxu0 0.0
    %2083 = vmatprep.subr.mxu0 0.0
    %2084 = vmatpush1.msra.mxu0 0.0
    %2085 = vmatprep.subr.mxu0 0.0
    %2086 = vmatpush1.msra.mxu0 0.0
    %2087 = vmatprep.subr.mxu0 0.0
    %2088 = vmatpush1.msra.mxu0 0.0
    %2089 = vmatprep.subr.mxu0 0.0
    %2090 = vmatpush1.msra.mxu0 0.0
    %2091 = vmatprep.subr.mxu0 0.0
    %2092 = vmatpush1.msra.mxu0 0.0
    %2093 = vmatprep.mubr.f32.mxu0 0.0
    %2094 = vmatmul.mubr.f32.gmra.mrb[0].mxu0 %v2024
    %v2095 = vpop.f32.mrb[0].mxu0
    %v2096 = vadd.f32 0.0, %v2095
    %v2097 = vpop.f32.mrb[0].mxu0
    %2098 = vmatprep.mubr.f32.mxu0 0.0
    %2099 = vmatmul.mubr.f32.gmra.mrb[0].mxu0 %v2027
    %v2100 = vpop.f32.mrb[0].mxu0
    %v2101 = vadd.f32 0.0, %v2100
    %v2102 = vpop.f32.mrb[0].mxu0
    %2103 = vdwg.mxu0
    %s2104 = scalar_lea.vmem %s7, 24
    %v2105 = vld [vmem:[%s2104] sm:$0xff]
    %v2107 = vsel %vm356, %v2096, 0
    %v2110 = vsel %vm356, %v2101, 0
    %2112 = vmatprep.subr.mxu0 0.0
    %2113 = vmatpush1.msra.mxu0 %v2105
    %2114 = vmatprep.subr.mxu0 0.0
    %2115 = vmatpush1.msra.mxu0 0.0
    %2116 = vmatprep.subr.mxu0 0.0
    %2117 = vmatpush1.msra.mxu0 0.0
    %2118 = vmatprep.subr.mxu0 0.0
    %2119 = vmatpush1.msra.mxu0 0.0
    %2120 = vmatprep.subr.mxu0 0.0
    %2121 = vmatpush1.msra.mxu0 0.0
    %2122 = vmatprep.subr.mxu0 0.0
    %2123 = vmatpush1.msra.mxu0 0.0
    %2124 = vmatprep.subr.mxu0 0.0
    %2125 = vmatpush1.msra.mxu0 0.0
    %2126 = vmatprep.subr.mxu0 0.0
    %2127 = vmatpush1.msra.mxu0 0.0
    %2128 = vmatprep.subr.mxu0 0.0
    %2129 = vmatpush1.msra.mxu0 0.0
    %2130 = vmatprep.subr.mxu0 0.0
    %2131 = vmatpush1.msra.mxu0 0.0
    %2132 = vmatprep.subr.mxu0 0.0
    %2133 = vmatpush1.msra.mxu0 0.0
    %2134 = vmatprep.subr.mxu0 0.0
    %2135 = vmatpush1.msra.mxu0 0.0
    %2136 = vmatprep.subr.mxu0 0.0
    %2137 = vmatpush1.msra.mxu0 0.0
    %2138 = vmatprep.subr.mxu0 0.0
    %2139 = vmatpush1.msra.mxu0 0.0
    %2140 = vmatprep.subr.mxu0 0.0
    %2141 = vmatpush1.msra.mxu0 0.0
    %2142 = vmatprep.subr.mxu0 0.0
    %2143 = vmatpush1.msra.mxu0 0.0
    %2144 = vmatprep.subr.mxu0 0.0
    %2145 = vmatpush1.msra.mxu0 0.0
    %2146 = vmatprep.subr.mxu0 0.0
    %2147 = vmatpush1.msra.mxu0 0.0
    %2148 = vmatprep.subr.mxu0 0.0
    %2149 = vmatpush1.msra.mxu0 0.0
    %2150 = vmatprep.subr.mxu0 0.0
    %2151 = vmatpush1.msra.mxu0 0.0
    %2152 = vmatprep.subr.mxu0 0.0
    %2153 = vmatpush1.msra.mxu0 0.0
    %2154 = vmatprep.subr.mxu0 0.0
    %2155 = vmatpush1.msra.mxu0 0.0
    %2156 = vmatprep.subr.mxu0 0.0
    %2157 = vmatpush1.msra.mxu0 0.0
    %2158 = vmatprep.subr.mxu0 0.0
    %2159 = vmatpush1.msra.mxu0 0.0
    %2160 = vmatprep.subr.mxu0 0.0
    %2161 = vmatpush1.msra.mxu0 0.0
    %2162 = vmatprep.subr.mxu0 0.0
    %2163 = vmatpush1.msra.mxu0 0.0
    %2164 = vmatprep.subr.mxu0 0.0
    %2165 = vmatpush1.msra.mxu0 0.0
    %2166 = vmatprep.subr.mxu0 0.0
    %2167 = vmatpush1.msra.mxu0 0.0
    %2168 = vmatprep.subr.mxu0 0.0
    %2169 = vmatpush1.msra.mxu0 0.0
    %2170 = vmatprep.subr.mxu0 0.0
    %2171 = vmatpush1.msra.mxu0 0.0
    %2172 = vmatprep.subr.mxu0 0.0
    %2173 = vmatpush1.msra.mxu0 0.0
    %2174 = vmatprep.subr.mxu0 0.0
    %2175 = vmatpush1.msra.mxu0 0.0
    %2176 = vmatprep.mubr.f32.mxu0 0.0
    %2177 = vmatmul.mubr.f32.gmra.mrb[0].mxu0 %v2107
    %v2178 = vpop.f32.mrb[0].mxu0
    %v2179 = vadd.f32 0.0, %v2178
    %v2180 = vpop.f32.mrb[0].mxu0
    %2181 = vmatprep.mubr.f32.mxu0 0.0
    %2182 = vmatmul.mubr.f32.gmra.mrb[0].mxu0 %v2110
    %v2183 = vpop.f32.mrb[0].mxu0
    %v2184 = vadd.f32 0.0, %v2183
    %v2185 = vpop.f32.mrb[0].mxu0
    %2186 = vdwg.mxu0
    %v2187 = vadd.f32 %v1668, %v2179
    %v2188 = vadd.f32 %v1669, %v2184
    %v2189 = vadd.f32 %v63, %v2187
    %v2190 = vadd.f32 %v64, %v2188
    %v2191 = vld [vmem:[%s8] sm:$0x1]
    %v2193 = vlaneseq
    %v2194 = vshrl.u32 %v2193, 7
    %v2195 = vsub.s32 0, %v2194
    %v2196 = vrot.slane %v2191, %v2195
    %v2198 = vadd.f32 %v2189, %v2196
    %v2199 = vadd.f32 %v2190, %v2196
    %v2200 = vld [vmem:[%s9] sm:$0x1]
    %v2201 = vld [vmem:[%s10] sm:$0x1]
    %v2202 = vsel %vm69, %v2198, 0.0
    %2203 = vadd.xlane.f32.xlu0 %v2202
    %v2204 = vpop.xlane.xlu0 %2203
    %v2205 = vsel %vm69, %v2199, 0.0
    %2206 = vadd.xlane.f32.xlu0 %v2205
    %v2207 = vpop.xlane.xlu0 %2206
    %v2208 = vmul.f32 %v2204, %v76
    %v2209 = vmul.f32 %v2207, %v76
    %v2210 = vsub.f32 %v2198, %v2208
    %v2211 = vsub.f32 %v2199, %v2209
    %v2212 = vmul.f32 %v2210, %v2210
    %v2213 = vmul.f32 %v2211, %v2211
    %v2214 = vsel %vm69, %v2212, 0.0
    %2215 = vadd.xlane.f32.xlu0 %v2214
    %v2216 = vpop.xlane.xlu0 %2215
    %v2217 = vsel %vm69, %v2213, 0.0
    %2218 = vadd.xlane.f32.xlu0 %v2217
    %v2219 = vpop.xlane.xlu0 %2218
    %v2220 = vmul.f32 %v2216, %v76
    %v2221 = vmul.f32 %v2219, %v76
    %v2222 = vadd.f32 %v2220, 1e-05
    %v2223 = vadd.f32 %v2221, 1e-05
    %v2224 = vrsqrt.pop %v2222
    %v2225 = vrsqrt.pop %v2223
    %v2226 = vmul.f32 %v2210, %v2224
    %v2227 = vmul.f32 %v2211, %v2225
    %v2229 = vlaneseq
    %v2230 = vshrl.u32 %v2229, 7
    %v2231 = vsub.s32 0, %v2230
    %v2232 = vrot.slane %v2200, %v2231
    %v2234 = vmul.f32 %v2226, %v2232
    %v2235 = vmul.f32 %v2227, %v2232
    %v2237 = vlaneseq
    %v2238 = vshrl.u32 %v2237, 7
    %v2239 = vsub.s32 0, %v2238
    %v2240 = vrot.slane %v2201, %v2239
    %v2242 = vadd.f32 %v2234, %v2240
    %v2243 = vadd.f32 %v2235, %v2240
    %v2244 = vld [vmem:[%s11] sm:$0xff]
    %v2245 = vld [vmem:[%s11 + $0x8] sm:$0xff]
    %v2246 = vld [vmem:[%s11 + $0x10] sm:$0xff]
    %v2247 = vld [vmem:[%s11 + $0x18] sm:$0xff]
    %v2248 = vld [vmem:[%s12] sm:$0x1]
    %v2250 = vlaneseq
    %v2251 = vshrl.u32 %v2250, 7
    %v2252 = vsub.s32 0, %v2251
    %v2253 = vrot.slane %v2248, %v2252
    %v2256 = vsel %vm69, %v2242, 0
    %v2259 = vsel %vm69, %v2243, 0
    %2261 = vmatprep.subr.mxu0 0.0
    %2262 = vmatpush1.msra.mxu0 %v2244
    %2263 = vmatprep.subr.mxu0 0.0
    %2264 = vmatpush1.msra.mxu0 %v2245
    %2265 = vmatprep.subr.mxu0 0.0
    %2266 = vmatpush1.msra.mxu0 %v2246
    %2267 = vmatprep.subr.mxu0 0.0
    %2268 = vmatpush1.msra.mxu0 %v2247
    %2269 = vmatprep.subr.mxu0 0.0
    %2270 = vmatpush1.msra.mxu0 0.0
    %2271 = vmatprep.subr.mxu0 0.0
    %2272 = vmatpush1.msra.mxu0 0.0
    %2273 = vmatprep.subr.mxu0 0.0
    %2274 = vmatpush1.msra.mxu0 0.0
    %2275 = vmatprep.subr.mxu0 0.0
    %2276 = vmatpush1.msra.mxu0 0.0
    %2277 = vmatprep.subr.mxu0 0.0
    %2278 = vmatpush1.msra.mxu0 0.0
    %2279 = vmatprep.subr.mxu0 0.0
    %2280 = vmatpush1.msra.mxu0 0.0
    %2281 = vmatprep.subr.mxu0 0.0
    %2282 = vmatpush1.msra.mxu0 0.0
    %2283 = vmatprep.subr.mxu0 0.0
    %2284 = vmatpush1.msra.mxu0 0.0
    %2285 = vmatprep.subr.mxu0 0.0
    %2286 = vmatpush1.msra.mxu0 0.0
    %2287 = vmatprep.subr.mxu0 0.0
    %2288 = vmatpush1.msra.mxu0 0.0
    %2289 = vmatprep.subr.mxu0 0.0
    %2290 = vmatpush1.msra.mxu0 0.0
    %2291 = vmatprep.subr.mxu0 0.0
    %2292 = vmatpush1.msra.mxu0 0.0
    %2293 = vmatprep.subr.mxu0 0.0
    %2294 = vmatpush1.msra.mxu0 0.0
    %2295 = vmatprep.subr.mxu0 0.0
    %2296 = vmatpush1.msra.mxu0 0.0
    %2297 = vmatprep.subr.mxu0 0.0
    %2298 = vmatpush1.msra.mxu0 0.0
    %2299 = vmatprep.subr.mxu0 0.0
    %2300 = vmatpush1.msra.mxu0 0.0
    %2301 = vmatprep.subr.mxu0 0.0
    %2302 = vmatpush1.msra.mxu0 0.0
    %2303 = vmatprep.subr.mxu0 0.0
    %2304 = vmatpush1.msra.mxu0 0.0
    %2305 = vmatprep.subr.mxu0 0.0
    %2306 = vmatpush1.msra.mxu0 0.0
    %2307 = vmatprep.subr.mxu0 0.0
    %2308 = vmatpush1.msra.mxu0 0.0
    %2309 = vmatprep.subr.mxu0 0.0
    %2310 = vmatpush1.msra.mxu0 0.0
    %2311 = vmatprep.subr.mxu0 0.0
    %2312 = vmatpush1.msra.mxu0 0.0
    %2313 = vmatprep.subr.mxu0 0.0
    %2314 = vmatpush1.msra.mxu0 0.0
    %2315 = vmatprep.subr.mxu0 0.0
    %2316 = vmatpush1.msra.mxu0 0.0
    %2317 = vmatprep.subr.mxu0 0.0
    %2318 = vmatpush1.msra.mxu0 0.0
    %2319 = vmatprep.subr.mxu0 0.0
    %2320 = vmatpush1.msra.mxu0 0.0
    %2321 = vmatprep.subr.mxu0 0.0
    %2322 = vmatpush1.msra.mxu0 0.0
    %2323 = vmatprep.subr.mxu0 0.0
    %2324 = vmatpush1.msra.mxu0 0.0
    %2325 = vmatprep.mubr.f32.mxu0 0.0
    %2326 = vmatmul.mubr.f32.gmra.mrb[0].mxu0 %v2256
    %v2327 = vpop.f32.mrb[0].mxu0
    %v2328 = vadd.f32 %v2253, %v2327
    %v2329 = vpop.f32.mrb[0].mxu0
    %2330 = vmatprep.mubr.f32.mxu0 0.0
    %2331 = vmatmul.mubr.f32.gmra.mrb[0].mxu0 %v2259
    %v2332 = vpop.f32.mrb[0].mxu0
    %v2333 = vadd.f32 %v2253, %v2332
    %v2334 = vpop.f32.mrb[0].mxu0
    %2335 = vdwg.mxu0
    %v2336 = vmax.f32 %v2328, 0.0
    %v2337 = vmax.f32 %v2333, 0.0
    %v2338 = vld [vmem:[%s13] sm:$0xff]
    %v2339 = vld [vmem:[%s13 + $0x8] sm:$0xff]
    %v2340 = vld [vmem:[%s13 + $0x10] sm:$0xff]
    %v2341 = vld [vmem:[%s13 + $0x18] sm:$0xff]
    %v2342 = vld [vmem:[%s13 + $0x20] sm:$0xff]
    %v2343 = vld [vmem:[%s13 + $0x28] sm:$0xff]
    %v2344 = vld [vmem:[%s13 + $0x30] sm:$0xff]
    %v2345 = vld [vmem:[%s13 + $0x38] sm:$0xff]
    %v2346 = vld [vmem:[%s13 + $0x40] sm:$0xff]
    %v2347 = vld [vmem:[%s13 + $0x48] sm:$0xff]
    %v2348 = vld [vmem:[%s13 + $0x50] sm:$0xff]
    %v2349 = vld [vmem:[%s13 + $0x58] sm:$0xff]
    %v2350 = vld [vmem:[%s13 + $0x60] sm:$0xff]
    %v2351 = vld [vmem:[%s13 + $0x68] sm:$0xff]
    %v2352 = vld [vmem:[%s13 + $0x70] sm:$0xff]
    %v2353 = vld [vmem:[%s13 + $0x78] sm:$0xff]
    %v2354 = vld [vmem:[%s14] sm:$0x1]
    %v2356 = vlaneseq
    %v2357 = vshrl.u32 %v2356, 7
    %v2358 = vsub.s32 0, %v2357
    %v2359 = vrot.slane %v2354, %v2358
    %2361 = vmatprep.subr.mxu0 0.0
    %2362 = vmatpush1.msra.mxu0 %v2338
    %2363 = vmatprep.subr.mxu0 0.0
    %2364 = vmatpush1.msra.mxu0 %v2339
    %2365 = vmatprep.subr.mxu0 0.0
    %2366 = vmatpush1.msra.mxu0 %v2340
    %2367 = vmatprep.subr.mxu0 0.0
    %2368 = vmatpush1.msra.mxu0 %v2341
    %2369 = vmatprep.subr.mxu0 0.0
    %2370 = vmatpush1.msra.mxu0 %v2342
    %2371 = vmatprep.subr.mxu0 0.0
    %2372 = vmatpush1.msra.mxu0 %v2343
    %2373 = vmatprep.subr.mxu0 0.0
    %2374 = vmatpush1.msra.mxu0 %v2344
    %2375 = vmatprep.subr.mxu0 0.0
    %2376 = vmatpush1.msra.mxu0 %v2345
    %2377 = vmatprep.subr.mxu0 0.0
    %2378 = vmatpush1.msra.mxu0 %v2346
    %2379 = vmatprep.subr.mxu0 0.0
    %2380 = vmatpush1.msra.mxu0 %v2347
    %2381 = vmatprep.subr.mxu0 0.0
    %2382 = vmatpush1.msra.mxu0 %v2348
    %2383 = vmatprep.subr.mxu0 0.0
    %2384 = vmatpush1.msra.mxu0 %v2349
    %2385 = vmatprep.subr.mxu0 0.0
    %2386 = vmatpush1.msra.mxu0 %v2350
    %2387 = vmatprep.subr.mxu0 0.0
    %2388 = vmatpush1.msra.mxu0 %v2351
    %2389 = vmatprep.subr.mxu0 0.0
    %2390 = vmatpush1.msra.mxu0 %v2352
    %2391 = vmatprep.subr.mxu0 0.0
    %2392 = vmatpush1.msra.mxu0 %v2353
    %2393 = vmatprep.subr.mxu0 0.0
    %2394 = vmatpush1.msra.mxu0 0.0
    %2395 = vmatprep.subr.mxu0 0.0
    %2396 = vmatpush1.msra.mxu0 0.0
    %2397 = vmatprep.subr.mxu0 0.0
    %2398 = vmatpush1.msra.mxu0 0.0
    %2399 = vmatprep.subr.mxu0 0.0
    %2400 = vmatpush1.msra.mxu0 0.0
    %2401 = vmatprep.subr.mxu0 0.0
    %2402 = vmatpush1.msra.mxu0 0.0
    %2403 = vmatprep.subr.mxu0 0.0
    %2404 = vmatpush1.msra.mxu0 0.0
    %2405 = vmatprep.subr.mxu0 0.0
    %2406 = vmatpush1.msra.mxu0 0.0
    %2407 = vmatprep.subr.mxu0 0.0
    %2408 = vmatpush1.msra.mxu0 0.0
    %2409 = vmatprep.subr.mxu0 0.0
    %2410 = vmatpush1.msra.mxu0 0.0
    %2411 = vmatprep.subr.mxu0 0.0
    %2412 = vmatpush1.msra.mxu0 0.0
    %2413 = vmatprep.subr.mxu0 0.0
    %2414 = vmatpush1.msra.mxu0 0.0
    %2415 = vmatprep.subr.mxu0 0.0
    %2416 = vmatpush1.msra.mxu0 0.0
    %2417 = vmatprep.subr.mxu0 0.0
    %2418 = vmatpush1.msra.mxu0 0.0
    %2419 = vmatprep.subr.mxu0 0.0
    %2420 = vmatpush1.msra.mxu0 0.0
    %2421 = vmatprep.subr.mxu0 0.0
    %2422 = vmatpush1.msra.mxu0 0.0
    %2423 = vmatprep.subr.mxu0 0.0
    %2424 = vmatpush1.msra.mxu0 0.0
    %2425 = vmatprep.mubr.f32.mxu0 0.0
    %2426 = vmatmul.mubr.f32.gmra.mrb[0].mxu0 %v2336
    %v2427 = vpop.f32.mrb[0].mxu0
    %v2428 = vadd.f32 %v2359, %v2427
    %v2429 = vpop.f32.mrb[0].mxu0
    %2430 = vmatprep.mubr.f32.mxu0 0.0
    %2431 = vmatmul.mubr.f32.gmra.mrb[0].mxu0 %v2337
    %v2432 = vpop.f32.mrb[0].mxu0
    %v2433 = vadd.f32 %v2359, %v2432
    %v2434 = vpop.f32.mrb[0].mxu0
    %2435 = vdwg.mxu0
    %v2436 = vadd.f32 %v2198, %v2428
    %v2437 = vadd.f32 %v2199, %v2433
    %s2438 = scalar_lea.vmem %s2, 1
    %v2439 = vld [vmem:[%s2438] sm:$0x1]
    %s2440 = scalar_lea.vmem %s3, 1
    %v2441 = vld [vmem:[%s2440] sm:$0x1]
    %v2442 = vsel %vm69, %v2436, 0.0
    %2443 = vadd.xlane.f32.xlu0 %v2442
    %v2444 = vpop.xlane.xlu0 %2443
    %v2445 = vsel %vm69, %v2437, 0.0
    %2446 = vadd.xlane.f32.xlu0 %v2445
    %v2447 = vpop.xlane.xlu0 %2446
    %v2448 = vmul.f32 %v2444, %v76
    %v2449 = vmul.f32 %v2447, %v76
    %v2450 = vsub.f32 %v2436, %v2448
    %v2451 = vsub.f32 %v2437, %v2449
    %v2452 = vmul.f32 %v2450, %v2450
    %v2453 = vmul.f32 %v2451, %v2451
    %v2454 = vsel %vm69, %v2452, 0.0
    %2455 = vadd.xlane.f32.xlu0 %v2454
    %v2456 = vpop.xlane.xlu0 %2455
    %v2457 = vsel %vm69, %v2453, 0.0
    %2458 = vadd.xlane.f32.xlu0 %v2457
    %v2459 = vpop.xlane.xlu0 %2458
    %v2460 = vmul.f32 %v2456, %v76
    %v2461 = vmul.f32 %v2459, %v76
    %v2462 = vadd.f32 %v2460, 1e-05
    %v2463 = vadd.f32 %v2461, 1e-05
    %v2464 = vrsqrt.pop %v2462
    %v2465 = vrsqrt.pop %v2463
    %v2466 = vmul.f32 %v2450, %v2464
    %v2467 = vmul.f32 %v2451, %v2465
    %v2469 = vlaneseq
    %v2470 = vshrl.u32 %v2469, 7
    %v2471 = vsub.s32 0, %v2470
    %v2472 = vrot.slane %v2439, %v2471
    %v2474 = vmul.f32 %v2466, %v2472
    %v2475 = vmul.f32 %v2467, %v2472
    %v2477 = vlaneseq
    %v2478 = vshrl.u32 %v2477, 7
    %v2479 = vsub.s32 0, %v2478
    %v2480 = vrot.slane %v2441, %v2479
    %v2482 = vadd.f32 %v2474, %v2480
    %v2483 = vadd.f32 %v2475, %v2480
    %s2484 = scalar_lea.vmem %s4, 128
    %v2485 = vld [vmem:[%s2484] sm:$0xff]
    %v2486 = vld [vmem:[%s2484 + $0x8] sm:$0xff]
    %v2487 = vld [vmem:[%s2484 + $0x10] sm:$0xff]
    %v2488 = vld [vmem:[%s2484 + $0x18] sm:$0xff]
    %v2490 = vsel %vm69, %v2482, 0
    %v2493 = vsel %vm69, %v2483, 0
    %2495 = vmatprep.subr.mxu0 0.0
    %2496 = vmatpush1.msra.mxu0 %v2485
    %2497 = vmatprep.subr.mxu0 0.0
    %2498 = vmatpush1.msra.mxu0 %v2486
    %2499 = vmatprep.subr.mxu0 0.0
    %2500 = vmatpush1.msra.mxu0 %v2487
    %2501 = vmatprep.subr.mxu0 0.0
    %2502 = vmatpush1.msra.mxu0 %v2488
    %2503 = vmatprep.subr.mxu0 0.0
    %2504 = vmatpush1.msra.mxu0 0.0
    %2505 = vmatprep.subr.mxu0 0.0
    %2506 = vmatpush1.msra.mxu0 0.0
    %2507 = vmatprep.subr.mxu0 0.0
    %2508 = vmatpush1.msra.mxu0 0.0
    %2509 = vmatprep.subr.mxu0 0.0
    %2510 = vmatpush1.msra.mxu0 0.0
    %2511 = vmatprep.subr.mxu0 0.0
    %2512 = vmatpush1.msra.mxu0 0.0
    %2513 = vmatprep.subr.mxu0 0.0
    %2514 = vmatpush1.msra.mxu0 0.0
    %2515 = vmatprep.subr.mxu0 0.0
    %2516 = vmatpush1.msra.mxu0 0.0
    %2517 = vmatprep.subr.mxu0 0.0
    %2518 = vmatpush1.msra.mxu0 0.0
    %2519 = vmatprep.subr.mxu0 0.0
    %2520 = vmatpush1.msra.mxu0 0.0
    %2521 = vmatprep.subr.mxu0 0.0
    %2522 = vmatpush1.msra.mxu0 0.0
    %2523 = vmatprep.subr.mxu0 0.0
    %2524 = vmatpush1.msra.mxu0 0.0
    %2525 = vmatprep.subr.mxu0 0.0
    %2526 = vmatpush1.msra.mxu0 0.0
    %2527 = vmatprep.subr.mxu0 0.0
    %2528 = vmatpush1.msra.mxu0 0.0
    %2529 = vmatprep.subr.mxu0 0.0
    %2530 = vmatpush1.msra.mxu0 0.0
    %2531 = vmatprep.subr.mxu0 0.0
    %2532 = vmatpush1.msra.mxu0 0.0
    %2533 = vmatprep.subr.mxu0 0.0
    %2534 = vmatpush1.msra.mxu0 0.0
    %2535 = vmatprep.subr.mxu0 0.0
    %2536 = vmatpush1.msra.mxu0 0.0
    %2537 = vmatprep.subr.mxu0 0.0
    %2538 = vmatpush1.msra.mxu0 0.0
    %2539 = vmatprep.subr.mxu0 0.0
    %2540 = vmatpush1.msra.mxu0 0.0
    %2541 = vmatprep.subr.mxu0 0.0
    %2542 = vmatpush1.msra.mxu0 0.0
    %2543 = vmatprep.subr.mxu0 0.0
    %2544 = vmatpush1.msra.mxu0 0.0
    %2545 = vmatprep.subr.mxu0 0.0
    %2546 = vmatpush1.msra.mxu0 0.0
    %2547 = vmatprep.subr.mxu0 0.0
    %2548 = vmatpush1.msra.mxu0 0.0
    %2549 = vmatprep.subr.mxu0 0.0
    %2550 = vmatpush1.msra.mxu0 0.0
    %2551 = vmatprep.subr.mxu0 0.0
    %2552 = vmatpush1.msra.mxu0 0.0
    %2553 = vmatprep.subr.mxu0 0.0
    %2554 = vmatpush1.msra.mxu0 0.0
    %2555 = vmatprep.subr.mxu0 0.0
    %2556 = vmatpush1.msra.mxu0 0.0
    %2557 = vmatprep.subr.mxu0 0.0
    %2558 = vmatpush1.msra.mxu0 0.0
    %2559 = vmatprep.mubr.f32.mxu0 0.0
    %2560 = vmatmul.mubr.f32.gmra.mrb[0].mxu0 %v2490
    %v2561 = vpop.f32.mrb[0].mxu0
    %v2562 = vadd.f32 0.0, %v2561
    %v2563 = vpop.f32.mrb[0].mxu0
    %2564 = vmatprep.mubr.f32.mxu0 0.0
    %2565 = vmatmul.mubr.f32.gmra.mrb[0].mxu0 %v2493
    %v2566 = vpop.f32.mrb[0].mxu0
    %v2567 = vadd.f32 0.0, %v2566
    %v2568 = vpop.f32.mrb[0].mxu0
    %2569 = vdwg.mxu0
    %s2570 = scalar_lea.vmem %s5, 128
    %v2571 = vld [vmem:[%s2570] sm:$0xff]
    %v2572 = vld [vmem:[%s2570 + $0x8] sm:$0xff]
    %v2573 = vld [vmem:[%s2570 + $0x10] sm:$0xff]
    %v2574 = vld [vmem:[%s2570 + $0x18] sm:$0xff]
    %2575 = vmatprep.subr.mxu0 0.0
    %2576 = vmatpush1.msra.mxu0 %v2571
    %2577 = vmatprep.subr.mxu0 0.0
    %2578 = vmatpush1.msra.mxu0 %v2572
    %2579 = vmatprep.subr.mxu0 0.0
    %2580 = vmatpush1.msra.mxu0 %v2573
    %2581 = vmatprep.subr.mxu0 0.0
    %2582 = vmatpush1.msra.mxu0 %v2574
    %2583 = vmatprep.subr.mxu0 0.0
    %2584 = vmatpush1.msra.mxu0 0.0
    %2585 = vmatprep.subr.mxu0 0.0
    %2586 = vmatpush1.msra.mxu0 0.0
    %2587 = vmatprep.subr.mxu0 0.0
    %2588 = vmatpush1.msra.mxu0 0.0
    %2589 = vmatprep.subr.mxu0 0.0
    %2590 = vmatpush1.msra.mxu0 0.0
    %2591 = vmatprep.subr.mxu0 0.0
    %2592 = vmatpush1.msra.mxu0 0.0
    %2593 = vmatprep.subr.mxu0 0.0
    %2594 = vmatpush1.msra.mxu0 0.0
    %2595 = vmatprep.subr.mxu0 0.0
    %2596 = vmatpush1.msra.mxu0 0.0
    %2597 = vmatprep.subr.mxu0 0.0
    %2598 = vmatpush1.msra.mxu0 0.0
    %2599 = vmatprep.subr.mxu0 0.0
    %2600 = vmatpush1.msra.mxu0 0.0
    %2601 = vmatprep.subr.mxu0 0.0
    %2602 = vmatpush1.msra.mxu0 0.0
    %2603 = vmatprep.subr.mxu0 0.0
    %2604 = vmatpush1.msra.mxu0 0.0
    %2605 = vmatprep.subr.mxu0 0.0
    %2606 = vmatpush1.msra.mxu0 0.0
    %2607 = vmatprep.subr.mxu0 0.0
    %2608 = vmatpush1.msra.mxu0 0.0
    %2609 = vmatprep.subr.mxu0 0.0
    %2610 = vmatpush1.msra.mxu0 0.0
    %2611 = vmatprep.subr.mxu0 0.0
    %2612 = vmatpush1.msra.mxu0 0.0
    %2613 = vmatprep.subr.mxu0 0.0
    %2614 = vmatpush1.msra.mxu0 0.0
    %2615 = vmatprep.subr.mxu0 0.0
    %2616 = vmatpush1.msra.mxu0 0.0
    %2617 = vmatprep.subr.mxu0 0.0
    %2618 = vmatpush1.msra.mxu0 0.0
    %2619 = vmatprep.subr.mxu0 0.0
    %2620 = vmatpush1.msra.mxu0 0.0
    %2621 = vmatprep.subr.mxu0 0.0
    %2622 = vmatpush1.msra.mxu0 0.0
    %2623 = vmatprep.subr.mxu0 0.0
    %2624 = vmatpush1.msra.mxu0 0.0
    %2625 = vmatprep.subr.mxu0 0.0
    %2626 = vmatpush1.msra.mxu0 0.0
    %2627 = vmatprep.subr.mxu0 0.0
    %2628 = vmatpush1.msra.mxu0 0.0
    %2629 = vmatprep.subr.mxu0 0.0
    %2630 = vmatpush1.msra.mxu0 0.0
    %2631 = vmatprep.subr.mxu0 0.0
    %2632 = vmatpush1.msra.mxu0 0.0
    %2633 = vmatprep.subr.mxu0 0.0
    %2634 = vmatpush1.msra.mxu0 0.0
    %2635 = vmatprep.subr.mxu0 0.0
    %2636 = vmatpush1.msra.mxu0 0.0
    %2637 = vmatprep.subr.mxu0 0.0
    %2638 = vmatpush1.msra.mxu0 0.0
    %2639 = vmatprep.mubr.f32.mxu0 0.0
    %2640 = vmatmul.mubr.f32.gmra.mrb[0].mxu0 %v2490
    %v2641 = vpop.f32.mrb[0].mxu0
    %v2642 = vadd.f32 0.0, %v2641
    %v2643 = vpop.f32.mrb[0].mxu0
    %2644 = vmatprep.mubr.f32.mxu0 0.0
    %2645 = vmatmul.mubr.f32.gmra.mrb[0].mxu0 %v2493
    %v2646 = vpop.f32.mrb[0].mxu0
    %v2647 = vadd.f32 0.0, %v2646
    %v2648 = vpop.f32.mrb[0].mxu0
    %2649 = vdwg.mxu0
    %s2650 = scalar_lea.vmem %s6, 128
    %v2651 = vld [vmem:[%s2650] sm:$0xff]
    %v2652 = vld [vmem:[%s2650 + $0x8] sm:$0xff]
    %v2653 = vld [vmem:[%s2650 + $0x10] sm:$0xff]
    %v2654 = vld [vmem:[%s2650 + $0x18] sm:$0xff]
    %2655 = vmatprep.subr.mxu0 0.0
    %2656 = vmatpush1.msra.mxu0 %v2651
    %2657 = vmatprep.subr.mxu0 0.0
    %2658 = vmatpush1.msra.mxu0 %v2652
    %2659 = vmatprep.subr.mxu0 0.0
    %2660 = vmatpush1.msra.mxu0 %v2653
    %2661 = vmatprep.subr.mxu0 0.0
    %2662 = vmatpush1.msra.mxu0 %v2654
    %2663 = vmatprep.subr.mxu0 0.0
    %2664 = vmatpush1.msra.mxu0 0.0
    %2665 = vmatprep.subr.mxu0 0.0
    %2666 = vmatpush1.msra.mxu0 0.0
    %2667 = vmatprep.subr.mxu0 0.0
    %2668 = vmatpush1.msra.mxu0 0.0
    %2669 = vmatprep.subr.mxu0 0.0
    %2670 = vmatpush1.msra.mxu0 0.0
    %2671 = vmatprep.subr.mxu0 0.0
    %2672 = vmatpush1.msra.mxu0 0.0
    %2673 = vmatprep.subr.mxu0 0.0
    %2674 = vmatpush1.msra.mxu0 0.0
    %2675 = vmatprep.subr.mxu0 0.0
    %2676 = vmatpush1.msra.mxu0 0.0
    %2677 = vmatprep.subr.mxu0 0.0
    %2678 = vmatpush1.msra.mxu0 0.0
    %2679 = vmatprep.subr.mxu0 0.0
    %2680 = vmatpush1.msra.mxu0 0.0
    %2681 = vmatprep.subr.mxu0 0.0
    %2682 = vmatpush1.msra.mxu0 0.0
    %2683 = vmatprep.subr.mxu0 0.0
    %2684 = vmatpush1.msra.mxu0 0.0
    %2685 = vmatprep.subr.mxu0 0.0
    %2686 = vmatpush1.msra.mxu0 0.0
    %2687 = vmatprep.subr.mxu0 0.0
    %2688 = vmatpush1.msra.mxu0 0.0
    %2689 = vmatprep.subr.mxu0 0.0
    %2690 = vmatpush1.msra.mxu0 0.0
    %2691 = vmatprep.subr.mxu0 0.0
    %2692 = vmatpush1.msra.mxu0 0.0
    %2693 = vmatprep.subr.mxu0 0.0
    %2694 = vmatpush1.msra.mxu0 0.0
    %2695 = vmatprep.subr.mxu0 0.0
    %2696 = vmatpush1.msra.mxu0 0.0
    %2697 = vmatprep.subr.mxu0 0.0
    %2698 = vmatpush1.msra.mxu0 0.0
    %2699 = vmatprep.subr.mxu0 0.0
    %2700 = vmatpush1.msra.mxu0 0.0
    %2701 = vmatprep.subr.mxu0 0.0
    %2702 = vmatpush1.msra.mxu0 0.0
    %2703 = vmatprep.subr.mxu0 0.0
    %2704 = vmatpush1.msra.mxu0 0.0
    %2705 = vmatprep.subr.mxu0 0.0
    %2706 = vmatpush1.msra.mxu0 0.0
    %2707 = vmatprep.subr.mxu0 0.0
    %2708 = vmatpush1.msra.mxu0 0.0
    %2709 = vmatprep.subr.mxu0 0.0
    %2710 = vmatpush1.msra.mxu0 0.0
    %2711 = vmatprep.subr.mxu0 0.0
    %2712 = vmatpush1.msra.mxu0 0.0
    %2713 = vmatprep.subr.mxu0 0.0
    %2714 = vmatpush1.msra.mxu0 0.0
    %2715 = vmatprep.subr.mxu0 0.0
    %2716 = vmatpush1.msra.mxu0 0.0
    %2717 = vmatprep.subr.mxu0 0.0
    %2718 = vmatpush1.msra.mxu0 0.0
    %2719 = vmatprep.mubr.f32.mxu0 0.0
    %2720 = vmatmul.mubr.f32.gmra.mrb[0].mxu0 %v2490
    %v2721 = vpop.f32.mrb[0].mxu0
    %v2722 = vadd.f32 0.0, %v2721
    %v2723 = vpop.f32.mrb[0].mxu0
    %2724 = vmatprep.mubr.f32.mxu0 0.0
    %2725 = vmatmul.mubr.f32.gmra.mrb[0].mxu0 %v2493
    %v2726 = vpop.f32.mrb[0].mxu0
    %v2727 = vadd.f32 0.0, %v2726
    %v2728 = vpop.f32.mrb[0].mxu0
    %2729 = vdwg.mxu0
    %v2731 = vsel %vm356, %v2562, 0
    %v2734 = vsel %vm356, %v2567, 0
    %v2737 = vsel %vm356, %v2642, 0
    %v2740 = vsel %vm356, %v2647, 0
    %2742 = vmatprep.subr.mxu0 0.0
    %2743 = vmatpush1.xpose.msra.mxu0 %v2737
    %2744 = vmatprep.subr.mxu0 0.0
    %2745 = vmatpush1.xpose.msra.mxu0 %v2740
    %2746 = vmatprep.subr.mxu0 0.0
    %2747 = vmatpush1.xpose.msra.mxu0 0.0
    %2748 = vmatprep.subr.mxu0 0.0
    %2749 = vmatpush1.xpose.msra.mxu0 0.0
    %2750 = vmatprep.subr.mxu0 0.0
    %2751 = vmatpush1.xpose.msra.mxu0 0.0
    %2752 = vmatprep.subr.mxu0 0.0
    %2753 = vmatpush1.xpose.msra.mxu0 0.0
    %2754 = vmatprep.subr.mxu0 0.0
    %2755 = vmatpush1.xpose.msra.mxu0 0.0
    %2756 = vmatprep.subr.mxu0 0.0
    %2757 = vmatpush1.xpose.msra.mxu0 0.0
    %2758 = vmatprep.subr.mxu0 0.0
    %2759 = vmatpush1.xpose.msra.mxu0 0.0
    %2760 = vmatprep.subr.mxu0 0.0
    %2761 = vmatpush1.xpose.msra.mxu0 0.0
    %2762 = vmatprep.subr.mxu0 0.0
    %2763 = vmatpush1.xpose.msra.mxu0 0.0
    %2764 = vmatprep.subr.mxu0 0.0
    %2765 = vmatpush1.xpose.msra.mxu0 0.0
    %2766 = vmatprep.subr.mxu0 0.0
    %2767 = vmatpush1.xpose.msra.mxu0 0.0
    %2768 = vmatprep.subr.mxu0 0.0
    %2769 = vmatpush1.xpose.msra.mxu0 0.0
    %2770 = vmatprep.subr.mxu0 0.0
    %2771 = vmatpush1.xpose.msra.mxu0 0.0
    %2772 = vmatprep.subr.mxu0 0.0
    %2773 = vmatpush1.xpose.msra.mxu0 0.0
    %2774 = vmatprep.subr.mxu0 0.0
    %2775 = vmatpush1.xpose.msra.mxu0 0.0
    %2776 = vmatprep.subr.mxu0 0.0
    %2777 = vmatpush1.xpose.msra.mxu0 0.0
    %2778 = vmatprep.subr.mxu0 0.0
    %2779 = vmatpush1.xpose.msra.mxu0 0.0
    %2780 = vmatprep.subr.mxu0 0.0
    %2781 = vmatpush1.xpose.msra.mxu0 0.0
    %2782 = vmatprep.subr.mxu0 0.0
    %2783 = vmatpush1.xpose.msra.mxu0 0.0
    %2784 = vmatprep.subr.mxu0 0.0
    %2785 = vmatpush1.xpose.msra.mxu0 0.0
    %2786 = vmatprep.subr.mxu0 0.0
    %2787 = vmatpush1.xpose.msra.mxu0 0.0
    %2788 = vmatprep.subr.mxu0 0.0
    %2789 = vmatpush1.xpose.msra.mxu0 0.0
    %2790 = vmatprep.subr.mxu0 0.0
    %2791 = vmatpush1.xpose.msra.mxu0 0.0
    %2792 = vmatprep.subr.mxu0 0.0
    %2793 = vmatpush1.xpose.msra.mxu0 0.0
    %2794 = vmatprep.subr.mxu0 0.0
    %2795 = vmatpush1.xpose.msra.mxu0 0.0
    %2796 = vmatprep.subr.mxu0 0.0
    %2797 = vmatpush1.xpose.msra.mxu0 0.0
    %2798 = vmatprep.subr.mxu0 0.0
    %2799 = vmatpush1.xpose.msra.mxu0 0.0
    %2800 = vmatprep.subr.mxu0 0.0
    %2801 = vmatpush1.xpose.msra.mxu0 0.0
    %2802 = vmatprep.subr.mxu0 0.0
    %2803 = vmatpush1.xpose.msra.mxu0 0.0
    %2804 = vmatprep.subr.mxu0 0.0
    %2805 = vmatpush1.xpose.msra.mxu0 0.0
    %2806 = vmatprep.mubr.f32.mxu0 0.0
    %2807 = vmatmul.mubr.f32.gmra.mrb[0].mxu0 %v2731
    %v2808 = vpop.f32.mrb[0].mxu0
    %v2809 = vadd.f32 0.0, %v2808
    %v2810 = vpop.f32.mrb[0].mxu0
    %2811 = vmatprep.mubr.f32.mxu0 0.0
    %2812 = vmatmul.mubr.f32.gmra.mrb[0].mxu0 %v2734
    %v2813 = vpop.f32.mrb[0].mxu0
    %v2814 = vadd.f32 0.0, %v2813
    %v2815 = vpop.f32.mrb[0].mxu0
    %2816 = vdwg.mxu0
    %v2817 = vmul.f32 %v2809, 0.35355338
    %v2818 = vmul.f32 %v2814, 0.35355338
    %v2819 = vadd.f32 %v2817, %v65
    %v2820 = vadd.f32 %v2818, %v66
    %v2821 = vsel %vm448, %v2819, -inf
    %2822 = vmax.xlane.f32.xlu0 %v2821
    %v2823 = vpop.xlane.xlu0 %2822
    %v2824 = vsel %vm448, %v2820, -inf
    %2825 = vmax.xlane.f32.xlu0 %v2824
    %v2826 = vpop.xlane.xlu0 %2825
    %v2827 = vsub.f32 %v2819, %v2823
    %v2828 = vsub.f32 %v2820, %v2826
    %v2829 = vmul.f32 %v2827, 1.442695
    %v2830 = vpow.pop %v2829
    %v2831 = vmul.f32 %v2828, 1.442695
    %v2832 = vpow.pop %v2831
    %v2833 = vsel %vm448, %v2830, 0.0
    %2834 = vadd.xlane.f32.xlu0 %v2833
    %v2835 = vpop.xlane.xlu0 %2834
    %v2836 = vsel %vm448, %v2832, 0.0
    %2837 = vadd.xlane.f32.xlu0 %v2836
    %v2838 = vpop.xlane.xlu0 %2837
    %v2839 = vrcp.pop %v2835
    %v2840 = vrcp.pop %v2838
    %v2841 = vmul.f32 %v2830, %v2839
    %v2842 = vmul.f32 %v2832, %v2840
    %v2844 = vsel %vm448, %v2841, 0
    %v2847 = vsel %vm448, %v2842, 0
    %2849 = vmatprep.subr.mxu0 0.0
    %2850 = vmatpush1.msra.mxu0 %v2722
    %2851 = vmatprep.subr.mxu0 0.0
    %2852 = vmatpush1.msra.mxu0 %v2727
    %2853 = vmatprep.subr.mxu0 0.0
    %2854 = vmatpush1.msra.mxu0 0.0
    %2855 = vmatprep.subr.mxu0 0.0
    %2856 = vmatpush1.msra.mxu0 0.0
    %2857 = vmatprep.subr.mxu0 0.0
    %2858 = vmatpush1.msra.mxu0 0.0
    %2859 = vmatprep.subr.mxu0 0.0
    %2860 = vmatpush1.msra.mxu0 0.0
    %2861 = vmatprep.subr.mxu0 0.0
    %2862 = vmatpush1.msra.mxu0 0.0
    %2863 = vmatprep.subr.mxu0 0.0
    %2864 = vmatpush1.msra.mxu0 0.0
    %2865 = vmatprep.subr.mxu0 0.0
    %2866 = vmatpush1.msra.mxu0 0.0
    %2867 = vmatprep.subr.mxu0 0.0
    %2868 = vmatpush1.msra.mxu0 0.0
    %2869 = vmatprep.subr.mxu0 0.0
    %2870 = vmatpush1.msra.mxu0 0.0
    %2871 = vmatprep.subr.mxu0 0.0
    %2872 = vmatpush1.msra.mxu0 0.0
    %2873 = vmatprep.subr.mxu0 0.0
    %2874 = vmatpush1.msra.mxu0 0.0
    %2875 = vmatprep.subr.mxu0 0.0
    %2876 = vmatpush1.msra.mxu0 0.0
    %2877 = vmatprep.subr.mxu0 0.0
    %2878 = vmatpush1.msra.mxu0 0.0
    %2879 = vmatprep.subr.mxu0 0.0
    %2880 = vmatpush1.msra.mxu0 0.0
    %2881 = vmatprep.subr.mxu0 0.0
    %2882 = vmatpush1.msra.mxu0 0.0
    %2883 = vmatprep.subr.mxu0 0.0
    %2884 = vmatpush1.msra.mxu0 0.0
    %2885 = vmatprep.subr.mxu0 0.0
    %2886 = vmatpush1.msra.mxu0 0.0
    %2887 = vmatprep.subr.mxu0 0.0
    %2888 = vmatpush1.msra.mxu0 0.0
    %2889 = vmatprep.subr.mxu0 0.0
    %2890 = vmatpush1.msra.mxu0 0.0
    %2891 = vmatprep.subr.mxu0 0.0
    %2892 = vmatpush1.msra.mxu0 0.0
    %2893 = vmatprep.subr.mxu0 0.0
    %2894 = vmatpush1.msra.mxu0 0.0
    %2895 = vmatprep.subr.mxu0 0.0
    %2896 = vmatpush1.msra.mxu0 0.0
    %2897 = vmatprep.subr.mxu0 0.0
    %2898 = vmatpush1.msra.mxu0 0.0
    %2899 = vmatprep.subr.mxu0 0.0
    %2900 = vmatpush1.msra.mxu0 0.0
    %2901 = vmatprep.subr.mxu0 0.0
    %2902 = vmatpush1.msra.mxu0 0.0
    %2903 = vmatprep.subr.mxu0 0.0
    %2904 = vmatpush1.msra.mxu0 0.0
    %2905 = vmatprep.subr.mxu0 0.0
    %2906 = vmatpush1.msra.mxu0 0.0
    %2907 = vmatprep.subr.mxu0 0.0
    %2908 = vmatpush1.msra.mxu0 0.0
    %2909 = vmatprep.subr.mxu0 0.0
    %2910 = vmatpush1.msra.mxu0 0.0
    %2911 = vmatprep.subr.mxu0 0.0
    %2912 = vmatpush1.msra.mxu0 0.0
    %2913 = vmatprep.mubr.f32.mxu0 0.0
    %2914 = vmatmul.mubr.f32.gmra.mrb[0].mxu0 %v2844
    %v2915 = vpop.f32.mrb[0].mxu0
    %v2916 = vadd.f32 0.0, %v2915
    %v2917 = vpop.f32.mrb[0].mxu0
    %2918 = vmatprep.mubr.f32.mxu0 0.0
    %2919 = vmatmul.mubr.f32.gmra.mrb[0].mxu0 %v2847
    %v2920 = vpop.f32.mrb[0].mxu0
    %v2921 = vadd.f32 0.0, %v2920
    %v2922 = vpop.f32.mrb[0].mxu0
    %2923 = vdwg.mxu0
    %s2924 = scalar_lea.vmem %s7, 32
    %v2925 = vld [vmem:[%s2924] sm:$0xff]
    %s2926 = scalar_lea.vmem %s4, 160
    %v2927 = vld [vmem:[%s2926] sm:$0xff]
    %v2928 = vld [vmem:[%s2926 + $0x8] sm:$0xff]
    %v2929 = vld [vmem:[%s2926 + $0x10] sm:$0xff]
    %v2930 = vld [vmem:[%s2926 + $0x18] sm:$0xff]
    %2931 = vmatprep.subr.mxu0 0.0
    %2932 = vmatpush1.msra.mxu0 %v2927
    %2933 = vmatprep.subr.mxu0 0.0
    %2934 = vmatpush1.msra.mxu0 %v2928
    %2935 = vmatprep.subr.mxu0 0.0
    %2936 = vmatpush1.msra.mxu0 %v2929
    %2937 = vmatprep.subr.mxu0 0.0
    %2938 = vmatpush1.msra.mxu0 %v2930
    %2939 = vmatprep.subr.mxu0 0.0
    %2940 = vmatpush1.msra.mxu0 0.0
    %2941 = vmatprep.subr.mxu0 0.0
    %2942 = vmatpush1.msra.mxu0 0.0
    %2943 = vmatprep.subr.mxu0 0.0
    %2944 = vmatpush1.msra.mxu0 0.0
    %2945 = vmatprep.subr.mxu0 0.0
    %2946 = vmatpush1.msra.mxu0 0.0
    %2947 = vmatprep.subr.mxu0 0.0
    %2948 = vmatpush1.msra.mxu0 0.0
    %2949 = vmatprep.subr.mxu0 0.0
    %2950 = vmatpush1.msra.mxu0 0.0
    %2951 = vmatprep.subr.mxu0 0.0
    %2952 = vmatpush1.msra.mxu0 0.0
    %2953 = vmatprep.subr.mxu0 0.0
    %2954 = vmatpush1.msra.mxu0 0.0
    %2955 = vmatprep.subr.mxu0 0.0
    %2956 = vmatpush1.msra.mxu0 0.0
    %2957 = vmatprep.subr.mxu0 0.0
    %2958 = vmatpush1.msra.mxu0 0.0
    %2959 = vmatprep.subr.mxu0 0.0
    %2960 = vmatpush1.msra.mxu0 0.0
    %2961 = vmatprep.subr.mxu0 0.0
    %2962 = vmatpush1.msra.mxu0 0.0
    %2963 = vmatprep.subr.mxu0 0.0
    %2964 = vmatpush1.msra.mxu0 0.0
    %2965 = vmatprep.subr.mxu0 0.0
    %2966 = vmatpush1.msra.mxu0 0.0
    %2967 = vmatprep.subr.mxu0 0.0
    %2968 = vmatpush1.msra.mxu0 0.0
    %2969 = vmatprep.subr.mxu0 0.0
    %2970 = vmatpush1.msra.mxu0 0.0
    %2971 = vmatprep.subr.mxu0 0.0
    %2972 = vmatpush1.msra.mxu0 0.0
    %2973 = vmatprep.subr.mxu0 0.0
    %2974 = vmatpush1.msra.mxu0 0.0
    %2975 = vmatprep.subr.mxu0 0.0
    %2976 = vmatpush1.msra.mxu0 0.0
    %2977 = vmatprep.subr.mxu0 0.0
    %2978 = vmatpush1.msra.mxu0 0.0
    %2979 = vmatprep.subr.mxu0 0.0
    %2980 = vmatpush1.msra.mxu0 0.0
    %2981 = vmatprep.subr.mxu0 0.0
    %2982 = vmatpush1.msra.mxu0 0.0
    %2983 = vmatprep.subr.mxu0 0.0
    %2984 = vmatpush1.msra.mxu0 0.0
    %2985 = vmatprep.subr.mxu0 0.0
    %2986 = vmatpush1.msra.mxu0 0.0
    %2987 = vmatprep.subr.mxu0 0.0
    %2988 = vmatpush1.msra.mxu0 0.0
    %2989 = vmatprep.subr.mxu0 0.0
    %2990 = vmatpush1.msra.mxu0 0.0
    %2991 = vmatprep.subr.mxu0 0.0
    %2992 = vmatpush1.msra.mxu0 0.0
    %2993 = vmatprep.subr.mxu0 0.0
    %2994 = vmatpush1.msra.mxu0 0.0
    %2995 = vmatprep.mubr.f32.mxu0 0.0
    %2996 = vmatmul.mubr.f32.gmra.mrb[0].mxu0 %v2490
    %v2997 = vpop.f32.mrb[0].mxu0
    %v2998 = vadd.f32 0.0, %v2997
    %v2999 = vpop.f32.mrb[0].mxu0
    %3000 = vmatprep.mubr.f32.mxu0 0.0
    %3001 = vmatmul.mubr.f32.gmra.mrb[0].mxu0 %v2493
    %v3002 = vpop.f32.mrb[0].mxu0
    %v3003 = vadd.f32 0.0, %v3002
    %v3004 = vpop.f32.mrb[0].mxu0
    %3005 = vdwg.mxu0
    %s3006 = scalar_lea.vmem %s5, 160
    %v3007 = vld [vmem:[%s3006] sm:$0xff]
    %v3008 = vld [vmem:[%s3006 + $0x8] sm:$0xff]
    %v3009 = vld [vmem:[%s3006 + $0x10] sm:$0xff]
    %v3010 = vld [vmem:[%s3006 + $0x18] sm:$0xff]
    %3011 = vmatprep.subr.mxu0 0.0
    %3012 = vmatpush1.msra.mxu0 %v3007
    %3013 = vmatprep.subr.mxu0 0.0
    %3014 = vmatpush1.msra.mxu0 %v3008
    %3015 = vmatprep.subr.mxu0 0.0
    %3016 = vmatpush1.msra.mxu0 %v3009
    %3017 = vmatprep.subr.mxu0 0.0
    %3018 = vmatpush1.msra.mxu0 %v3010
    %3019 = vmatprep.subr.mxu0 0.0
    %3020 = vmatpush1.msra.mxu0 0.0
    %3021 = vmatprep.subr.mxu0 0.0
    %3022 = vmatpush1.msra.mxu0 0.0
    %3023 = vmatprep.subr.mxu0 0.0
    %3024 = vmatpush1.msra.mxu0 0.0
    %3025 = vmatprep.subr.mxu0 0.0
    %3026 = vmatpush1.msra.mxu0 0.0
    %3027 = vmatprep.subr.mxu0 0.0
    %3028 = vmatpush1.msra.mxu0 0.0
    %3029 = vmatprep.subr.mxu0 0.0
    %3030 = vmatpush1.msra.mxu0 0.0
    %3031 = vmatprep.subr.mxu0 0.0
    %3032 = vmatpush1.msra.mxu0 0.0
    %3033 = vmatprep.subr.mxu0 0.0
    %3034 = vmatpush1.msra.mxu0 0.0
    %3035 = vmatprep.subr.mxu0 0.0
    %3036 = vmatpush1.msra.mxu0 0.0
    %3037 = vmatprep.subr.mxu0 0.0
    %3038 = vmatpush1.msra.mxu0 0.0
    %3039 = vmatprep.subr.mxu0 0.0
    %3040 = vmatpush1.msra.mxu0 0.0
    %3041 = vmatprep.subr.mxu0 0.0
    %3042 = vmatpush1.msra.mxu0 0.0
    %3043 = vmatprep.subr.mxu0 0.0
    %3044 = vmatpush1.msra.mxu0 0.0
    %3045 = vmatprep.subr.mxu0 0.0
    %3046 = vmatpush1.msra.mxu0 0.0
    %3047 = vmatprep.subr.mxu0 0.0
    %3048 = vmatpush1.msra.mxu0 0.0
    %3049 = vmatprep.subr.mxu0 0.0
    %3050 = vmatpush1.msra.mxu0 0.0
    %3051 = vmatprep.subr.mxu0 0.0
    %3052 = vmatpush1.msra.mxu0 0.0
    %3053 = vmatprep.subr.mxu0 0.0
    %3054 = vmatpush1.msra.mxu0 0.0
    %3055 = vmatprep.subr.mxu0 0.0
    %3056 = vmatpush1.msra.mxu0 0.0
    %3057 = vmatprep.subr.mxu0 0.0
    %3058 = vmatpush1.msra.mxu0 0.0
    %3059 = vmatprep.subr.mxu0 0.0
    %3060 = vmatpush1.msra.mxu0 0.0
    %3061 = vmatprep.subr.mxu0 0.0
    %3062 = vmatpush1.msra.mxu0 0.0
    %3063 = vmatprep.subr.mxu0 0.0
    %3064 = vmatpush1.msra.mxu0 0.0
    %3065 = vmatprep.subr.mxu0 0.0
    %3066 = vmatpush1.msra.mxu0 0.0
    %3067 = vmatprep.subr.mxu0 0.0
    %3068 = vmatpush1.msra.mxu0 0.0
    %3069 = vmatprep.subr.mxu0 0.0
    %3070 = vmatpush1.msra.mxu0 0.0
    %3071 = vmatprep.subr.mxu0 0.0
    %3072 = vmatpush1.msra.mxu0 0.0
    %3073 = vmatprep.subr.mxu0 0.0
    %3074 = vmatpush1.msra.mxu0 0.0
    %3075 = vmatprep.mubr.f32.mxu0 0.0
    %3076 = vmatmul.mubr.f32.gmra.mrb[0].mxu0 %v2490
    %v3077 = vpop.f32.mrb[0].mxu0
    %v3078 = vadd.f32 0.0, %v3077
    %v3079 = vpop.f32.mrb[0].mxu0
    %3080 = vmatprep.mubr.f32.mxu0 0.0
    %3081 = vmatmul.mubr.f32.gmra.mrb[0].mxu0 %v2493
    %v3082 = vpop.f32.mrb[0].mxu0
    %v3083 = vadd.f32 0.0, %v3082
    %v3084 = vpop.f32.mrb[0].mxu0
    %3085 = vdwg.mxu0
    %s3086 = scalar_lea.vmem %s6, 160
    %v3087 = vld [vmem:[%s3086] sm:$0xff]
    %v3088 = vld [vmem:[%s3086 + $0x8] sm:$0xff]
    %v3089 = vld [vmem:[%s3086 + $0x10] sm:$0xff]
    %v3090 = vld [vmem:[%s3086 + $0x18] sm:$0xff]
    %3091 = vmatprep.subr.mxu0 0.0
    %3092 = vmatpush1.msra.mxu0 %v3087
    %3093 = vmatprep.subr.mxu0 0.0
    %3094 = vmatpush1.msra.mxu0 %v3088
    %3095 = vmatprep.subr.mxu0 0.0
    %3096 = vmatpush1.msra.mxu0 %v3089
    %3097 = vmatprep.subr.mxu0 0.0
    %3098 = vmatpush1.msra.mxu0 %v3090
    %3099 = vmatprep.subr.mxu0 0.0
    %3100 = vmatpush1.msra.mxu0 0.0
    %3101 = vmatprep.subr.mxu0 0.0
    %3102 = vmatpush1.msra.mxu0 0.0
    %3103 = vmatprep.subr.mxu0 0.0
    %3104 = vmatpush1.msra.mxu0 0.0
    %3105 = vmatprep.subr.mxu0 0.0
    %3106 = vmatpush1.msra.mxu0 0.0
    %3107 = vmatprep.subr.mxu0 0.0
    %3108 = vmatpush1.msra.mxu0 0.0
    %3109 = vmatprep.subr.mxu0 0.0
    %3110 = vmatpush1.msra.mxu0 0.0
    %3111 = vmatprep.subr.mxu0 0.0
    %3112 = vmatpush1.msra.mxu0 0.0
    %3113 = vmatprep.subr.mxu0 0.0
    %3114 = vmatpush1.msra.mxu0 0.0
    %3115 = vmatprep.subr.mxu0 0.0
    %3116 = vmatpush1.msra.mxu0 0.0
    %3117 = vmatprep.subr.mxu0 0.0
    %3118 = vmatpush1.msra.mxu0 0.0
    %3119 = vmatprep.subr.mxu0 0.0
    %3120 = vmatpush1.msra.mxu0 0.0
    %3121 = vmatprep.subr.mxu0 0.0
    %3122 = vmatpush1.msra.mxu0 0.0
    %3123 = vmatprep.subr.mxu0 0.0
    %3124 = vmatpush1.msra.mxu0 0.0
    %3125 = vmatprep.subr.mxu0 0.0
    %3126 = vmatpush1.msra.mxu0 0.0
    %3127 = vmatprep.subr.mxu0 0.0
    %3128 = vmatpush1.msra.mxu0 0.0
    %3129 = vmatprep.subr.mxu0 0.0
    %3130 = vmatpush1.msra.mxu0 0.0
    %3131 = vmatprep.subr.mxu0 0.0
    %3132 = vmatpush1.msra.mxu0 0.0
    %3133 = vmatprep.subr.mxu0 0.0
    %3134 = vmatpush1.msra.mxu0 0.0
    %3135 = vmatprep.subr.mxu0 0.0
    %3136 = vmatpush1.msra.mxu0 0.0
    %3137 = vmatprep.subr.mxu0 0.0
    %3138 = vmatpush1.msra.mxu0 0.0
    %3139 = vmatprep.subr.mxu0 0.0
    %3140 = vmatpush1.msra.mxu0 0.0
    %3141 = vmatprep.subr.mxu0 0.0
    %3142 = vmatpush1.msra.mxu0 0.0
    %3143 = vmatprep.subr.mxu0 0.0
    %3144 = vmatpush1.msra.mxu0 0.0
    %3145 = vmatprep.subr.mxu0 0.0
    %3146 = vmatpush1.msra.mxu0 0.0
    %3147 = vmatprep.subr.mxu0 0.0
    %3148 = vmatpush1.msra.mxu0 0.0
    %3149 = vmatprep.subr.mxu0 0.0
    %3150 = vmatpush1.msra.mxu0 0.0
    %3151 = vmatprep.subr.mxu0 0.0
    %3152 = vmatpush1.msra.mxu0 0.0
    %3153 = vmatprep.subr.mxu0 0.0
    %3154 = vmatpush1.msra.mxu0 0.0
    %3155 = vmatprep.mubr.f32.mxu0 0.0
    %3156 = vmatmul.mubr.f32.gmra.mrb[0].mxu0 %v2490
    %v3157 = vpop.f32.mrb[0].mxu0
    %v3158 = vadd.f32 0.0, %v3157
    %v3159 = vpop.f32.mrb[0].mxu0
    %3160 = vmatprep.mubr.f32.mxu0 0.0
    %3161 = vmatmul.mubr.f32.gmra.mrb[0].mxu0 %v2493
    %v3162 = vpop.f32.mrb[0].mxu0
    %v3163 = vadd.f32 0.0, %v3162
    %v3164 = vpop.f32.mrb[0].mxu0
    %3165 = vdwg.mxu0
    %v3167 = vsel %vm356, %v2998, 0
    %v3170 = vsel %vm356, %v3003, 0
    %v3173 = vsel %vm356, %v3078, 0
    %v3176 = vsel %vm356, %v3083, 0
    %3178 = vmatprep.subr.mxu0 0.0
    %3179 = vmatpush1.xpose.msra.mxu0 %v3173
    %3180 = vmatprep.subr.mxu0 0.0
    %3181 = vmatpush1.xpose.msra.mxu0 %v3176
    %3182 = vmatprep.subr.mxu0 0.0
    %3183 = vmatpush1.xpose.msra.mxu0 0.0
    %3184 = vmatprep.subr.mxu0 0.0
    %3185 = vmatpush1.xpose.msra.mxu0 0.0
    %3186 = vmatprep.subr.mxu0 0.0
    %3187 = vmatpush1.xpose.msra.mxu0 0.0
    %3188 = vmatprep.subr.mxu0 0.0
    %3189 = vmatpush1.xpose.msra.mxu0 0.0
    %3190 = vmatprep.subr.mxu0 0.0
    %3191 = vmatpush1.xpose.msra.mxu0 0.0
    %3192 = vmatprep.subr.mxu0 0.0
    %3193 = vmatpush1.xpose.msra.mxu0 0.0
    %3194 = vmatprep.subr.mxu0 0.0
    %3195 = vmatpush1.xpose.msra.mxu0 0.0
    %3196 = vmatprep.subr.mxu0 0.0
    %3197 = vmatpush1.xpose.msra.mxu0 0.0
    %3198 = vmatprep.subr.mxu0 0.0
    %3199 = vmatpush1.xpose.msra.mxu0 0.0
    %3200 = vmatprep.subr.mxu0 0.0
    %3201 = vmatpush1.xpose.msra.mxu0 0.0
    %3202 = vmatprep.subr.mxu0 0.0
    %3203 = vmatpush1.xpose.msra.mxu0 0.0
    %3204 = vmatprep.subr.mxu0 0.0
    %3205 = vmatpush1.xpose.msra.mxu0 0.0
    %3206 = vmatprep.subr.mxu0 0.0
    %3207 = vmatpush1.xpose.msra.mxu0 0.0
    %3208 = vmatprep.subr.mxu0 0.0
    %3209 = vmatpush1.xpose.msra.mxu0 0.0
    %3210 = vmatprep.subr.mxu0 0.0
    %3211 = vmatpush1.xpose.msra.mxu0 0.0
    %3212 = vmatprep.subr.mxu0 0.0
    %3213 = vmatpush1.xpose.msra.mxu0 0.0
    %3214 = vmatprep.subr.mxu0 0.0
    %3215 = vmatpush1.xpose.msra.mxu0 0.0
    %3216 = vmatprep.subr.mxu0 0.0
    %3217 = vmatpush1.xpose.msra.mxu0 0.0
    %3218 = vmatprep.subr.mxu0 0.0
    %3219 = vmatpush1.xpose.msra.mxu0 0.0
    %3220 = vmatprep.subr.mxu0 0.0
    %3221 = vmatpush1.xpose.msra.mxu0 0.0
    %3222 = vmatprep.subr.mxu0 0.0
    %3223 = vmatpush1.xpose.msra.mxu0 0.0
    %3224 = vmatprep.subr.mxu0 0.0
    %3225 = vmatpush1.xpose.msra.mxu0 0.0
    %3226 = vmatprep.subr.mxu0 0.0
    %3227 = vmatpush1.xpose.msra.mxu0 0.0
    %3228 = vmatprep.subr.mxu0 0.0
    %3229 = vmatpush1.xpose.msra.mxu0 0.0
    %3230 = vmatprep.subr.mxu0 0.0
    %3231 = vmatpush1.xpose.msra.mxu0 0.0
    %3232 = vmatprep.subr.mxu0 0.0
    %3233 = vmatpush1.xpose.msra.mxu0 0.0
    %3234 = vmatprep.subr.mxu0 0.0
    %3235 = vmatpush1.xpose.msra.mxu0 0.0
    %3236 = vmatprep.subr.mxu0 0.0
    %3237 = vmatpush1.xpose.msra.mxu0 0.0
    %3238 = vmatprep.subr.mxu0 0.0
    %3239 = vmatpush1.xpose.msra.mxu0 0.0
    %3240 = vmatprep.subr.mxu0 0.0
    %3241 = vmatpush1.xpose.msra.mxu0 0.0
    %3242 = vmatprep.mubr.f32.mxu0 0.0
    %3243 = vmatmul.mubr.f32.gmra.mrb[0].mxu0 %v3167
    %v3244 = vpop.f32.mrb[0].mxu0
    %v3245 = vadd.f32 0.0, %v3244
    %v3246 = vpop.f32.mrb[0].mxu0
    %3247 = vmatprep.mubr.f32.mxu0 0.0
    %3248 = vmatmul.mubr.f32.gmra.mrb[0].mxu0 %v3170
    %v3249 = vpop.f32.mrb[0].mxu0
    %v3250 = vadd.f32 0.0, %v3249
    %v3251 = vpop.f32.mrb[0].mxu0
    %3252 = vdwg.mxu0
    %v3253 = vmul.f32 %v3245, 0.35355338
    %v3254 = vmul.f32 %v3250, 0.35355338
    %v3255 = vadd.f32 %v3253, %v65
    %v3256 = vadd.f32 %v3254, %v66
    %v3257 = vsel %vm448, %v3255, -inf
    %3258 = vmax.xlane.f32.xlu0 %v3257
    %v3259 = vpop.xlane.xlu0 %3258
    %v3260 = vsel %vm448, %v3256, -inf
    %3261 = vmax.xlane.f32.xlu0 %v3260
    %v3262 = vpop.xlane.xlu0 %3261
    %v3263 = vsub.f32 %v3255, %v3259
    %v3264 = vsub.f32 %v3256, %v3262
    %v3265 = vmul.f32 %v3263, 1.442695
    %v3266 = vpow.pop %v3265
    %v3267 = vmul.f32 %v3264, 1.442695
    %v3268 = vpow.pop %v3267
    %v3269 = vsel %vm448, %v3266, 0.0
    %3270 = vadd.xlane.f32.xlu0 %v3269
    %v3271 = vpop.xlane.xlu0 %3270
    %v3272 = vsel %vm448, %v3268, 0.0
    %3273 = vadd.xlane.f32.xlu0 %v3272
    %v3274 = vpop.xlane.xlu0 %3273
    %v3275 = vrcp.pop %v3271
    %v3276 = vrcp.pop %v3274
    %v3277 = vmul.f32 %v3266, %v3275
    %v3278 = vmul.f32 %v3268, %v3276
    %v3280 = vsel %vm448, %v3277, 0
    %v3283 = vsel %vm448, %v3278, 0
    %3285 = vmatprep.subr.mxu0 0.0
    %3286 = vmatpush1.msra.mxu0 %v3158
    %3287 = vmatprep.subr.mxu0 0.0
    %3288 = vmatpush1.msra.mxu0 %v3163
    %3289 = vmatprep.subr.mxu0 0.0
    %3290 = vmatpush1.msra.mxu0 0.0
    %3291 = vmatprep.subr.mxu0 0.0
    %3292 = vmatpush1.msra.mxu0 0.0
    %3293 = vmatprep.subr.mxu0 0.0
    %3294 = vmatpush1.msra.mxu0 0.0
    %3295 = vmatprep.subr.mxu0 0.0
    %3296 = vmatpush1.msra.mxu0 0.0
    %3297 = vmatprep.subr.mxu0 0.0
    %3298 = vmatpush1.msra.mxu0 0.0
    %3299 = vmatprep.subr.mxu0 0.0
    %3300 = vmatpush1.msra.mxu0 0.0
    %3301 = vmatprep.subr.mxu0 0.0
    %3302 = vmatpush1.msra.mxu0 0.0
    %3303 = vmatprep.subr.mxu0 0.0
    %3304 = vmatpush1.msra.mxu0 0.0
    %3305 = vmatprep.subr.mxu0 0.0
    %3306 = vmatpush1.msra.mxu0 0.0
    %3307 = vmatprep.subr.mxu0 0.0
    %3308 = vmatpush1.msra.mxu0 0.0
    %3309 = vmatprep.subr.mxu0 0.0
    %3310 = vmatpush1.msra.mxu0 0.0
    %3311 = vmatprep.subr.mxu0 0.0
    %3312 = vmatpush1.msra.mxu0 0.0
    %3313 = vmatprep.subr.mxu0 0.0
    %3314 = vmatpush1.msra.mxu0 0.0
    %3315 = vmatprep.subr.mxu0 0.0
    %3316 = vmatpush1.msra.mxu0 0.0
    %3317 = vmatprep.subr.mxu0 0.0
    %3318 = vmatpush1.msra.mxu0 0.0
    %3319 = vmatprep.subr.mxu0 0.0
    %3320 = vmatpush1.msra.mxu0 0.0
    %3321 = vmatprep.subr.mxu0 0.0
    %3322 = vmatpush1.msra.mxu0 0.0
    %3323 = vmatprep.subr.mxu0 0.0
    %3324 = vmatpush1.msra.mxu0 0.0
    %3325 = vmatprep.subr.mxu0 0.0
    %3326 = vmatpush1.msra.mxu0 0.0
    %3327 = vmatprep.subr.mxu0 0.0
    %3328 = vmatpush1.msra.mxu0 0.0
    %3329 = vmatprep.subr.mxu0 0.0
    %3330 = vmatpush1.msra.mxu0 0.0
    %3331 = vmatprep.subr.mxu0 0.0
    %3332 = vmatpush1.msra.mxu0 0.0
    %3333 = vmatprep.subr.mxu0 0.0
    %3334 = vmatpush1.msra.mxu0 0.0
    %3335 = vmatprep.subr.mxu0 0.0
    %3336 = vmatpush1.msra.mxu0 0.0
    %3337 = vmatprep.subr.mxu0 0.0
    %3338 = vmatpush1.msra.mxu0 0.0
    %3339 = vmatprep.subr.mxu0 0.0
    %3340 = vmatpush1.msra.mxu0 0.0
    %3341 = vmatprep.subr.mxu0 0.0
    %3342 = vmatpush1.msra.mxu0 0.0
    %3343 = vmatprep.subr.mxu0 0.0
    %3344 = vmatpush1.msra.mxu0 0.0
    %3345 = vmatprep.subr.mxu0 0.0
    %3346 = vmatpush1.msra.mxu0 0.0
    %3347 = vmatprep.subr.mxu0 0.0
    %3348 = vmatpush1.msra.mxu0 0.0
    %3349 = vmatprep.mubr.f32.mxu0 0.0
    %3350 = vmatmul.mubr.f32.gmra.mrb[0].mxu0 %v3280
    %v3351 = vpop.f32.mrb[0].mxu0
    %v3352 = vadd.f32 0.0, %v3351
    %v3353 = vpop.f32.mrb[0].mxu0
    %3354 = vmatprep.mubr.f32.mxu0 0.0
    %3355 = vmatmul.mubr.f32.gmra.mrb[0].mxu0 %v3283
    %v3356 = vpop.f32.mrb[0].mxu0
    %v3357 = vadd.f32 0.0, %v3356
    %v3358 = vpop.f32.mrb[0].mxu0
    %3359 = vdwg.mxu0
    %s3360 = scalar_lea.vmem %s7, 40
    %v3361 = vld [vmem:[%s3360] sm:$0xff]
    %v3363 = vsel %vm356, %v3352, 0
    %v3366 = vsel %vm356, %v3357, 0
    %3368 = vmatprep.subr.mxu0 0.0
    %3369 = vmatpush1.msra.mxu0 %v3361
    %3370 = vmatprep.subr.mxu0 0.0
    %3371 = vmatpush1.msra.mxu0 0.0
    %3372 = vmatprep.subr.mxu0 0.0
    %3373 = vmatpush1.msra.mxu0 0.0
    %3374 = vmatprep.subr.mxu0 0.0
    %3375 = vmatpush1.msra.mxu0 0.0
    %3376 = vmatprep.subr.mxu0 0.0
    %3377 = vmatpush1.msra.mxu0 0.0
    %3378 = vmatprep.subr.mxu0 0.0
    %3379 = vmatpush1.msra.mxu0 0.0
    %3380 = vmatprep.subr.mxu0 0.0
    %3381 = vmatpush1.msra.mxu0 0.0
    %3382 = vmatprep.subr.mxu0 0.0
    %3383 = vmatpush1.msra.mxu0 0.0
    %3384 = vmatprep.subr.mxu0 0.0
    %3385 = vmatpush1.msra.mxu0 0.0
    %3386 = vmatprep.subr.mxu0 0.0
    %3387 = vmatpush1.msra.mxu0 0.0
    %3388 = vmatprep.subr.mxu0 0.0
    %3389 = vmatpush1.msra.mxu0 0.0
    %3390 = vmatprep.subr.mxu0 0.0
    %3391 = vmatpush1.msra.mxu0 0.0
    %3392 = vmatprep.subr.mxu0 0.0
    %3393 = vmatpush1.msra.mxu0 0.0
    %3394 = vmatprep.subr.mxu0 0.0
    %3395 = vmatpush1.msra.mxu0 0.0
    %3396 = vmatprep.subr.mxu0 0.0
    %3397 = vmatpush1.msra.mxu0 0.0
    %3398 = vmatprep.subr.mxu0 0.0
    %3399 = vmatpush1.msra.mxu0 0.0
    %3400 = vmatprep.subr.mxu0 0.0
    %3401 = vmatpush1.msra.mxu0 0.0
    %3402 = vmatprep.subr.mxu0 0.0
    %3403 = vmatpush1.msra.mxu0 0.0
    %3404 = vmatprep.subr.mxu0 0.0
    %3405 = vmatpush1.msra.mxu0 0.0
    %3406 = vmatprep.subr.mxu0 0.0
    %3407 = vmatpush1.msra.mxu0 0.0
    %3408 = vmatprep.subr.mxu0 0.0
    %3409 = vmatpush1.msra.mxu0 0.0
    %3410 = vmatprep.subr.mxu0 0.0
    %3411 = vmatpush1.msra.mxu0 0.0
    %3412 = vmatprep.subr.mxu0 0.0
    %3413 = vmatpush1.msra.mxu0 0.0
    %3414 = vmatprep.subr.mxu0 0.0
    %3415 = vmatpush1.msra.mxu0 0.0
    %3416 = vmatprep.subr.mxu0 0.0
    %3417 = vmatpush1.msra.mxu0 0.0
    %3418 = vmatprep.subr.mxu0 0.0
    %3419 = vmatpush1.msra.mxu0 0.0
    %3420 = vmatprep.subr.mxu0 0.0
    %3421 = vmatpush1.msra.mxu0 0.0
    %3422 = vmatprep.subr.mxu0 0.0
    %3423 = vmatpush1.msra.mxu0 0.0
    %3424 = vmatprep.subr.mxu0 0.0
    %3425 = vmatpush1.msra.mxu0 0.0
    %3426 = vmatprep.subr.mxu0 0.0
    %3427 = vmatpush1.msra.mxu0 0.0
    %3428 = vmatprep.subr.mxu0 0.0
    %3429 = vmatpush1.msra.mxu0 0.0
    %3430 = vmatprep.subr.mxu0 0.0
    %3431 = vmatpush1.msra.mxu0 0.0
    %3432 = vmatprep.mubr.f32.mxu0 0.0
    %3433 = vmatmul.mubr.f32.gmra.mrb[0].mxu0 %v3363
    %v3434 = vpop.f32.mrb[0].mxu0
    %v3435 = vadd.f32 0.0, %v3434
    %v3436 = vpop.f32.mrb[0].mxu0
    %3437 = vmatprep.mubr.f32.mxu0 0.0
    %3438 = vmatmul.mubr.f32.gmra.mrb[0].mxu0 %v3366
    %v3439 = vpop.f32.mrb[0].mxu0
    %v3440 = vadd.f32 0.0, %v3439
    %v3441 = vpop.f32.mrb[0].mxu0
    %3442 = vdwg.mxu0
    %v3444 = vsel %vm356, %v2916, 0
    %v3447 = vsel %vm356, %v2921, 0
    %3449 = vmatprep.subr.mxu0 0.0
    %3450 = vmatpush1.msra.mxu0 %v2925
    %3451 = vmatprep.subr.mxu0 0.0
    %3452 = vmatpush1.msra.mxu0 0.0
    %3453 = vmatprep.subr.mxu0 0.0
    %3454 = vmatpush1.msra.mxu0 0.0
    %3455 = vmatprep.subr.mxu0 0.0
    %3456 = vmatpush1.msra.mxu0 0.0
    %3457 = vmatprep.subr.mxu0 0.0
    %3458 = vmatpush1.msra.mxu0 0.0
    %3459 = vmatprep.subr.mxu0 0.0
    %3460 = vmatpush1.msra.mxu0 0.0
    %3461 = vmatprep.subr.mxu0 0.0
    %3462 = vmatpush1.msra.mxu0 0.0
    %3463 = vmatprep.subr.mxu0 0.0
    %3464 = vmatpush1.msra.mxu0 0.0
    %3465 = vmatprep.subr.mxu0 0.0
    %3466 = vmatpush1.msra.mxu0 0.0
    %3467 = vmatprep.subr.mxu0 0.0
    %3468 = vmatpush1.msra.mxu0 0.0
    %3469 = vmatprep.subr.mxu0 0.0
    %3470 = vmatpush1.msra.mxu0 0.0
    %3471 = vmatprep.subr.mxu0 0.0
    %3472 = vmatpush1.msra.mxu0 0.0
    %3473 = vmatprep.subr.mxu0 0.0
    %3474 = vmatpush1.msra.mxu0 0.0
    %3475 = vmatprep.subr.mxu0 0.0
    %3476 = vmatpush1.msra.mxu0 0.0
    %3477 = vmatprep.subr.mxu0 0.0
    %3478 = vmatpush1.msra.mxu0 0.0
    %3479 = vmatprep.subr.mxu0 0.0
    %3480 = vmatpush1.msra.mxu0 0.0
    %3481 = vmatprep.subr.mxu0 0.0
    %3482 = vmatpush1.msra.mxu0 0.0
    %3483 = vmatprep.subr.mxu0 0.0
    %3484 = vmatpush1.msra.mxu0 0.0
    %3485 = vmatprep.subr.mxu0 0.0
    %3486 = vmatpush1.msra.mxu0 0.0
    %3487 = vmatprep.subr.mxu0 0.0
    %3488 = vmatpush1.msra.mxu0 0.0
    %3489 = vmatprep.subr.mxu0 0.0
    %3490 = vmatpush1.msra.mxu0 0.0
    %3491 = vmatprep.subr.mxu0 0.0
    %3492 = vmatpush1.msra.mxu0 0.0
    %3493 = vmatprep.subr.mxu0 0.0
    %3494 = vmatpush1.msra.mxu0 0.0
    %3495 = vmatprep.subr.mxu0 0.0
    %3496 = vmatpush1.msra.mxu0 0.0
    %3497 = vmatprep.subr.mxu0 0.0
    %3498 = vmatpush1.msra.mxu0 0.0
    %3499 = vmatprep.subr.mxu0 0.0
    %3500 = vmatpush1.msra.mxu0 0.0
    %3501 = vmatprep.subr.mxu0 0.0
    %3502 = vmatpush1.msra.mxu0 0.0
    %3503 = vmatprep.subr.mxu0 0.0
    %3504 = vmatpush1.msra.mxu0 0.0
    %3505 = vmatprep.subr.mxu0 0.0
    %3506 = vmatpush1.msra.mxu0 0.0
    %3507 = vmatprep.subr.mxu0 0.0
    %3508 = vmatpush1.msra.mxu0 0.0
    %3509 = vmatprep.subr.mxu0 0.0
    %3510 = vmatpush1.msra.mxu0 0.0
    %3511 = vmatprep.subr.mxu0 0.0
    %3512 = vmatpush1.msra.mxu0 0.0
    %3513 = vmatprep.mubr.f32.mxu0 0.0
    %3514 = vmatmul.mubr.f32.gmra.mrb[0].mxu0 %v3444
    %v3515 = vpop.f32.mrb[0].mxu0
    %v3516 = vadd.f32 %v3435, %v3515
    %v3517 = vpop.f32.mrb[0].mxu0
    %3518 = vmatprep.mubr.f32.mxu0 0.0
    %3519 = vmatmul.mubr.f32.gmra.mrb[0].mxu0 %v3447
    %v3520 = vpop.f32.mrb[0].mxu0
    %v3521 = vadd.f32 %v3440, %v3520
    %v3522 = vpop.f32.mrb[0].mxu0
    %3523 = vdwg.mxu0
    %s3524 = scalar_lea.vmem %s4, 192
    %v3525 = vld [vmem:[%s3524] sm:$0xff]
    %v3526 = vld [vmem:[%s3524 + $0x8] sm:$0xff]
    %v3527 = vld [vmem:[%s3524 + $0x10] sm:$0xff]
    %v3528 = vld [vmem:[%s3524 + $0x18] sm:$0xff]
    %3529 = vmatprep.subr.mxu0 0.0
    %3530 = vmatpush1.msra.mxu0 %v3525
    %3531 = vmatprep.subr.mxu0 0.0
    %3532 = vmatpush1.msra.mxu0 %v3526
    %3533 = vmatprep.subr.mxu0 0.0
    %3534 = vmatpush1.msra.mxu0 %v3527
    %3535 = vmatprep.subr.mxu0 0.0
    %3536 = vmatpush1.msra.mxu0 %v3528
    %3537 = vmatprep.subr.mxu0 0.0
    %3538 = vmatpush1.msra.mxu0 0.0
    %3539 = vmatprep.subr.mxu0 0.0
    %3540 = vmatpush1.msra.mxu0 0.0
    %3541 = vmatprep.subr.mxu0 0.0
    %3542 = vmatpush1.msra.mxu0 0.0
    %3543 = vmatprep.subr.mxu0 0.0
    %3544 = vmatpush1.msra.mxu0 0.0
    %3545 = vmatprep.subr.mxu0 0.0
    %3546 = vmatpush1.msra.mxu0 0.0
    %3547 = vmatprep.subr.mxu0 0.0
    %3548 = vmatpush1.msra.mxu0 0.0
    %3549 = vmatprep.subr.mxu0 0.0
    %3550 = vmatpush1.msra.mxu0 0.0
    %3551 = vmatprep.subr.mxu0 0.0
    %3552 = vmatpush1.msra.mxu0 0.0
    %3553 = vmatprep.subr.mxu0 0.0
    %3554 = vmatpush1.msra.mxu0 0.0
    %3555 = vmatprep.subr.mxu0 0.0
    %3556 = vmatpush1.msra.mxu0 0.0
    %3557 = vmatprep.subr.mxu0 0.0
    %3558 = vmatpush1.msra.mxu0 0.0
    %3559 = vmatprep.subr.mxu0 0.0
    %3560 = vmatpush1.msra.mxu0 0.0
    %3561 = vmatprep.subr.mxu0 0.0
    %3562 = vmatpush1.msra.mxu0 0.0
    %3563 = vmatprep.subr.mxu0 0.0
    %3564 = vmatpush1.msra.mxu0 0.0
    %3565 = vmatprep.subr.mxu0 0.0
    %3566 = vmatpush1.msra.mxu0 0.0
    %3567 = vmatprep.subr.mxu0 0.0
    %3568 = vmatpush1.msra.mxu0 0.0
    %3569 = vmatprep.subr.mxu0 0.0
    %3570 = vmatpush1.msra.mxu0 0.0
    %3571 = vmatprep.subr.mxu0 0.0
    %3572 = vmatpush1.msra.mxu0 0.0
    %3573 = vmatprep.subr.mxu0 0.0
    %3574 = vmatpush1.msra.mxu0 0.0
    %3575 = vmatprep.subr.mxu0 0.0
    %3576 = vmatpush1.msra.mxu0 0.0
    %3577 = vmatprep.subr.mxu0 0.0
    %3578 = vmatpush1.msra.mxu0 0.0
    %3579 = vmatprep.subr.mxu0 0.0
    %3580 = vmatpush1.msra.mxu0 0.0
    %3581 = vmatprep.subr.mxu0 0.0
    %3582 = vmatpush1.msra.mxu0 0.0
    %3583 = vmatprep.subr.mxu0 0.0
    %3584 = vmatpush1.msra.mxu0 0.0
    %3585 = vmatprep.subr.mxu0 0.0
    %3586 = vmatpush1.msra.mxu0 0.0
    %3587 = vmatprep.subr.mxu0 0.0
    %3588 = vmatpush1.msra.mxu0 0.0
    %3589 = vmatprep.subr.mxu0 0.0
    %3590 = vmatpush1.msra.mxu0 0.0
    %3591 = vmatprep.subr.mxu0 0.0
    %3592 = vmatpush1.msra.mxu0 0.0
    %3593 = vmatprep.mubr.f32.mxu0 0.0
    %3594 = vmatmul.mubr.f32.gmra.mrb[0].mxu0 %v2490
    %v3595 = vpop.f32.mrb[0].mxu0
    %v3596 = vadd.f32 0.0, %v3595
    %v3597 = vpop.f32.mrb[0].mxu0
    %3598 = vmatprep.mubr.f32.mxu0 0.0
    %3599 = vmatmul.mubr.f32.gmra.mrb[0].mxu0 %v2493
    %v3600 = vpop.f32.mrb[0].mxu0
    %v3601 = vadd.f32 0.0, %v3600
    %v3602 = vpop.f32.mrb[0].mxu0
    %3603 = vdwg.mxu0
    %s3604 = scalar_lea.vmem %s5, 192
    %v3605 = vld [vmem:[%s3604] sm:$0xff]
    %v3606 = vld [vmem:[%s3604 + $0x8] sm:$0xff]
    %v3607 = vld [vmem:[%s3604 + $0x10] sm:$0xff]
    %v3608 = vld [vmem:[%s3604 + $0x18] sm:$0xff]
    %3609 = vmatprep.subr.mxu0 0.0
    %3610 = vmatpush1.msra.mxu0 %v3605
    %3611 = vmatprep.subr.mxu0 0.0
    %3612 = vmatpush1.msra.mxu0 %v3606
    %3613 = vmatprep.subr.mxu0 0.0
    %3614 = vmatpush1.msra.mxu0 %v3607
    %3615 = vmatprep.subr.mxu0 0.0
    %3616 = vmatpush1.msra.mxu0 %v3608
    %3617 = vmatprep.subr.mxu0 0.0
    %3618 = vmatpush1.msra.mxu0 0.0
    %3619 = vmatprep.subr.mxu0 0.0
    %3620 = vmatpush1.msra.mxu0 0.0
    %3621 = vmatprep.subr.mxu0 0.0
    %3622 = vmatpush1.msra.mxu0 0.0
    %3623 = vmatprep.subr.mxu0 0.0
    %3624 = vmatpush1.msra.mxu0 0.0
    %3625 = vmatprep.subr.mxu0 0.0
    %3626 = vmatpush1.msra.mxu0 0.0
    %3627 = vmatprep.subr.mxu0 0.0
    %3628 = vmatpush1.msra.mxu0 0.0
    %3629 = vmatprep.subr.mxu0 0.0
    %3630 = vmatpush1.msra.mxu0 0.0
    %3631 = vmatprep.subr.mxu0 0.0
    %3632 = vmatpush1.msra.mxu0 0.0
    %3633 = vmatprep.subr.mxu0 0.0
    %3634 = vmatpush1.msra.mxu0 0.0
    %3635 = vmatprep.subr.mxu0 0.0
    %3636 = vmatpush1.msra.mxu0 0.0
    %3637 = vmatprep.subr.mxu0 0.0
    %3638 = vmatpush1.msra.mxu0 0.0
    %3639 = vmatprep.subr.mxu0 0.0
    %3640 = vmatpush1.msra.mxu0 0.0
    %3641 = vmatprep.subr.mxu0 0.0
    %3642 = vmatpush1.msra.mxu0 0.0
    %3643 = vmatprep.subr.mxu0 0.0
    %3644 = vmatpush1.msra.mxu0 0.0
    %3645 = vmatprep.subr.mxu0 0.0
    %3646 = vmatpush1.msra.mxu0 0.0
    %3647 = vmatprep.subr.mxu0 0.0
    %3648 = vmatpush1.msra.mxu0 0.0
    %3649 = vmatprep.subr.mxu0 0.0
    %3650 = vmatpush1.msra.mxu0 0.0
    %3651 = vmatprep.subr.mxu0 0.0
    %3652 = vmatpush1.msra.mxu0 0.0
    %3653 = vmatprep.subr.mxu0 0.0
    %3654 = vmatpush1.msra.mxu0 0.0
    %3655 = vmatprep.subr.mxu0 0.0
    %3656 = vmatpush1.msra.mxu0 0.0
    %3657 = vmatprep.subr.mxu0 0.0
    %3658 = vmatpush1.msra.mxu0 0.0
    %3659 = vmatprep.subr.mxu0 0.0
    %3660 = vmatpush1.msra.mxu0 0.0
    %3661 = vmatprep.subr.mxu0 0.0
    %3662 = vmatpush1.msra.mxu0 0.0
    %3663 = vmatprep.subr.mxu0 0.0
    %3664 = vmatpush1.msra.mxu0 0.0
    %3665 = vmatprep.subr.mxu0 0.0
    %3666 = vmatpush1.msra.mxu0 0.0
    %3667 = vmatprep.subr.mxu0 0.0
    %3668 = vmatpush1.msra.mxu0 0.0
    %3669 = vmatprep.subr.mxu0 0.0
    %3670 = vmatpush1.msra.mxu0 0.0
    %3671 = vmatprep.subr.mxu0 0.0
    %3672 = vmatpush1.msra.mxu0 0.0
    %3673 = vmatprep.mubr.f32.mxu0 0.0
    %3674 = vmatmul.mubr.f32.gmra.mrb[0].mxu0 %v2490
    %v3675 = vpop.f32.mrb[0].mxu0
    %v3676 = vadd.f32 0.0, %v3675
    %v3677 = vpop.f32.mrb[0].mxu0
    %3678 = vmatprep.mubr.f32.mxu0 0.0
    %3679 = vmatmul.mubr.f32.gmra.mrb[0].mxu0 %v2493
    %v3680 = vpop.f32.mrb[0].mxu0
    %v3681 = vadd.f32 0.0, %v3680
    %v3682 = vpop.f32.mrb[0].mxu0
    %3683 = vdwg.mxu0
    %s3684 = scalar_lea.vmem %s6, 192
    %v3685 = vld [vmem:[%s3684] sm:$0xff]
    %v3686 = vld [vmem:[%s3684 + $0x8] sm:$0xff]
    %v3687 = vld [vmem:[%s3684 + $0x10] sm:$0xff]
    %v3688 = vld [vmem:[%s3684 + $0x18] sm:$0xff]
    %3689 = vmatprep.subr.mxu0 0.0
    %3690 = vmatpush1.msra.mxu0 %v3685
    %3691 = vmatprep.subr.mxu0 0.0
    %3692 = vmatpush1.msra.mxu0 %v3686
    %3693 = vmatprep.subr.mxu0 0.0
    %3694 = vmatpush1.msra.mxu0 %v3687
    %3695 = vmatprep.subr.mxu0 0.0
    %3696 = vmatpush1.msra.mxu0 %v3688
    %3697 = vmatprep.subr.mxu0 0.0
    %3698 = vmatpush1.msra.mxu0 0.0
    %3699 = vmatprep.subr.mxu0 0.0
    %3700 = vmatpush1.msra.mxu0 0.0
    %3701 = vmatprep.subr.mxu0 0.0
    %3702 = vmatpush1.msra.mxu0 0.0
    %3703 = vmatprep.subr.mxu0 0.0
    %3704 = vmatpush1.msra.mxu0 0.0
    %3705 = vmatprep.subr.mxu0 0.0
    %3706 = vmatpush1.msra.mxu0 0.0
    %3707 = vmatprep.subr.mxu0 0.0
    %3708 = vmatpush1.msra.mxu0 0.0
    %3709 = vmatprep.subr.mxu0 0.0
    %3710 = vmatpush1.msra.mxu0 0.0
    %3711 = vmatprep.subr.mxu0 0.0
    %3712 = vmatpush1.msra.mxu0 0.0
    %3713 = vmatprep.subr.mxu0 0.0
    %3714 = vmatpush1.msra.mxu0 0.0
    %3715 = vmatprep.subr.mxu0 0.0
    %3716 = vmatpush1.msra.mxu0 0.0
    %3717 = vmatprep.subr.mxu0 0.0
    %3718 = vmatpush1.msra.mxu0 0.0
    %3719 = vmatprep.subr.mxu0 0.0
    %3720 = vmatpush1.msra.mxu0 0.0
    %3721 = vmatprep.subr.mxu0 0.0
    %3722 = vmatpush1.msra.mxu0 0.0
    %3723 = vmatprep.subr.mxu0 0.0
    %3724 = vmatpush1.msra.mxu0 0.0
    %3725 = vmatprep.subr.mxu0 0.0
    %3726 = vmatpush1.msra.mxu0 0.0
    %3727 = vmatprep.subr.mxu0 0.0
    %3728 = vmatpush1.msra.mxu0 0.0
    %3729 = vmatprep.subr.mxu0 0.0
    %3730 = vmatpush1.msra.mxu0 0.0
    %3731 = vmatprep.subr.mxu0 0.0
    %3732 = vmatpush1.msra.mxu0 0.0
    %3733 = vmatprep.subr.mxu0 0.0
    %3734 = vmatpush1.msra.mxu0 0.0
    %3735 = vmatprep.subr.mxu0 0.0
    %3736 = vmatpush1.msra.mxu0 0.0
    %3737 = vmatprep.subr.mxu0 0.0
    %3738 = vmatpush1.msra.mxu0 0.0
    %3739 = vmatprep.subr.mxu0 0.0
    %3740 = vmatpush1.msra.mxu0 0.0
    %3741 = vmatprep.subr.mxu0 0.0
    %3742 = vmatpush1.msra.mxu0 0.0
    %3743 = vmatprep.subr.mxu0 0.0
    %3744 = vmatpush1.msra.mxu0 0.0
    %3745 = vmatprep.subr.mxu0 0.0
    %3746 = vmatpush1.msra.mxu0 0.0
    %3747 = vmatprep.subr.mxu0 0.0
    %3748 = vmatpush1.msra.mxu0 0.0
    %3749 = vmatprep.subr.mxu0 0.0
    %3750 = vmatpush1.msra.mxu0 0.0
    %3751 = vmatprep.subr.mxu0 0.0
    %3752 = vmatpush1.msra.mxu0 0.0
    %3753 = vmatprep.mubr.f32.mxu0 0.0
    %3754 = vmatmul.mubr.f32.gmra.mrb[0].mxu0 %v2490
    %v3755 = vpop.f32.mrb[0].mxu0
    %v3756 = vadd.f32 0.0, %v3755
    %v3757 = vpop.f32.mrb[0].mxu0
    %3758 = vmatprep.mubr.f32.mxu0 0.0
    %3759 = vmatmul.mubr.f32.gmra.mrb[0].mxu0 %v2493
    %v3760 = vpop.f32.mrb[0].mxu0
    %v3761 = vadd.f32 0.0, %v3760
    %v3762 = vpop.f32.mrb[0].mxu0
    %3763 = vdwg.mxu0
    %v3765 = vsel %vm356, %v3596, 0
    %v3768 = vsel %vm356, %v3601, 0
    %v3771 = vsel %vm356, %v3676, 0
    %v3774 = vsel %vm356, %v3681, 0
    %3776 = vmatprep.subr.mxu0 0.0
    %3777 = vmatpush1.xpose.msra.mxu0 %v3771
    %3778 = vmatprep.subr.mxu0 0.0
    %3779 = vmatpush1.xpose.msra.mxu0 %v3774
    %3780 = vmatprep.subr.mxu0 0.0
    %3781 = vmatpush1.xpose.msra.mxu0 0.0
    %3782 = vmatprep.subr.mxu0 0.0
    %3783 = vmatpush1.xpose.msra.mxu0 0.0
    %3784 = vmatprep.subr.mxu0 0.0
    %3785 = vmatpush1.xpose.msra.mxu0 0.0
    %3786 = vmatprep.subr.mxu0 0.0
    %3787 = vmatpush1.xpose.msra.mxu0 0.0
    %3788 = vmatprep.subr.mxu0 0.0
    %3789 = vmatpush1.xpose.msra.mxu0 0.0
    %3790 = vmatprep.subr.mxu0 0.0
    %3791 = vmatpush1.xpose.msra.mxu0 0.0
    %3792 = vmatprep.subr.mxu0 0.0
    %3793 = vmatpush1.xpose.msra.mxu0 0.0
    %3794 = vmatprep.subr.mxu0 0.0
    %3795 = vmatpush1.xpose.msra.mxu0 0.0
    %3796 = vmatprep.subr.mxu0 0.0
    %3797 = vmatpush1.xpose.msra.mxu0 0.0
    %3798 = vmatprep.subr.mxu0 0.0
    %3799 = vmatpush1.xpose.msra.mxu0 0.0
    %3800 = vmatprep.subr.mxu0 0.0
    %3801 = vmatpush1.xpose.msra.mxu0 0.0
    %3802 = vmatprep.subr.mxu0 0.0
    %3803 = vmatpush1.xpose.msra.mxu0 0.0
    %3804 = vmatprep.subr.mxu0 0.0
    %3805 = vmatpush1.xpose.msra.mxu0 0.0
    %3806 = vmatprep.subr.mxu0 0.0
    %3807 = vmatpush1.xpose.msra.mxu0 0.0
    %3808 = vmatprep.subr.mxu0 0.0
    %3809 = vmatpush1.xpose.msra.mxu0 0.0
    %3810 = vmatprep.subr.mxu0 0.0
    %3811 = vmatpush1.xpose.msra.mxu0 0.0
    %3812 = vmatprep.subr.mxu0 0.0
    %3813 = vmatpush1.xpose.msra.mxu0 0.0
    %3814 = vmatprep.subr.mxu0 0.0
    %3815 = vmatpush1.xpose.msra.mxu0 0.0
    %3816 = vmatprep.subr.mxu0 0.0
    %3817 = vmatpush1.xpose.msra.mxu0 0.0
    %3818 = vmatprep.subr.mxu0 0.0
    %3819 = vmatpush1.xpose.msra.mxu0 0.0
    %3820 = vmatprep.subr.mxu0 0.0
    %3821 = vmatpush1.xpose.msra.mxu0 0.0
    %3822 = vmatprep.subr.mxu0 0.0
    %3823 = vmatpush1.xpose.msra.mxu0 0.0
    %3824 = vmatprep.subr.mxu0 0.0
    %3825 = vmatpush1.xpose.msra.mxu0 0.0
    %3826 = vmatprep.subr.mxu0 0.0
    %3827 = vmatpush1.xpose.msra.mxu0 0.0
    %3828 = vmatprep.subr.mxu0 0.0
    %3829 = vmatpush1.xpose.msra.mxu0 0.0
    %3830 = vmatprep.subr.mxu0 0.0
    %3831 = vmatpush1.xpose.msra.mxu0 0.0
    %3832 = vmatprep.subr.mxu0 0.0
    %3833 = vmatpush1.xpose.msra.mxu0 0.0
    %3834 = vmatprep.subr.mxu0 0.0
    %3835 = vmatpush1.xpose.msra.mxu0 0.0
    %3836 = vmatprep.subr.mxu0 0.0
    %3837 = vmatpush1.xpose.msra.mxu0 0.0
    %3838 = vmatprep.subr.mxu0 0.0
    %3839 = vmatpush1.xpose.msra.mxu0 0.0
    %3840 = vmatprep.mubr.f32.mxu0 0.0
    %3841 = vmatmul.mubr.f32.gmra.mrb[0].mxu0 %v3765
    %v3842 = vpop.f32.mrb[0].mxu0
    %v3843 = vadd.f32 0.0, %v3842
    %v3844 = vpop.f32.mrb[0].mxu0
    %3845 = vmatprep.mubr.f32.mxu0 0.0
    %3846 = vmatmul.mubr.f32.gmra.mrb[0].mxu0 %v3768
    %v3847 = vpop.f32.mrb[0].mxu0
    %v3848 = vadd.f32 0.0, %v3847
    %v3849 = vpop.f32.mrb[0].mxu0
    %3850 = vdwg.mxu0
    %v3851 = vmul.f32 %v3843, 0.35355338
    %v3852 = vmul.f32 %v3848, 0.35355338
    %v3853 = vadd.f32 %v3851, %v65
    %v3854 = vadd.f32 %v3852, %v66
    %v3855 = vsel %vm448, %v3853, -inf
    %3856 = vmax.xlane.f32.xlu0 %v3855
    %v3857 = vpop.xlane.xlu0 %3856
    %v3858 = vsel %vm448, %v3854, -inf
    %3859 = vmax.xlane.f32.xlu0 %v3858
    %v3860 = vpop.xlane.xlu0 %3859
    %v3861 = vsub.f32 %v3853, %v3857
    %v3862 = vsub.f32 %v3854, %v3860
    %v3863 = vmul.f32 %v3861, 1.442695
    %v3864 = vpow.pop %v3863
    %v3865 = vmul.f32 %v3862, 1.442695
    %v3866 = vpow.pop %v3865
    %v3867 = vsel %vm448, %v3864, 0.0
    %3868 = vadd.xlane.f32.xlu0 %v3867
    %v3869 = vpop.xlane.xlu0 %3868
    %v3870 = vsel %vm448, %v3866, 0.0
    %3871 = vadd.xlane.f32.xlu0 %v3870
    %v3872 = vpop.xlane.xlu0 %3871
    %v3873 = vrcp.pop %v3869
    %v3874 = vrcp.pop %v3872
    %v3875 = vmul.f32 %v3864, %v3873
    %v3876 = vmul.f32 %v3866, %v3874
    %v3878 = vsel %vm448, %v3875, 0
    %v3881 = vsel %vm448, %v3876, 0
    %3883 = vmatprep.subr.mxu0 0.0
    %3884 = vmatpush1.msra.mxu0 %v3756
    %3885 = vmatprep.subr.mxu0 0.0
    %3886 = vmatpush1.msra.mxu0 %v3761
    %3887 = vmatprep.subr.mxu0 0.0
    %3888 = vmatpush1.msra.mxu0 0.0
    %3889 = vmatprep.subr.mxu0 0.0
    %3890 = vmatpush1.msra.mxu0 0.0
    %3891 = vmatprep.subr.mxu0 0.0
    %3892 = vmatpush1.msra.mxu0 0.0
    %3893 = vmatprep.subr.mxu0 0.0
    %3894 = vmatpush1.msra.mxu0 0.0
    %3895 = vmatprep.subr.mxu0 0.0
    %3896 = vmatpush1.msra.mxu0 0.0
    %3897 = vmatprep.subr.mxu0 0.0
    %3898 = vmatpush1.msra.mxu0 0.0
    %3899 = vmatprep.subr.mxu0 0.0
    %3900 = vmatpush1.msra.mxu0 0.0
    %3901 = vmatprep.subr.mxu0 0.0
    %3902 = vmatpush1.msra.mxu0 0.0
    %3903 = vmatprep.subr.mxu0 0.0
    %3904 = vmatpush1.msra.mxu0 0.0
    %3905 = vmatprep.subr.mxu0 0.0
    %3906 = vmatpush1.msra.mxu0 0.0
    %3907 = vmatprep.subr.mxu0 0.0
    %3908 = vmatpush1.msra.mxu0 0.0
    %3909 = vmatprep.subr.mxu0 0.0
    %3910 = vmatpush1.msra.mxu0 0.0
    %3911 = vmatprep.subr.mxu0 0.0
    %3912 = vmatpush1.msra.mxu0 0.0
    %3913 = vmatprep.subr.mxu0 0.0
    %3914 = vmatpush1.msra.mxu0 0.0
    %3915 = vmatprep.subr.mxu0 0.0
    %3916 = vmatpush1.msra.mxu0 0.0
    %3917 = vmatprep.subr.mxu0 0.0
    %3918 = vmatpush1.msra.mxu0 0.0
    %3919 = vmatprep.subr.mxu0 0.0
    %3920 = vmatpush1.msra.mxu0 0.0
    %3921 = vmatprep.subr.mxu0 0.0
    %3922 = vmatpush1.msra.mxu0 0.0
    %3923 = vmatprep.subr.mxu0 0.0
    %3924 = vmatpush1.msra.mxu0 0.0
    %3925 = vmatprep.subr.mxu0 0.0
    %3926 = vmatpush1.msra.mxu0 0.0
    %3927 = vmatprep.subr.mxu0 0.0
    %3928 = vmatpush1.msra.mxu0 0.0
    %3929 = vmatprep.subr.mxu0 0.0
    %3930 = vmatpush1.msra.mxu0 0.0
    %3931 = vmatprep.subr.mxu0 0.0
    %3932 = vmatpush1.msra.mxu0 0.0
    %3933 = vmatprep.subr.mxu0 0.0
    %3934 = vmatpush1.msra.mxu0 0.0
    %3935 = vmatprep.subr.mxu0 0.0
    %3936 = vmatpush1.msra.mxu0 0.0
    %3937 = vmatprep.subr.mxu0 0.0
    %3938 = vmatpush1.msra.mxu0 0.0
    %3939 = vmatprep.subr.mxu0 0.0
    %3940 = vmatpush1.msra.mxu0 0.0
    %3941 = vmatprep.subr.mxu0 0.0
    %3942 = vmatpush1.msra.mxu0 0.0
    %3943 = vmatprep.subr.mxu0 0.0
    %3944 = vmatpush1.msra.mxu0 0.0
    %3945 = vmatprep.subr.mxu0 0.0
    %3946 = vmatpush1.msra.mxu0 0.0
    %3947 = vmatprep.mubr.f32.mxu0 0.0
    %3948 = vmatmul.mubr.f32.gmra.mrb[0].mxu0 %v3878
    %v3949 = vpop.f32.mrb[0].mxu0
    %v3950 = vadd.f32 0.0, %v3949
    %v3951 = vpop.f32.mrb[0].mxu0
    %3952 = vmatprep.mubr.f32.mxu0 0.0
    %3953 = vmatmul.mubr.f32.gmra.mrb[0].mxu0 %v3881
    %v3954 = vpop.f32.mrb[0].mxu0
    %v3955 = vadd.f32 0.0, %v3954
    %v3956 = vpop.f32.mrb[0].mxu0
    %3957 = vdwg.mxu0
    %s3958 = scalar_lea.vmem %s7, 48
    %v3959 = vld [vmem:[%s3958] sm:$0xff]
    %v3961 = vsel %vm356, %v3950, 0
    %v3964 = vsel %vm356, %v3955, 0
    %3966 = vmatprep.subr.mxu0 0.0
    %3967 = vmatpush1.msra.mxu0 %v3959
    %3968 = vmatprep.subr.mxu0 0.0
    %3969 = vmatpush1.msra.mxu0 0.0
    %3970 = vmatprep.subr.mxu0 0.0
    %3971 = vmatpush1.msra.mxu0 0.0
    %3972 = vmatprep.subr.mxu0 0.0
    %3973 = vmatpush1.msra.mxu0 0.0
    %3974 = vmatprep.subr.mxu0 0.0
    %3975 = vmatpush1.msra.mxu0 0.0
    %3976 = vmatprep.subr.mxu0 0.0
    %3977 = vmatpush1.msra.mxu0 0.0
    %3978 = vmatprep.subr.mxu0 0.0
    %3979 = vmatpush1.msra.mxu0 0.0
    %3980 = vmatprep.subr.mxu0 0.0
    %3981 = vmatpush1.msra.mxu0 0.0
    %3982 = vmatprep.subr.mxu0 0.0
    %3983 = vmatpush1.msra.mxu0 0.0
    %3984 = vmatprep.subr.mxu0 0.0
    %3985 = vmatpush1.msra.mxu0 0.0
    %3986 = vmatprep.subr.mxu0 0.0
    %3987 = vmatpush1.msra.mxu0 0.0
    %3988 = vmatprep.subr.mxu0 0.0
    %3989 = vmatpush1.msra.mxu0 0.0
    %3990 = vmatprep.subr.mxu0 0.0
    %3991 = vmatpush1.msra.mxu0 0.0
    %3992 = vmatprep.subr.mxu0 0.0
    %3993 = vmatpush1.msra.mxu0 0.0
    %3994 = vmatprep.subr.mxu0 0.0
    %3995 = vmatpush1.msra.mxu0 0.0
    %3996 = vmatprep.subr.mxu0 0.0
    %3997 = vmatpush1.msra.mxu0 0.0
    %3998 = vmatprep.subr.mxu0 0.0
    %3999 = vmatpush1.msra.mxu0 0.0
    %4000 = vmatprep.subr.mxu0 0.0
    %4001 = vmatpush1.msra.mxu0 0.0
    %4002 = vmatprep.subr.mxu0 0.0
    %4003 = vmatpush1.msra.mxu0 0.0
    %4004 = vmatprep.subr.mxu0 0.0
    %4005 = vmatpush1.msra.mxu0 0.0
    %4006 = vmatprep.subr.mxu0 0.0
    %4007 = vmatpush1.msra.mxu0 0.0
    %4008 = vmatprep.subr.mxu0 0.0
    %4009 = vmatpush1.msra.mxu0 0.0
    %4010 = vmatprep.subr.mxu0 0.0
    %4011 = vmatpush1.msra.mxu0 0.0
    %4012 = vmatprep.subr.mxu0 0.0
    %4013 = vmatpush1.msra.mxu0 0.0
    %4014 = vmatprep.subr.mxu0 0.0
    %4015 = vmatpush1.msra.mxu0 0.0
    %4016 = vmatprep.subr.mxu0 0.0
    %4017 = vmatpush1.msra.mxu0 0.0
    %4018 = vmatprep.subr.mxu0 0.0
    %4019 = vmatpush1.msra.mxu0 0.0
    %4020 = vmatprep.subr.mxu0 0.0
    %4021 = vmatpush1.msra.mxu0 0.0
    %4022 = vmatprep.subr.mxu0 0.0
    %4023 = vmatpush1.msra.mxu0 0.0
    %4024 = vmatprep.subr.mxu0 0.0
    %4025 = vmatpush1.msra.mxu0 0.0
    %4026 = vmatprep.subr.mxu0 0.0
    %4027 = vmatpush1.msra.mxu0 0.0
    %4028 = vmatprep.subr.mxu0 0.0
    %4029 = vmatpush1.msra.mxu0 0.0
    %4030 = vmatprep.mubr.f32.mxu0 0.0
    %4031 = vmatmul.mubr.f32.gmra.mrb[0].mxu0 %v3961
    %v4032 = vpop.f32.mrb[0].mxu0
    %v4033 = vadd.f32 0.0, %v4032
    %v4034 = vpop.f32.mrb[0].mxu0
    %4035 = vmatprep.mubr.f32.mxu0 0.0
    %4036 = vmatmul.mubr.f32.gmra.mrb[0].mxu0 %v3964
    %v4037 = vpop.f32.mrb[0].mxu0
    %v4038 = vadd.f32 0.0, %v4037
    %v4039 = vpop.f32.mrb[0].mxu0
    %4040 = vdwg.mxu0
    %v4041 = vadd.f32 %v3516, %v4033
    %v4042 = vadd.f32 %v3521, %v4038
    %s4043 = scalar_lea.vmem %s4, 224
    %v4044 = vld [vmem:[%s4043] sm:$0xff]
    %v4045 = vld [vmem:[%s4043 + $0x8] sm:$0xff]
    %v4046 = vld [vmem:[%s4043 + $0x10] sm:$0xff]
    %v4047 = vld [vmem:[%s4043 + $0x18] sm:$0xff]
    %4048 = vmatprep.subr.mxu0 0.0
    %4049 = vmatpush1.msra.mxu0 %v4044
    %4050 = vmatprep.subr.mxu0 0.0
    %4051 = vmatpush1.msra.mxu0 %v4045
    %4052 = vmatprep.subr.mxu0 0.0
    %4053 = vmatpush1.msra.mxu0 %v4046
    %4054 = vmatprep.subr.mxu0 0.0
    %4055 = vmatpush1.msra.mxu0 %v4047
    %4056 = vmatprep.subr.mxu0 0.0
    %4057 = vmatpush1.msra.mxu0 0.0
    %4058 = vmatprep.subr.mxu0 0.0
    %4059 = vmatpush1.msra.mxu0 0.0
    %4060 = vmatprep.subr.mxu0 0.0
    %4061 = vmatpush1.msra.mxu0 0.0
    %4062 = vmatprep.subr.mxu0 0.0
    %4063 = vmatpush1.msra.mxu0 0.0
    %4064 = vmatprep.subr.mxu0 0.0
    %4065 = vmatpush1.msra.mxu0 0.0
    %4066 = vmatprep.subr.mxu0 0.0
    %4067 = vmatpush1.msra.mxu0 0.0
    %4068 = vmatprep.subr.mxu0 0.0
    %4069 = vmatpush1.msra.mxu0 0.0
    %4070 = vmatprep.subr.mxu0 0.0
    %4071 = vmatpush1.msra.mxu0 0.0
    %4072 = vmatprep.subr.mxu0 0.0
    %4073 = vmatpush1.msra.mxu0 0.0
    %4074 = vmatprep.subr.mxu0 0.0
    %4075 = vmatpush1.msra.mxu0 0.0
    %4076 = vmatprep.subr.mxu0 0.0
    %4077 = vmatpush1.msra.mxu0 0.0
    %4078 = vmatprep.subr.mxu0 0.0
    %4079 = vmatpush1.msra.mxu0 0.0
    %4080 = vmatprep.subr.mxu0 0.0
    %4081 = vmatpush1.msra.mxu0 0.0
    %4082 = vmatprep.subr.mxu0 0.0
    %4083 = vmatpush1.msra.mxu0 0.0
    %4084 = vmatprep.subr.mxu0 0.0
    %4085 = vmatpush1.msra.mxu0 0.0
    %4086 = vmatprep.subr.mxu0 0.0
    %4087 = vmatpush1.msra.mxu0 0.0
    %4088 = vmatprep.subr.mxu0 0.0
    %4089 = vmatpush1.msra.mxu0 0.0
    %4090 = vmatprep.subr.mxu0 0.0
    %4091 = vmatpush1.msra.mxu0 0.0
    %4092 = vmatprep.subr.mxu0 0.0
    %4093 = vmatpush1.msra.mxu0 0.0
    %4094 = vmatprep.subr.mxu0 0.0
    %4095 = vmatpush1.msra.mxu0 0.0
    %4096 = vmatprep.subr.mxu0 0.0
    %4097 = vmatpush1.msra.mxu0 0.0
    %4098 = vmatprep.subr.mxu0 0.0
    %4099 = vmatpush1.msra.mxu0 0.0
    %4100 = vmatprep.subr.mxu0 0.0
    %4101 = vmatpush1.msra.mxu0 0.0
    %4102 = vmatprep.subr.mxu0 0.0
    %4103 = vmatpush1.msra.mxu0 0.0
    %4104 = vmatprep.subr.mxu0 0.0
    %4105 = vmatpush1.msra.mxu0 0.0
    %4106 = vmatprep.subr.mxu0 0.0
    %4107 = vmatpush1.msra.mxu0 0.0
    %4108 = vmatprep.subr.mxu0 0.0
    %4109 = vmatpush1.msra.mxu0 0.0
    %4110 = vmatprep.subr.mxu0 0.0
    %4111 = vmatpush1.msra.mxu0 0.0
    %4112 = vmatprep.mubr.f32.mxu0 0.0
    %4113 = vmatmul.mubr.f32.gmra.mrb[0].mxu0 %v2490
    %v4114 = vpop.f32.mrb[0].mxu0
    %v4115 = vadd.f32 0.0, %v4114
    %v4116 = vpop.f32.mrb[0].mxu0
    %4117 = vmatprep.mubr.f32.mxu0 0.0
    %4118 = vmatmul.mubr.f32.gmra.mrb[0].mxu0 %v2493
    %v4119 = vpop.f32.mrb[0].mxu0
    %v4120 = vadd.f32 0.0, %v4119
    %v4121 = vpop.f32.mrb[0].mxu0
    %4122 = vdwg.mxu0
    %s4123 = scalar_lea.vmem %s5, 224
    %v4124 = vld [vmem:[%s4123] sm:$0xff]
    %v4125 = vld [vmem:[%s4123 + $0x8] sm:$0xff]
    %v4126 = vld [vmem:[%s4123 + $0x10] sm:$0xff]
    %v4127 = vld [vmem:[%s4123 + $0x18] sm:$0xff]
    %4128 = vmatprep.subr.mxu0 0.0
    %4129 = vmatpush1.msra.mxu0 %v4124
    %4130 = vmatprep.subr.mxu0 0.0
    %4131 = vmatpush1.msra.mxu0 %v4125
    %4132 = vmatprep.subr.mxu0 0.0
    %4133 = vmatpush1.msra.mxu0 %v4126
    %4134 = vmatprep.subr.mxu0 0.0
    %4135 = vmatpush1.msra.mxu0 %v4127
    %4136 = vmatprep.subr.mxu0 0.0
    %4137 = vmatpush1.msra.mxu0 0.0
    %4138 = vmatprep.subr.mxu0 0.0
    %4139 = vmatpush1.msra.mxu0 0.0
    %4140 = vmatprep.subr.mxu0 0.0
    %4141 = vmatpush1.msra.mxu0 0.0
    %4142 = vmatprep.subr.mxu0 0.0
    %4143 = vmatpush1.msra.mxu0 0.0
    %4144 = vmatprep.subr.mxu0 0.0
    %4145 = vmatpush1.msra.mxu0 0.0
    %4146 = vmatprep.subr.mxu0 0.0
    %4147 = vmatpush1.msra.mxu0 0.0
    %4148 = vmatprep.subr.mxu0 0.0
    %4149 = vmatpush1.msra.mxu0 0.0
    %4150 = vmatprep.subr.mxu0 0.0
    %4151 = vmatpush1.msra.mxu0 0.0
    %4152 = vmatprep.subr.mxu0 0.0
    %4153 = vmatpush1.msra.mxu0 0.0
    %4154 = vmatprep.subr.mxu0 0.0
    %4155 = vmatpush1.msra.mxu0 0.0
    %4156 = vmatprep.subr.mxu0 0.0
    %4157 = vmatpush1.msra.mxu0 0.0
    %4158 = vmatprep.subr.mxu0 0.0
    %4159 = vmatpush1.msra.mxu0 0.0
    %4160 = vmatprep.subr.mxu0 0.0
    %4161 = vmatpush1.msra.mxu0 0.0
    %4162 = vmatprep.subr.mxu0 0.0
    %4163 = vmatpush1.msra.mxu0 0.0
    %4164 = vmatprep.subr.mxu0 0.0
    %4165 = vmatpush1.msra.mxu0 0.0
    %4166 = vmatprep.subr.mxu0 0.0
    %4167 = vmatpush1.msra.mxu0 0.0
    %4168 = vmatprep.subr.mxu0 0.0
    %4169 = vmatpush1.msra.mxu0 0.0
    %4170 = vmatprep.subr.mxu0 0.0
    %4171 = vmatpush1.msra.mxu0 0.0
    %4172 = vmatprep.subr.mxu0 0.0
    %4173 = vmatpush1.msra.mxu0 0.0
    %4174 = vmatprep.subr.mxu0 0.0
    %4175 = vmatpush1.msra.mxu0 0.0
    %4176 = vmatprep.subr.mxu0 0.0
    %4177 = vmatpush1.msra.mxu0 0.0
    %4178 = vmatprep.subr.mxu0 0.0
    %4179 = vmatpush1.msra.mxu0 0.0
    %4180 = vmatprep.subr.mxu0 0.0
    %4181 = vmatpush1.msra.mxu0 0.0
    %4182 = vmatprep.subr.mxu0 0.0
    %4183 = vmatpush1.msra.mxu0 0.0
    %4184 = vmatprep.subr.mxu0 0.0
    %4185 = vmatpush1.msra.mxu0 0.0
    %4186 = vmatprep.subr.mxu0 0.0
    %4187 = vmatpush1.msra.mxu0 0.0
    %4188 = vmatprep.subr.mxu0 0.0
    %4189 = vmatpush1.msra.mxu0 0.0
    %4190 = vmatprep.subr.mxu0 0.0
    %4191 = vmatpush1.msra.mxu0 0.0
    %4192 = vmatprep.mubr.f32.mxu0 0.0
    %4193 = vmatmul.mubr.f32.gmra.mrb[0].mxu0 %v2490
    %v4194 = vpop.f32.mrb[0].mxu0
    %v4195 = vadd.f32 0.0, %v4194
    %v4196 = vpop.f32.mrb[0].mxu0
    %4197 = vmatprep.mubr.f32.mxu0 0.0
    %4198 = vmatmul.mubr.f32.gmra.mrb[0].mxu0 %v2493
    %v4199 = vpop.f32.mrb[0].mxu0
    %v4200 = vadd.f32 0.0, %v4199
    %v4201 = vpop.f32.mrb[0].mxu0
    %4202 = vdwg.mxu0
    %s4203 = scalar_lea.vmem %s6, 224
    %v4204 = vld [vmem:[%s4203] sm:$0xff]
    %v4205 = vld [vmem:[%s4203 + $0x8] sm:$0xff]
    %v4206 = vld [vmem:[%s4203 + $0x10] sm:$0xff]
    %v4207 = vld [vmem:[%s4203 + $0x18] sm:$0xff]
    %4208 = vmatprep.subr.mxu0 0.0
    %4209 = vmatpush1.msra.mxu0 %v4204
    %4210 = vmatprep.subr.mxu0 0.0
    %4211 = vmatpush1.msra.mxu0 %v4205
    %4212 = vmatprep.subr.mxu0 0.0
    %4213 = vmatpush1.msra.mxu0 %v4206
    %4214 = vmatprep.subr.mxu0 0.0
    %4215 = vmatpush1.msra.mxu0 %v4207
    %4216 = vmatprep.subr.mxu0 0.0
    %4217 = vmatpush1.msra.mxu0 0.0
    %4218 = vmatprep.subr.mxu0 0.0
    %4219 = vmatpush1.msra.mxu0 0.0
    %4220 = vmatprep.subr.mxu0 0.0
    %4221 = vmatpush1.msra.mxu0 0.0
    %4222 = vmatprep.subr.mxu0 0.0
    %4223 = vmatpush1.msra.mxu0 0.0
    %4224 = vmatprep.subr.mxu0 0.0
    %4225 = vmatpush1.msra.mxu0 0.0
    %4226 = vmatprep.subr.mxu0 0.0
    %4227 = vmatpush1.msra.mxu0 0.0
    %4228 = vmatprep.subr.mxu0 0.0
    %4229 = vmatpush1.msra.mxu0 0.0
    %4230 = vmatprep.subr.mxu0 0.0
    %4231 = vmatpush1.msra.mxu0 0.0
    %4232 = vmatprep.subr.mxu0 0.0
    %4233 = vmatpush1.msra.mxu0 0.0
    %4234 = vmatprep.subr.mxu0 0.0
    %4235 = vmatpush1.msra.mxu0 0.0
    %4236 = vmatprep.subr.mxu0 0.0
    %4237 = vmatpush1.msra.mxu0 0.0
    %4238 = vmatprep.subr.mxu0 0.0
    %4239 = vmatpush1.msra.mxu0 0.0
    %4240 = vmatprep.subr.mxu0 0.0
    %4241 = vmatpush1.msra.mxu0 0.0
    %4242 = vmatprep.subr.mxu0 0.0
    %4243 = vmatpush1.msra.mxu0 0.0
    %4244 = vmatprep.subr.mxu0 0.0
    %4245 = vmatpush1.msra.mxu0 0.0
    %4246 = vmatprep.subr.mxu0 0.0
    %4247 = vmatpush1.msra.mxu0 0.0
    %4248 = vmatprep.subr.mxu0 0.0
    %4249 = vmatpush1.msra.mxu0 0.0
    %4250 = vmatprep.subr.mxu0 0.0
    %4251 = vmatpush1.msra.mxu0 0.0
    %4252 = vmatprep.subr.mxu0 0.0
    %4253 = vmatpush1.msra.mxu0 0.0
    %4254 = vmatprep.subr.mxu0 0.0
    %4255 = vmatpush1.msra.mxu0 0.0
    %4256 = vmatprep.subr.mxu0 0.0
    %4257 = vmatpush1.msra.mxu0 0.0
    %4258 = vmatprep.subr.mxu0 0.0
    %4259 = vmatpush1.msra.mxu0 0.0
    %4260 = vmatprep.subr.mxu0 0.0
    %4261 = vmatpush1.msra.mxu0 0.0
    %4262 = vmatprep.subr.mxu0 0.0
    %4263 = vmatpush1.msra.mxu0 0.0
    %4264 = vmatprep.subr.mxu0 0.0
    %4265 = vmatpush1.msra.mxu0 0.0
    %4266 = vmatprep.subr.mxu0 0.0
    %4267 = vmatpush1.msra.mxu0 0.0
    %4268 = vmatprep.subr.mxu0 0.0
    %4269 = vmatpush1.msra.mxu0 0.0
    %4270 = vmatprep.subr.mxu0 0.0
    %4271 = vmatpush1.msra.mxu0 0.0
    %4272 = vmatprep.mubr.f32.mxu0 0.0
    %4273 = vmatmul.mubr.f32.gmra.mrb[0].mxu0 %v2490
    %v4274 = vpop.f32.mrb[0].mxu0
    %v4275 = vadd.f32 0.0, %v4274
    %v4276 = vpop.f32.mrb[0].mxu0
    %4277 = vmatprep.mubr.f32.mxu0 0.0
    %4278 = vmatmul.mubr.f32.gmra.mrb[0].mxu0 %v2493
    %v4279 = vpop.f32.mrb[0].mxu0
    %v4280 = vadd.f32 0.0, %v4279
    %v4281 = vpop.f32.mrb[0].mxu0
    %4282 = vdwg.mxu0
    %v4284 = vsel %vm356, %v4115, 0
    %v4287 = vsel %vm356, %v4120, 0
    %v4290 = vsel %vm356, %v4195, 0
    %v4293 = vsel %vm356, %v4200, 0
    %4295 = vmatprep.subr.mxu0 0.0
    %4296 = vmatpush1.xpose.msra.mxu0 %v4290
    %4297 = vmatprep.subr.mxu0 0.0
    %4298 = vmatpush1.xpose.msra.mxu0 %v4293
    %4299 = vmatprep.subr.mxu0 0.0
    %4300 = vmatpush1.xpose.msra.mxu0 0.0
    %4301 = vmatprep.subr.mxu0 0.0
    %4302 = vmatpush1.xpose.msra.mxu0 0.0
    %4303 = vmatprep.subr.mxu0 0.0
    %4304 = vmatpush1.xpose.msra.mxu0 0.0
    %4305 = vmatprep.subr.mxu0 0.0
    %4306 = vmatpush1.xpose.msra.mxu0 0.0
    %4307 = vmatprep.subr.mxu0 0.0
    %4308 = vmatpush1.xpose.msra.mxu0 0.0
    %4309 = vmatprep.subr.mxu0 0.0
    %4310 = vmatpush1.xpose.msra.mxu0 0.0
    %4311 = vmatprep.subr.mxu0 0.0
    %4312 = vmatpush1.xpose.msra.mxu0 0.0
    %4313 = vmatprep.subr.mxu0 0.0
    %4314 = vmatpush1.xpose.msra.mxu0 0.0
    %4315 = vmatprep.subr.mxu0 0.0
    %4316 = vmatpush1.xpose.msra.mxu0 0.0
    %4317 = vmatprep.subr.mxu0 0.0
    %4318 = vmatpush1.xpose.msra.mxu0 0.0
    %4319 = vmatprep.subr.mxu0 0.0
    %4320 = vmatpush1.xpose.msra.mxu0 0.0
    %4321 = vmatprep.subr.mxu0 0.0
    %4322 = vmatpush1.xpose.msra.mxu0 0.0
    %4323 = vmatprep.subr.mxu0 0.0
    %4324 = vmatpush1.xpose.msra.mxu0 0.0
    %4325 = vmatprep.subr.mxu0 0.0
    %4326 = vmatpush1.xpose.msra.mxu0 0.0
    %4327 = vmatprep.subr.mxu0 0.0
    %4328 = vmatpush1.xpose.msra.mxu0 0.0
    %4329 = vmatprep.subr.mxu0 0.0
    %4330 = vmatpush1.xpose.msra.mxu0 0.0
    %4331 = vmatprep.subr.mxu0 0.0
    %4332 = vmatpush1.xpose.msra.mxu0 0.0
    %4333 = vmatprep.subr.mxu0 0.0
    %4334 = vmatpush1.xpose.msra.mxu0 0.0
    %4335 = vmatprep.subr.mxu0 0.0
    %4336 = vmatpush1.xpose.msra.mxu0 0.0
    %4337 = vmatprep.subr.mxu0 0.0
    %4338 = vmatpush1.xpose.msra.mxu0 0.0
    %4339 = vmatprep.subr.mxu0 0.0
    %4340 = vmatpush1.xpose.msra.mxu0 0.0
    %4341 = vmatprep.subr.mxu0 0.0
    %4342 = vmatpush1.xpose.msra.mxu0 0.0
    %4343 = vmatprep.subr.mxu0 0.0
    %4344 = vmatpush1.xpose.msra.mxu0 0.0
    %4345 = vmatprep.subr.mxu0 0.0
    %4346 = vmatpush1.xpose.msra.mxu0 0.0
    %4347 = vmatprep.subr.mxu0 0.0
    %4348 = vmatpush1.xpose.msra.mxu0 0.0
    %4349 = vmatprep.subr.mxu0 0.0
    %4350 = vmatpush1.xpose.msra.mxu0 0.0
    %4351 = vmatprep.subr.mxu0 0.0
    %4352 = vmatpush1.xpose.msra.mxu0 0.0
    %4353 = vmatprep.subr.mxu0 0.0
    %4354 = vmatpush1.xpose.msra.mxu0 0.0
    %4355 = vmatprep.subr.mxu0 0.0
    %4356 = vmatpush1.xpose.msra.mxu0 0.0
    %4357 = vmatprep.subr.mxu0 0.0
    %4358 = vmatpush1.xpose.msra.mxu0 0.0
    %4359 = vmatprep.mubr.f32.mxu0 0.0
    %4360 = vmatmul.mubr.f32.gmra.mrb[0].mxu0 %v4284
    %v4361 = vpop.f32.mrb[0].mxu0
    %v4362 = vadd.f32 0.0, %v4361
    %v4363 = vpop.f32.mrb[0].mxu0
    %4364 = vmatprep.mubr.f32.mxu0 0.0
    %4365 = vmatmul.mubr.f32.gmra.mrb[0].mxu0 %v4287
    %v4366 = vpop.f32.mrb[0].mxu0
    %v4367 = vadd.f32 0.0, %v4366
    %v4368 = vpop.f32.mrb[0].mxu0
    %4369 = vdwg.mxu0
    %v4370 = vmul.f32 %v4362, 0.35355338
    %v4371 = vmul.f32 %v4367, 0.35355338
    %v4372 = vadd.f32 %v4370, %v65
    %v4373 = vadd.f32 %v4371, %v66
    %v4374 = vsel %vm448, %v4372, -inf
    %4375 = vmax.xlane.f32.xlu0 %v4374
    %v4376 = vpop.xlane.xlu0 %4375
    %v4377 = vsel %vm448, %v4373, -inf
    %4378 = vmax.xlane.f32.xlu0 %v4377
    %v4379 = vpop.xlane.xlu0 %4378
    %v4380 = vsub.f32 %v4372, %v4376
    %v4381 = vsub.f32 %v4373, %v4379
    %v4382 = vmul.f32 %v4380, 1.442695
    %v4383 = vpow.pop %v4382
    %v4384 = vmul.f32 %v4381, 1.442695
    %v4385 = vpow.pop %v4384
    %v4386 = vsel %vm448, %v4383, 0.0
    %4387 = vadd.xlane.f32.xlu0 %v4386
    %v4388 = vpop.xlane.xlu0 %4387
    %v4389 = vsel %vm448, %v4385, 0.0
    %4390 = vadd.xlane.f32.xlu0 %v4389
    %v4391 = vpop.xlane.xlu0 %4390
    %v4392 = vrcp.pop %v4388
    %v4393 = vrcp.pop %v4391
    %v4394 = vmul.f32 %v4383, %v4392
    %v4395 = vmul.f32 %v4385, %v4393
    %v4397 = vsel %vm448, %v4394, 0
    %v4400 = vsel %vm448, %v4395, 0
    %4402 = vmatprep.subr.mxu0 0.0
    %4403 = vmatpush1.msra.mxu0 %v4275
    %4404 = vmatprep.subr.mxu0 0.0
    %4405 = vmatpush1.msra.mxu0 %v4280
    %4406 = vmatprep.subr.mxu0 0.0
    %4407 = vmatpush1.msra.mxu0 0.0
    %4408 = vmatprep.subr.mxu0 0.0
    %4409 = vmatpush1.msra.mxu0 0.0
    %4410 = vmatprep.subr.mxu0 0.0
    %4411 = vmatpush1.msra.mxu0 0.0
    %4412 = vmatprep.subr.mxu0 0.0
    %4413 = vmatpush1.msra.mxu0 0.0
    %4414 = vmatprep.subr.mxu0 0.0
    %4415 = vmatpush1.msra.mxu0 0.0
    %4416 = vmatprep.subr.mxu0 0.0
    %4417 = vmatpush1.msra.mxu0 0.0
    %4418 = vmatprep.subr.mxu0 0.0
    %4419 = vmatpush1.msra.mxu0 0.0
    %4420 = vmatprep.subr.mxu0 0.0
    %4421 = vmatpush1.msra.mxu0 0.0
    %4422 = vmatprep.subr.mxu0 0.0
    %4423 = vmatpush1.msra.mxu0 0.0
    %4424 = vmatprep.subr.mxu0 0.0
    %4425 = vmatpush1.msra.mxu0 0.0
    %4426 = vmatprep.subr.mxu0 0.0
    %4427 = vmatpush1.msra.mxu0 0.0
    %4428 = vmatprep.subr.mxu0 0.0
    %4429 = vmatpush1.msra.mxu0 0.0
    %4430 = vmatprep.subr.mxu0 0.0
    %4431 = vmatpush1.msra.mxu0 0.0
    %4432 = vmatprep.subr.mxu0 0.0
    %4433 = vmatpush1.msra.mxu0 0.0
    %4434 = vmatprep.subr.mxu0 0.0
    %4435 = vmatpush1.msra.mxu0 0.0
    %4436 = vmatprep.subr.mxu0 0.0
    %4437 = vmatpush1.msra.mxu0 0.0
    %4438 = vmatprep.subr.mxu0 0.0
    %4439 = vmatpush1.msra.mxu0 0.0
    %4440 = vmatprep.subr.mxu0 0.0
    %4441 = vmatpush1.msra.mxu0 0.0
    %4442 = vmatprep.subr.mxu0 0.0
    %4443 = vmatpush1.msra.mxu0 0.0
    %4444 = vmatprep.subr.mxu0 0.0
    %4445 = vmatpush1.msra.mxu0 0.0
    %4446 = vmatprep.subr.mxu0 0.0
    %4447 = vmatpush1.msra.mxu0 0.0
    %4448 = vmatprep.subr.mxu0 0.0
    %4449 = vmatpush1.msra.mxu0 0.0
    %4450 = vmatprep.subr.mxu0 0.0
    %4451 = vmatpush1.msra.mxu0 0.0
    %4452 = vmatprep.subr.mxu0 0.0
    %4453 = vmatpush1.msra.mxu0 0.0
    %4454 = vmatprep.subr.mxu0 0.0
    %4455 = vmatpush1.msra.mxu0 0.0
    %4456 = vmatprep.subr.mxu0 0.0
    %4457 = vmatpush1.msra.mxu0 0.0
    %4458 = vmatprep.subr.mxu0 0.0
    %4459 = vmatpush1.msra.mxu0 0.0
    %4460 = vmatprep.subr.mxu0 0.0
    %4461 = vmatpush1.msra.mxu0 0.0
    %4462 = vmatprep.subr.mxu0 0.0
    %4463 = vmatpush1.msra.mxu0 0.0
    %4464 = vmatprep.subr.mxu0 0.0
    %4465 = vmatpush1.msra.mxu0 0.0
    %4466 = vmatprep.mubr.f32.mxu0 0.0
    %4467 = vmatmul.mubr.f32.gmra.mrb[0].mxu0 %v4397
    %v4468 = vpop.f32.mrb[0].mxu0
    %v4469 = vadd.f32 0.0, %v4468
    %v4470 = vpop.f32.mrb[0].mxu0
    %4471 = vmatprep.mubr.f32.mxu0 0.0
    %4472 = vmatmul.mubr.f32.gmra.mrb[0].mxu0 %v4400
    %v4473 = vpop.f32.mrb[0].mxu0
    %v4474 = vadd.f32 0.0, %v4473
    %v4475 = vpop.f32.mrb[0].mxu0
    %4476 = vdwg.mxu0
    %s4477 = scalar_lea.vmem %s7, 56
    %v4478 = vld [vmem:[%s4477] sm:$0xff]
    %v4480 = vsel %vm356, %v4469, 0
    %v4483 = vsel %vm356, %v4474, 0
    %4485 = vmatprep.subr.mxu0 0.0
    %4486 = vmatpush1.msra.mxu0 %v4478
    %4487 = vmatprep.subr.mxu0 0.0
    %4488 = vmatpush1.msra.mxu0 0.0
    %4489 = vmatprep.subr.mxu0 0.0
    %4490 = vmatpush1.msra.mxu0 0.0
    %4491 = vmatprep.subr.mxu0 0.0
    %4492 = vmatpush1.msra.mxu0 0.0
    %4493 = vmatprep.subr.mxu0 0.0
    %4494 = vmatpush1.msra.mxu0 0.0
    %4495 = vmatprep.subr.mxu0 0.0
    %4496 = vmatpush1.msra.mxu0 0.0
    %4497 = vmatprep.subr.mxu0 0.0
    %4498 = vmatpush1.msra.mxu0 0.0
    %4499 = vmatprep.subr.mxu0 0.0
    %4500 = vmatpush1.msra.mxu0 0.0
    %4501 = vmatprep.subr.mxu0 0.0
    %4502 = vmatpush1.msra.mxu0 0.0
    %4503 = vmatprep.subr.mxu0 0.0
    %4504 = vmatpush1.msra.mxu0 0.0
    %4505 = vmatprep.subr.mxu0 0.0
    %4506 = vmatpush1.msra.mxu0 0.0
    %4507 = vmatprep.subr.mxu0 0.0
    %4508 = vmatpush1.msra.mxu0 0.0
    %4509 = vmatprep.subr.mxu0 0.0
    %4510 = vmatpush1.msra.mxu0 0.0
    %4511 = vmatprep.subr.mxu0 0.0
    %4512 = vmatpush1.msra.mxu0 0.0
    %4513 = vmatprep.subr.mxu0 0.0
    %4514 = vmatpush1.msra.mxu0 0.0
    %4515 = vmatprep.subr.mxu0 0.0
    %4516 = vmatpush1.msra.mxu0 0.0
    %4517 = vmatprep.subr.mxu0 0.0
    %4518 = vmatpush1.msra.mxu0 0.0
    %4519 = vmatprep.subr.mxu0 0.0
    %4520 = vmatpush1.msra.mxu0 0.0
    %4521 = vmatprep.subr.mxu0 0.0
    %4522 = vmatpush1.msra.mxu0 0.0
    %4523 = vmatprep.subr.mxu0 0.0
    %4524 = vmatpush1.msra.mxu0 0.0
    %4525 = vmatprep.subr.mxu0 0.0
    %4526 = vmatpush1.msra.mxu0 0.0
    %4527 = vmatprep.subr.mxu0 0.0
    %4528 = vmatpush1.msra.mxu0 0.0
    %4529 = vmatprep.subr.mxu0 0.0
    %4530 = vmatpush1.msra.mxu0 0.0
    %4531 = vmatprep.subr.mxu0 0.0
    %4532 = vmatpush1.msra.mxu0 0.0
    %4533 = vmatprep.subr.mxu0 0.0
    %4534 = vmatpush1.msra.mxu0 0.0
    %4535 = vmatprep.subr.mxu0 0.0
    %4536 = vmatpush1.msra.mxu0 0.0
    %4537 = vmatprep.subr.mxu0 0.0
    %4538 = vmatpush1.msra.mxu0 0.0
    %4539 = vmatprep.subr.mxu0 0.0
    %4540 = vmatpush1.msra.mxu0 0.0
    %4541 = vmatprep.subr.mxu0 0.0
    %4542 = vmatpush1.msra.mxu0 0.0
    %4543 = vmatprep.subr.mxu0 0.0
    %4544 = vmatpush1.msra.mxu0 0.0
    %4545 = vmatprep.subr.mxu0 0.0
    %4546 = vmatpush1.msra.mxu0 0.0
    %4547 = vmatprep.subr.mxu0 0.0
    %4548 = vmatpush1.msra.mxu0 0.0
    %4549 = vmatprep.mubr.f32.mxu0 0.0
    %4550 = vmatmul.mubr.f32.gmra.mrb[0].mxu0 %v4480
    %v4551 = vpop.f32.mrb[0].mxu0
    %v4552 = vadd.f32 0.0, %v4551
    %v4553 = vpop.f32.mrb[0].mxu0
    %4554 = vmatprep.mubr.f32.mxu0 0.0
    %4555 = vmatmul.mubr.f32.gmra.mrb[0].mxu0 %v4483
    %v4556 = vpop.f32.mrb[0].mxu0
    %v4557 = vadd.f32 0.0, %v4556
    %v4558 = vpop.f32.mrb[0].mxu0
    %4559 = vdwg.mxu0
    %v4560 = vadd.f32 %v4041, %v4552
    %v4561 = vadd.f32 %v4042, %v4557
    %v4562 = vadd.f32 %v2436, %v4560
    %v4563 = vadd.f32 %v2437, %v4561
    %s4564 = scalar_lea.vmem %s8, 1
    %v4565 = vld [vmem:[%s4564] sm:$0x1]
    %v4567 = vlaneseq
    %v4568 = vshrl.u32 %v4567, 7
    %v4569 = vsub.s32 0, %v4568
    %v4570 = vrot.slane %v4565, %v4569
    %v4572 = vadd.f32 %v4562, %v4570
    %v4573 = vadd.f32 %v4563, %v4570
    %s4574 = scalar_lea.vmem %s9, 1
    %v4575 = vld [vmem:[%s4574] sm:$0x1]
    %s4576 = scalar_lea.vmem %s10, 1
    %v4577 = vld [vmem:[%s4576] sm:$0x1]
    %v4578 = vsel %vm69, %v4572, 0.0
    %4579 = vadd.xlane.f32.xlu0 %v4578
    %v4580 = vpop.xlane.xlu0 %4579
    %v4581 = vsel %vm69, %v4573, 0.0
    %4582 = vadd.xlane.f32.xlu0 %v4581
    %v4583 = vpop.xlane.xlu0 %4582
    %v4584 = vmul.f32 %v4580, %v76
    %v4585 = vmul.f32 %v4583, %v76
    %v4586 = vsub.f32 %v4572, %v4584
    %v4587 = vsub.f32 %v4573, %v4585
    %v4588 = vmul.f32 %v4586, %v4586
    %v4589 = vmul.f32 %v4587, %v4587
    %v4590 = vsel %vm69, %v4588, 0.0
    %4591 = vadd.xlane.f32.xlu0 %v4590
    %v4592 = vpop.xlane.xlu0 %4591
    %v4593 = vsel %vm69, %v4589, 0.0
    %4594 = vadd.xlane.f32.xlu0 %v4593
    %v4595 = vpop.xlane.xlu0 %4594
    %v4596 = vmul.f32 %v4592, %v76
    %v4597 = vmul.f32 %v4595, %v76
    %v4598 = vadd.f32 %v4596, 1e-05
    %v4599 = vadd.f32 %v4597, 1e-05
    %v4600 = vrsqrt.pop %v4598
    %v4601 = vrsqrt.pop %v4599
    %v4602 = vmul.f32 %v4586, %v4600
    %v4603 = vmul.f32 %v4587, %v4601
    %v4605 = vlaneseq
    %v4606 = vshrl.u32 %v4605, 7
    %v4607 = vsub.s32 0, %v4606
    %v4608 = vrot.slane %v4575, %v4607
    %v4610 = vmul.f32 %v4602, %v4608
    %v4611 = vmul.f32 %v4603, %v4608
    %v4613 = vlaneseq
    %v4614 = vshrl.u32 %v4613, 7
    %v4615 = vsub.s32 0, %v4614
    %v4616 = vrot.slane %v4577, %v4615
    %v4618 = vadd.f32 %v4610, %v4616
    %v4619 = vadd.f32 %v4611, %v4616
    %s4620 = scalar_lea.vmem %s11, 32
    %v4621 = vld [vmem:[%s4620] sm:$0xff]
    %v4622 = vld [vmem:[%s4620 + $0x8] sm:$0xff]
    %v4623 = vld [vmem:[%s4620 + $0x10] sm:$0xff]
    %v4624 = vld [vmem:[%s4620 + $0x18] sm:$0xff]
    %s4625 = scalar_lea.vmem %s12, 1
    %v4626 = vld [vmem:[%s4625] sm:$0x1]
    %v4628 = vlaneseq
    %v4629 = vshrl.u32 %v4628, 7
    %v4630 = vsub.s32 0, %v4629
    %v4631 = vrot.slane %v4626, %v4630
    %v4634 = vsel %vm69, %v4618, 0
    %v4637 = vsel %vm69, %v4619, 0
    %4639 = vmatprep.subr.mxu0 0.0
    %4640 = vmatpush1.msra.mxu0 %v4621
    %4641 = vmatprep.subr.mxu0 0.0
    %4642 = vmatpush1.msra.mxu0 %v4622
    %4643 = vmatprep.subr.mxu0 0.0
    %4644 = vmatpush1.msra.mxu0 %v4623
    %4645 = vmatprep.subr.mxu0 0.0
    %4646 = vmatpush1.msra.mxu0 %v4624
    %4647 = vmatprep.subr.mxu0 0.0
    %4648 = vmatpush1.msra.mxu0 0.0
    %4649 = vmatprep.subr.mxu0 0.0
    %4650 = vmatpush1.msra.mxu0 0.0
    %4651 = vmatprep.subr.mxu0 0.0
    %4652 = vmatpush1.msra.mxu0 0.0
    %4653 = vmatprep.subr.mxu0 0.0
    %4654 = vmatpush1.msra.mxu0 0.0
    %4655 = vmatprep.subr.mxu0 0.0
    %4656 = vmatpush1.msra.mxu0 0.0
    %4657 = vmatprep.subr.mxu0 0.0
    %4658 = vmatpush1.msra.mxu0 0.0
    %4659 = vmatprep.subr.mxu0 0.0
    %4660 = vmatpush1.msra.mxu0 0.0
    %4661 = vmatprep.subr.mxu0 0.0
    %4662 = vmatpush1.msra.mxu0 0.0
    %4663 = vmatprep.subr.mxu0 0.0
    %4664 = vmatpush1.msra.mxu0 0.0
    %4665 = vmatprep.subr.mxu0 0.0
    %4666 = vmatpush1.msra.mxu0 0.0
    %4667 = vmatprep.subr.mxu0 0.0
    %4668 = vmatpush1.msra.mxu0 0.0
    %4669 = vmatprep.subr.mxu0 0.0
    %4670 = vmatpush1.msra.mxu0 0.0
    %4671 = vmatprep.subr.mxu0 0.0
    %4672 = vmatpush1.msra.mxu0 0.0
    %4673 = vmatprep.subr.mxu0 0.0
    %4674 = vmatpush1.msra.mxu0 0.0
    %4675 = vmatprep.subr.mxu0 0.0
    %4676 = vmatpush1.msra.mxu0 0.0
    %4677 = vmatprep.subr.mxu0 0.0
    %4678 = vmatpush1.msra.mxu0 0.0
    %4679 = vmatprep.subr.mxu0 0.0
    %4680 = vmatpush1.msra.mxu0 0.0
    %4681 = vmatprep.subr.mxu0 0.0
    %4682 = vmatpush1.msra.mxu0 0.0
    %4683 = vmatprep.subr.mxu0 0.0
    %4684 = vmatpush1.msra.mxu0 0.0
    %4685 = vmatprep.subr.mxu0 0.0
    %4686 = vmatpush1.msra.mxu0 0.0
    %4687 = vmatprep.subr.mxu0 0.0
    %4688 = vmatpush1.msra.mxu0 0.0
    %4689 = vmatprep.subr.mxu0 0.0
    %4690 = vmatpush1.msra.mxu0 0.0
    %4691 = vmatprep.subr.mxu0 0.0
    %4692 = vmatpush1.msra.mxu0 0.0
    %4693 = vmatprep.subr.mxu0 0.0
    %4694 = vmatpush1.msra.mxu0 0.0
    %4695 = vmatprep.subr.mxu0 0.0
    %4696 = vmatpush1.msra.mxu0 0.0
    %4697 = vmatprep.subr.mxu0 0.0
    %4698 = vmatpush1.msra.mxu0 0.0
    %4699 = vmatprep.subr.mxu0 0.0
    %4700 = vmatpush1.msra.mxu0 0.0
    %4701 = vmatprep.subr.mxu0 0.0
    %4702 = vmatpush1.msra.mxu0 0.0
    %4703 = vmatprep.mubr.f32.mxu0 0.0
    %4704 = vmatmul.mubr.f32.gmra.mrb[0].mxu0 %v4634
    %v4705 = vpop.f32.mrb[0].mxu0
    %v4706 = vadd.f32 %v4631, %v4705
    %v4707 = vpop.f32.mrb[0].mxu0
    %4708 = vmatprep.mubr.f32.mxu0 0.0
    %4709 = vmatmul.mubr.f32.gmra.mrb[0].mxu0 %v4637
    %v4710 = vpop.f32.mrb[0].mxu0
    %v4711 = vadd.f32 %v4631, %v4710
    %v4712 = vpop.f32.mrb[0].mxu0
    %4713 = vdwg.mxu0
    %v4714 = vmax.f32 %v4706, 0.0
    %v4715 = vmax.f32 %v4711, 0.0
    %s4716 = scalar_lea.vmem %s13, 128
    %v4717 = vld [vmem:[%s4716] sm:$0xff]
    %v4718 = vld [vmem:[%s4716 + $0x8] sm:$0xff]
    %v4719 = vld [vmem:[%s4716 + $0x10] sm:$0xff]
    %v4720 = vld [vmem:[%s4716 + $0x18] sm:$0xff]
    %v4721 = vld [vmem:[%s4716 + $0x20] sm:$0xff]
    %v4722 = vld [vmem:[%s4716 + $0x28] sm:$0xff]
    %v4723 = vld [vmem:[%s4716 + $0x30] sm:$0xff]
    %v4724 = vld [vmem:[%s4716 + $0x38] sm:$0xff]
    %v4725 = vld [vmem:[%s4716 + $0x40] sm:$0xff]
    %v4726 = vld [vmem:[%s4716 + $0x48] sm:$0xff]
    %v4727 = vld [vmem:[%s4716 + $0x50] sm:$0xff]
    %v4728 = vld [vmem:[%s4716 + $0x58] sm:$0xff]
    %v4729 = vld [vmem:[%s4716 + $0x60] sm:$0xff]
    %v4730 = vld [vmem:[%s4716 + $0x68] sm:$0xff]
    %v4731 = vld [vmem:[%s4716 + $0x70] sm:$0xff]
    %v4732 = vld [vmem:[%s4716 + $0x78] sm:$0xff]
    %s4733 = scalar_lea.vmem %s14, 1
    %v4734 = vld [vmem:[%s4733] sm:$0x1]
    %v4736 = vlaneseq
    %v4737 = vshrl.u32 %v4736, 7
    %v4738 = vsub.s32 0, %v4737
    %v4739 = vrot.slane %v4734, %v4738
    %4741 = vmatprep.subr.mxu0 0.0
    %4742 = vmatpush1.msra.mxu0 %v4717
    %4743 = vmatprep.subr.mxu0 0.0
    %4744 = vmatpush1.msra.mxu0 %v4718
    %4745 = vmatprep.subr.mxu0 0.0
    %4746 = vmatpush1.msra.mxu0 %v4719
    %4747 = vmatprep.subr.mxu0 0.0
    %4748 = vmatpush1.msra.mxu0 %v4720
    %4749 = vmatprep.subr.mxu0 0.0
    %4750 = vmatpush1.msra.mxu0 %v4721
    %4751 = vmatprep.subr.mxu0 0.0
    %4752 = vmatpush1.msra.mxu0 %v4722
    %4753 = vmatprep.subr.mxu0 0.0
    %4754 = vmatpush1.msra.mxu0 %v4723
    %4755 = vmatprep.subr.mxu0 0.0
    %4756 = vmatpush1.msra.mxu0 %v4724
    %4757 = vmatprep.subr.mxu0 0.0
    %4758 = vmatpush1.msra.mxu0 %v4725
    %4759 = vmatprep.subr.mxu0 0.0
    %4760 = vmatpush1.msra.mxu0 %v4726
    %4761 = vmatprep.subr.mxu0 0.0
    %4762 = vmatpush1.msra.mxu0 %v4727
    %4763 = vmatprep.subr.mxu0 0.0
    %4764 = vmatpush1.msra.mxu0 %v4728
    %4765 = vmatprep.subr.mxu0 0.0
    %4766 = vmatpush1.msra.mxu0 %v4729
    %4767 = vmatprep.subr.mxu0 0.0
    %4768 = vmatpush1.msra.mxu0 %v4730
    %4769 = vmatprep.subr.mxu0 0.0
    %4770 = vmatpush1.msra.mxu0 %v4731
    %4771 = vmatprep.subr.mxu0 0.0
    %4772 = vmatpush1.msra.mxu0 %v4732
    %4773 = vmatprep.subr.mxu0 0.0
    %4774 = vmatpush1.msra.mxu0 0.0
    %4775 = vmatprep.subr.mxu0 0.0
    %4776 = vmatpush1.msra.mxu0 0.0
    %4777 = vmatprep.subr.mxu0 0.0
    %4778 = vmatpush1.msra.mxu0 0.0
    %4779 = vmatprep.subr.mxu0 0.0
    %4780 = vmatpush1.msra.mxu0 0.0
    %4781 = vmatprep.subr.mxu0 0.0
    %4782 = vmatpush1.msra.mxu0 0.0
    %4783 = vmatprep.subr.mxu0 0.0
    %4784 = vmatpush1.msra.mxu0 0.0
    %4785 = vmatprep.subr.mxu0 0.0
    %4786 = vmatpush1.msra.mxu0 0.0
    %4787 = vmatprep.subr.mxu0 0.0
    %4788 = vmatpush1.msra.mxu0 0.0
    %4789 = vmatprep.subr.mxu0 0.0
    %4790 = vmatpush1.msra.mxu0 0.0
    %4791 = vmatprep.subr.mxu0 0.0
    %4792 = vmatpush1.msra.mxu0 0.0
    %4793 = vmatprep.subr.mxu0 0.0
    %4794 = vmatpush1.msra.mxu0 0.0
    %4795 = vmatprep.subr.mxu0 0.0
    %4796 = vmatpush1.msra.mxu0 0.0
    %4797 = vmatprep.subr.mxu0 0.0
    %4798 = vmatpush1.msra.mxu0 0.0
    %4799 = vmatprep.subr.mxu0 0.0
    %4800 = vmatpush1.msra.mxu0 0.0
    %4801 = vmatprep.subr.mxu0 0.0
    %4802 = vmatpush1.msra.mxu0 0.0
    %4803 = vmatprep.subr.mxu0 0.0
    %4804 = vmatpush1.msra.mxu0 0.0
    %4805 = vmatprep.mubr.f32.mxu0 0.0
    %4806 = vmatmul.mubr.f32.gmra.mrb[0].mxu0 %v4714
    %v4807 = vpop.f32.mrb[0].mxu0
    %v4808 = vadd.f32 %v4739, %v4807
    %v4809 = vpop.f32.mrb[0].mxu0
    %4810 = vmatprep.mubr.f32.mxu0 0.0
    %4811 = vmatmul.mubr.f32.gmra.mrb[0].mxu0 %v4715
    %v4812 = vpop.f32.mrb[0].mxu0
    %v4813 = vadd.f32 %v4739, %v4812
    %v4814 = vpop.f32.mrb[0].mxu0
    %4815 = vdwg.mxu0
    %v4816 = vadd.f32 %v4572, %v4808
    %v4817 = vadd.f32 %v4573, %v4813
    %v4818 = vld [vmem:[%s15] sm:$0x1]
    %v4819 = vld [vmem:[%s16] sm:$0x1]
    %v4820 = vsel %vm69, %v4816, 0.0
    %4821 = vadd.xlane.f32.xlu0 %v4820
    %v4822 = vpop.xlane.xlu0 %4821
    %v4823 = vsel %vm69, %v4817, 0.0
    %4824 = vadd.xlane.f32.xlu0 %v4823
    %v4825 = vpop.xlane.xlu0 %4824
    %v4826 = vmul.f32 %v4822, %v76
    %v4827 = vmul.f32 %v4825, %v76
    %v4828 = vsub.f32 %v4816, %v4826
    %v4829 = vsub.f32 %v4817, %v4827
    %v4830 = vmul.f32 %v4828, %v4828
    %v4831 = vmul.f32 %v4829, %v4829
    %v4832 = vsel %vm69, %v4830, 0.0
    %4833 = vadd.xlane.f32.xlu0 %v4832
    %v4834 = vpop.xlane.xlu0 %4833
    %v4835 = vsel %vm69, %v4831, 0.0
    %4836 = vadd.xlane.f32.xlu0 %v4835
    %v4837 = vpop.xlane.xlu0 %4836
    %v4838 = vmul.f32 %v4834, %v76
    %v4839 = vmul.f32 %v4837, %v76
    %v4840 = vadd.f32 %v4838, 1e-05
    %v4841 = vadd.f32 %v4839, 1e-05
    %v4842 = vrsqrt.pop %v4840
    %v4843 = vrsqrt.pop %v4841
    %v4844 = vmul.f32 %v4828, %v4842
    %v4845 = vmul.f32 %v4829, %v4843
    %v4847 = vlaneseq
    %v4848 = vshrl.u32 %v4847, 7
    %v4849 = vsub.s32 0, %v4848
    %v4850 = vrot.slane %v4818, %v4849
    %v4852 = vmul.f32 %v4844, %v4850
    %v4853 = vmul.f32 %v4845, %v4850
    %v4855 = vlaneseq
    %v4856 = vshrl.u32 %v4855, 7
    %v4857 = vsub.s32 0, %v4856
    %v4858 = vrot.slane %v4819, %v4857
    %v4860 = vadd.f32 %v4852, %v4858
    %v4861 = vadd.f32 %v4853, %v4858
    %v4862 = vld [vmem:[%s17] sm:$0xff]
    %v4863 = vld [vmem:[%s17 + $0x8] sm:$0xff]
    %v4864 = vld [vmem:[%s17 + $0x10] sm:$0xff]
    %v4865 = vld [vmem:[%s17 + $0x18] sm:$0xff]
    %v4866 = vld [vmem:[%s18] sm:$0x1]
    %v4868 = vlaneseq
    %v4869 = vshrl.u32 %v4868, 7
    %v4870 = vsub.s32 0, %v4869
    %v4871 = vrot.slane %v4866, %v4870
    %v4874 = vsel %vm69, %v4860, 0
    %v4877 = vsel %vm69, %v4861, 0
    %4879 = vmatprep.subr.mxu0 0.0
    %4880 = vmatpush1.msra.mxu0 %v4862
    %4881 = vmatprep.subr.mxu0 0.0
    %4882 = vmatpush1.msra.mxu0 %v4863
    %4883 = vmatprep.subr.mxu0 0.0
    %4884 = vmatpush1.msra.mxu0 %v4864
    %4885 = vmatprep.subr.mxu0 0.0
    %4886 = vmatpush1.msra.mxu0 %v4865
    %4887 = vmatprep.subr.mxu0 0.0
    %4888 = vmatpush1.msra.mxu0 0.0
    %4889 = vmatprep.subr.mxu0 0.0
    %4890 = vmatpush1.msra.mxu0 0.0
    %4891 = vmatprep.subr.mxu0 0.0
    %4892 = vmatpush1.msra.mxu0 0.0
    %4893 = vmatprep.subr.mxu0 0.0
    %4894 = vmatpush1.msra.mxu0 0.0
    %4895 = vmatprep.subr.mxu0 0.0
    %4896 = vmatpush1.msra.mxu0 0.0
    %4897 = vmatprep.subr.mxu0 0.0
    %4898 = vmatpush1.msra.mxu0 0.0
    %4899 = vmatprep.subr.mxu0 0.0
    %4900 = vmatpush1.msra.mxu0 0.0
    %4901 = vmatprep.subr.mxu0 0.0
    %4902 = vmatpush1.msra.mxu0 0.0
    %4903 = vmatprep.subr.mxu0 0.0
    %4904 = vmatpush1.msra.mxu0 0.0
    %4905 = vmatprep.subr.mxu0 0.0
    %4906 = vmatpush1.msra.mxu0 0.0
    %4907 = vmatprep.subr.mxu0 0.0
    %4908 = vmatpush1.msra.mxu0 0.0
    %4909 = vmatprep.subr.mxu0 0.0
    %4910 = vmatpush1.msra.mxu0 0.0
    %4911 = vmatprep.subr.mxu0 0.0
    %4912 = vmatpush1.msra.mxu0 0.0
    %4913 = vmatprep.subr.mxu0 0.0
    %4914 = vmatpush1.msra.mxu0 0.0
    %4915 = vmatprep.subr.mxu0 0.0
    %4916 = vmatpush1.msra.mxu0 0.0
    %4917 = vmatprep.subr.mxu0 0.0
    %4918 = vmatpush1.msra.mxu0 0.0
    %4919 = vmatprep.subr.mxu0 0.0
    %4920 = vmatpush1.msra.mxu0 0.0
    %4921 = vmatprep.subr.mxu0 0.0
    %4922 = vmatpush1.msra.mxu0 0.0
    %4923 = vmatprep.subr.mxu0 0.0
    %4924 = vmatpush1.msra.mxu0 0.0
    %4925 = vmatprep.subr.mxu0 0.0
    %4926 = vmatpush1.msra.mxu0 0.0
    %4927 = vmatprep.subr.mxu0 0.0
    %4928 = vmatpush1.msra.mxu0 0.0
    %4929 = vmatprep.subr.mxu0 0.0
    %4930 = vmatpush1.msra.mxu0 0.0
    %4931 = vmatprep.subr.mxu0 0.0
    %4932 = vmatpush1.msra.mxu0 0.0
    %4933 = vmatprep.subr.mxu0 0.0
    %4934 = vmatpush1.msra.mxu0 0.0
    %4935 = vmatprep.subr.mxu0 0.0
    %4936 = vmatpush1.msra.mxu0 0.0
    %4937 = vmatprep.subr.mxu0 0.0
    %4938 = vmatpush1.msra.mxu0 0.0
    %4939 = vmatprep.subr.mxu0 0.0
    %4940 = vmatpush1.msra.mxu0 0.0
    %4941 = vmatprep.subr.mxu0 0.0
    %4942 = vmatpush1.msra.mxu0 0.0
    %4943 = vmatprep.mubr.f32.mxu0 0.0
    %4944 = vmatmul.mubr.f32.gmra.mrb[0].mxu0 %v4874
    %v4945 = vpop.f32.mrb[0].mxu0
    %v4946 = vadd.f32 %v4871, %v4945
    %v4947 = vpop.f32.mrb[0].mxu0
    %4948 = vmatprep.mubr.f32.mxu0 0.0
    %4949 = vmatmul.mubr.f32.gmra.mrb[0].mxu0 %v4877
    %v4950 = vpop.f32.mrb[0].mxu0
    %v4951 = vadd.f32 %v4871, %v4950
    %v4952 = vpop.f32.mrb[0].mxu0
    %4953 = vdwg.mxu0
    %4954 = vst [vmem:[#allocation2] sm:$0xff] %v4946
    %4955 = vst [vmem:[#allocation2 + $0x8] sm:$0xff] %v4951
    // Predicated region
    $region78: #{gpt_forward.1} parent=1 // pred_check
      _
    $region79: #{gpt_forward.1} parent=1 // pred_check_branch
      %4957 = sbr.rel (0) target = $region81
    $region80: #{gpt_forward.1} parent=1 // pred_region
      %s4959 = ssub.s32 256, 256
      %4960 = vsyncadd [#allocation3], %s4959
      %s4961 = sshll.u32 [#allocation2], 4
      %s4962 = int_to_ptr.vmem [resolvable:$true] %s4961
      %4967 = dma.vmem_to_hbm [thread:$0]  %s4962, 256, %s19, [#allocation3], 128, 128, 8
    $region81: #{gpt_forward.1} parent=1 // pred_fallthru
      _
    // Predicated region
    $region82: #{gpt_forward.1} parent=1 // pred_check
      _
    $region83: #{gpt_forward.1} parent=1 // pred_check_branch
      %4969 = sbr.rel (0) target = $region85
    $region84: #{gpt_forward.1} parent=1 // pred_region
      %4970 = dma.done [#allocation3], 256
    $region85: #{gpt_forward.1} parent=1 // pred_fallthru
      _
    %4971 = vsyncpa [#allocation3], 1

</llo_original>
